<compile_context>
chip_gen: v5e
topology: v5e:2x2
jax: 0.10.0
libtpu: 0.0.40
codegen_flags: <defaults>
</compile_context>

<pallas_src>
import jax
import jax.numpy as jnp
import numpy as np
from jax import lax
from jax.experimental import pallas as pl
from jax.experimental.pallas import tpu as pltpu

LANE = 128


def _bottleneck_kernel(x_ref, w1_ref, b1_ref, w2_ref, b2_ref, w3_ref, b3_ref,
                       o_ref, srow_ref, patch_ref):
    """One batch element per grid step; everything resident in VMEM."""
    _, H, W, Cin = x_ref.shape
    Pp = w1_ref.shape[1]
    Cout = w3_ref.shape[1]
    HW = H * W

    xb = x_ref[0].reshape(HW, Cin)                       # (HW, Cin) bf16

    # ---- conv1 (1x1) + bn1 (scale folded into w1) + relu -------------------
    h1 = jnp.dot(xb, w1_ref[...], preferred_element_type=jnp.float32)
    h1 = jnp.maximum(h1 + b1_ref[...], 0.0)              # (HW, Pp) f32

    # ---- conv2 (3x3, pad=1, stride=1) + bn2 + relu --------------------------
    # Build the dw = -1 / +1 column-shifted copies of h1 via a (HW+2, Pp)
    # scratch: one shifted store, two reads, plus a W-border mask.  The two
    # un-written border rows of srow are always masked away.
    srow_ref[1:HW + 1, :] = h1
    xcol = lax.broadcasted_iota(jnp.int32, (HW, 1), 0) % W
    left = jnp.where(xcol != 0, srow_ref[0:HW, :], 0.0)          # x-1, zero pad
    right = jnp.where(xcol != W - 1, srow_ref[2:HW + 2, :], 0.0)  # x+1, zero pad
    by_dw = (left.astype(jnp.bfloat16),
             h1.astype(jnp.bfloat16),
             right.astype(jnp.bfloat16))                 # dw = 0, 1, 2

    # Assemble the (HW, 9*Pp) im2col matrix.  Row shifts for dh are multiples
    # of W (W % 8 == 0) and lane offsets are multiples of 128, so every store
    # below is aligned; every element of patch_ref is overwritten each step.
    zw = jnp.zeros((W, Pp), jnp.bfloat16)
    for dh in range(3):
        for dw in range(3):
            t = dh * 3 + dw
            a = by_dw[dw]
            col = slice(t * Pp, (t + 1) * Pp)
            if dh == 0:                                  # source row y-1
                patch_ref[0:W, col] = zw
                patch_ref[W:HW, col] = a[0:HW - W]
            elif dh == 1:                                # source row y
                patch_ref[:, col] = a
            else:                                        # source row y+1
                patch_ref[0:HW - W, col] = a[W:HW]
                patch_ref[HW - W:HW, col] = zw

    h2 = jnp.dot(patch_ref[...], w2_ref[...],
                 preferred_element_type=jnp.float32)     # K = 9*Pp
    h2 = jnp.maximum(h2 + b2_ref[...], 0.0)              # (HW, Pp) f32

    # ---- conv3 (1x1) + bn3 --------------------------------------------------
    h3 = jnp.dot(h2.astype(jnp.bfloat16), w3_ref[...],
                 preferred_element_type=jnp.float32)
    h3 = h3 + b3_ref[...]                                # (HW, Cout) f32

    # ---- identity residual (re-read x: short live range) + relu ------------
    x_res = x_ref[0].reshape(HW, Cin).astype(jnp.float32)
    o_ref[...] = jnp.maximum(h3 + x_res, 0.0).reshape(1, H, W, Cout)


def bottleneck_pallas(x_nhwc, w1, b1, w2, b2, w3, b3):
    """x_nhwc: (N,H,W,Cp) bf16; w*: bf16 with BN scale folded; b*: f32."""
    N, H, W, Cin = x_nhwc.shape
    Pp = w1.shape[1]
    Cout = w3.shape[1]
    assert Cin == Cout, "identity residual requires inplanes == 4*planes"
    assert Cin % LANE == 0 and Pp % LANE == 0 and Cout % LANE == 0
    assert W % 8 == 0, "W must be a multiple of the sublane size"

    grid_spec = pltpu.PrefetchScalarGridSpec(
        num_scalar_prefetch=0,
        grid=(N,),
        in_specs=[
            pl.BlockSpec((1, H, W, Cin), lambda n: (n, 0, 0, 0)),
            pl.BlockSpec(w1.shape, lambda n: (0, 0)),
            pl.BlockSpec(b1.shape, lambda n: (0, 0)),
            pl.BlockSpec(w2.shape, lambda n: (0, 0)),
            pl.BlockSpec(b2.shape, lambda n: (0, 0)),
            pl.BlockSpec(w3.shape, lambda n: (0, 0)),
            pl.BlockSpec(b3.shape, lambda n: (0, 0)),
        ],
        out_specs=pl.BlockSpec((1, H, W, Cout), lambda n: (n, 0, 0, 0)),
        scratch_shapes=[
            pltpu.VMEM((H * W + 2, Pp), jnp.float32),     # row-shift buffer
            pltpu.VMEM((H * W, 9 * Pp), jnp.bfloat16),    # im2col patches
        ],
    )

    return pl.pallas_call(
        _bottleneck_kernel,
        out_shape=jax.ShapeDtypeStruct((N, H, W, Cout), jnp.float32),
        grid_spec=grid_spec,
        compiler_params=pltpu.CompilerParams(
            dimension_semantics=("parallel",),
            # Per-step working set is ~2 MiB; state the budget explicitly so
            # sizing does not silently rely on the 128 MiB chips (v7x = 64 MiB).
            vmem_limit_bytes=32 * 1024 * 1024,
        ),
    )(x_nhwc, w1, b1, w2, b2, w3, b3)


# ------------------------------ wrapper helpers -------------------------------
def _round_up(n, m):
    return (n + m - 1) // m * m


def _pad_axis(a, axis, size):
    pad = [(0, 0)] * a.ndim
    pad[axis] = (0, size - a.shape[axis])
    return jnp.pad(a, pad)


def _fold_bn(gamma, beta, mean, var, eps):
    scale = gamma / jnp.sqrt(var + eps)
    return scale, beta - mean * scale


# ----------------------------- plain-JAX reference ---------------------------
def _bn_eval(x_nchw, gamma, beta, mean, var, eps=1e-5):
    inv = gamma / jnp.sqrt(var + eps)
    return (x_nchw - mean[None, :, None, None]) * inv[None, :, None, None] \
        + beta[None, :, None, None]


def bottleneck_reference(x_nchw, p):
    dn = ("NCHW", "OIHW", "NCHW")
    out = lax.conv_general_dilated(x_nchw, p["w1"], (1, 1), "VALID",
                                   dimension_numbers=dn)
    out = jnp.maximum(_bn_eval(out, *p["bn1"]), 0.0)
    out = lax.conv_general_dilated(out, p["w2"], (1, 1), ((1, 1), (1, 1)),
                                   dimension_numbers=dn)
    out = jnp.maximum(_bn_eval(out, *p["bn2"]), 0.0)
    out = lax.conv_general_dilated(out, p["w3"], (1, 1), "VALID",
                                   dimension_numbers=dn)
    out = _bn_eval(out, *p["bn3"])
    return jnp.maximum(out + x_nchw, 0.0)


# ----------------------------------- main ------------------------------------
if __name__ == "__main__":
    planes = 4
    inplanes = planes * 4            # identity residual (downsample=None)
    N, H, W = 2, 16, 16
    eps = 1e-5

    key = jax.random.PRNGKey(0)
    keys = jax.random.split(key, 16)

    # PyTorch-shaped parameters (OIHW conv weights, per-channel BN stats).
    w1_t = jax.random.normal(keys[0], (planes, inplanes, 1, 1), jnp.float32) * 0.1
    w2_t = jax.random.normal(keys[1], (planes, planes, 3, 3), jnp.float32) * 0.1
    w3_t = jax.random.normal(keys[2], (planes * 4, planes, 1, 1), jnp.float32) * 0.1

    def bn_params(k, c):
        k1, k2, k3, k4 = jax.random.split(k, 4)
        gamma = jax.random.uniform(k1, (c,), jnp.float32, 0.5, 1.5)
        beta = jax.random.normal(k2, (c,), jnp.float32) * 0.1
        mean = jax.random.normal(k3, (c,), jnp.float32) * 0.1
        var = jax.random.uniform(k4, (c,), jnp.float32, 0.5, 1.5)
        return gamma, beta, mean, var

    bn1 = bn_params(keys[3], planes)
    bn2 = bn_params(keys[4], planes)
    bn3 = bn_params(keys[5], planes * 4)

    x_nchw = jax.random.normal(keys[6], (N, inplanes, H, W), jnp.float32)

    # ---- glue: BN folding into weights, channel padding, bf16, NHWC ---------
    Cin_p = _round_up(inplanes, LANE)
    P_p = _round_up(planes, LANE)
    Cout_p = _round_up(planes * 4, LANE)

    s1, b1 = _fold_bn(*bn1, eps)
    s2, b2 = _fold_bn(*bn2, eps)
    s3, b3 = _fold_bn(*bn3, eps)

    # conv1: OIHW (P,Cin,1,1) -> (Cin,P); BN scale folded into output columns.
    w1 = jnp.transpose(w1_t[:, :, 0, 0], (1, 0)) * s1[None, :]
    w1 = _pad_axis(_pad_axis(w1, 0, Cin_p), 1, P_p).astype(jnp.bfloat16)
    # conv2: OIHW -> HWIO (3,3,P,P); scale folded, padded, flattened to K=9*P_p
    # with tap-major / input-channel-minor row order (matches kernel im2col).
    w2 = jnp.transpose(w2_t, (2, 3, 1, 0)) * s2[None, None, None, :]
    w2 = _pad_axis(_pad_axis(w2, 2, P_p), 3, P_p)
    w2 = w2.reshape(9 * P_p, P_p).astype(jnp.bfloat16)
    # conv3: OIHW (4P,P,1,1) -> (P,4P); scale folded.
    w3 = jnp.transpose(w3_t[:, :, 0, 0], (1, 0)) * s3[None, :]
    w3 = _pad_axis(_pad_axis(w3, 0, P_p), 1, Cout_p).astype(jnp.bfloat16)

    b1p = _pad_axis(b1[None, :], 1, P_p).astype(jnp.float32)
    b2p = _pad_axis(b2[None, :], 1, P_p).astype(jnp.float32)
    b3p = _pad_axis(b3[None, :], 1, Cout_p).astype(jnp.float32)

    x_nhwc = _pad_axis(jnp.transpose(x_nchw, (0, 2, 3, 1)), 3, Cin_p)
    x_nhwc = x_nhwc.astype(jnp.bfloat16)

    out_p = bottleneck_pallas(x_nhwc, w1, b1p, w2, b2p, w3, b3p)
    out_nchw = jnp.transpose(out_p[..., :planes * 4], (0, 3, 1, 2))
    out_nchw = jax.block_until_ready(out_nchw)

    ref = bottleneck_reference(
        x_nchw, {"w1": w1_t, "w2": w2_t, "w3": w3_t,
                 "bn1": bn1, "bn2": bn2, "bn3": bn3})
    ref = jax.block_until_ready(ref)

    # Kernel uses bf16 inputs/weights (f32 accumulation) vs an all-f32 reference.
    np.testing.assert_allclose(np.asarray(out_nchw), np.asarray(ref),
                               rtol=5e-2, atol=5e-2)
    print("KERNEL_OK")
</pallas_src>

<mosaic_0001>
module attributes {stable_mosaic.version = 11 : i64} {
  func.func @_bottleneck_kernel(%arg0: i32, %arg1: memref<1x16x16x128xbf16, #tpu.memory_space<vmem>>, %arg2: memref<128x128xbf16, #tpu.memory_space<vmem>>, %arg3: memref<1x128xf32, #tpu.memory_space<vmem>>, %arg4: memref<1152x128xbf16, #tpu.memory_space<vmem>>, %arg5: memref<1x128xf32, #tpu.memory_space<vmem>>, %arg6: memref<128x128xbf16, #tpu.memory_space<vmem>>, %arg7: memref<1x128xf32, #tpu.memory_space<vmem>>, %arg8: memref<1x16x16x128xf32, #tpu.memory_space<vmem>>, %arg9: memref<258x128xf32, #tpu.memory_space<vmem>>, %arg10: memref<256x1152xbf16, #tpu.memory_space<vmem>>) attributes {dimension_semantics = [#tpu.dimension_semantics<parallel>], iteration_bounds = array<i64: 2>, scalar_prefetch = 0 : i64, scratch_operands = 2 : i64, tpu.core_type = #tpu.core_type<tc>, window_params = [{transform_indices = @transform_0, window_bounds = array<i64: 1, 16, 16, 128>}, {pipeline_mode = #tpu.pipeline_mode<synchronous>, transform_indices = @transform_1, window_bounds = array<i64: 128, 128>}, {pipeline_mode = #tpu.pipeline_mode<synchronous>, transform_indices = @transform_2, window_bounds = array<i64: 1, 128>}, {pipeline_mode = #tpu.pipeline_mode<synchronous>, transform_indices = @transform_3, window_bounds = array<i64: 1152, 128>}, {pipeline_mode = #tpu.pipeline_mode<synchronous>, transform_indices = @transform_4, window_bounds = array<i64: 1, 128>}, {pipeline_mode = #tpu.pipeline_mode<synchronous>, transform_indices = @transform_5, window_bounds = array<i64: 128, 128>}, {pipeline_mode = #tpu.pipeline_mode<synchronous>, transform_indices = @transform_6, window_bounds = array<i64: 1, 128>}, {transform_indices = @transform_7, window_bounds = array<i64: 1, 16, 16, 128>}]} {
    %c0 = arith.constant 0 : index
    %c0_0 = arith.constant 0 : index
    %c0_1 = arith.constant 0 : index
    %c0_2 = arith.constant 0 : index
    %0 = vector.load %arg1[%c0, %c0_0, %c0_1, %c0_2] : memref<1x16x16x128xbf16, #tpu.memory_space<vmem>>, vector<1x16x16x128xbf16>
    %1 = vector.shape_cast %0 : vector<1x16x16x128xbf16> to vector<16x16x128xbf16>
    %2 = vector.shape_cast %1 : vector<16x16x128xbf16> to vector<256x128xbf16>
    %c0_3 = arith.constant 0 : index
    %c0_4 = arith.constant 0 : index
    %3 = vector.load %arg2[%c0_3, %c0_4] : memref<128x128xbf16, #tpu.memory_space<vmem>>, vector<128x128xbf16>
    %cst = arith.constant dense<0.000000e+00> : vector<256x128xf32>
    %4 = tpu.matmul %2, %3, %cst {dimension_numbers = #tpu.dot_dimension_numbers<[1], [0], [0], [1], [0, 0, 1, 1], [], []>} : vector<256x128xbf16>, vector<128x128xbf16>, vector<256x128xf32> -> vector<256x128xf32>
    %c0_5 = arith.constant 0 : index
    %c0_6 = arith.constant 0 : index
    %5 = vector.load %arg3[%c0_5, %c0_6] : memref<1x128xf32, #tpu.memory_space<vmem>>, vector<1x128xf32>
    %6 = vector.broadcast %5 : vector<1x128xf32> to vector<256x128xf32>
    %7 = arith.addf %4, %6 : vector<256x128xf32>
    %cst_7 = arith.constant 0.000000e+00 : f32
    %8 = vector.broadcast %cst_7 : f32 to vector<256x128xf32>
    %9 = arith.maximumf %7, %8 : vector<256x128xf32>
    %c1 = arith.constant 1 : index
    %c0_8 = arith.constant 0 : index
    %10 = vector.load %arg9[%c1, %c0_8] : memref<258x128xf32, #tpu.memory_space<vmem>>, vector<256x128xf32>
    tpu.vector_store %arg9[%c1, %c0_8], %9 {strides = array<i32>} : memref<258x128xf32, #tpu.memory_space<vmem>>, vector<256x128xf32>,
    %11 = tpu.iota {dimensions = array<i32: 0>} : vector<256x1xi32>
    %c16_i32 = arith.constant 16 : i32
    %c0_i32 = arith.constant 0 : i32
    %12 = arith.cmpi eq, %c16_i32, %c0_i32 : i32
    %c1_i32 = arith.constant 1 : i32
    %13 = arith.select %12, %c1_i32, %c16_i32 : i32
    %14 = vector.broadcast %13 : i32 to vector<256x1xi32>
    %15 = arith.remsi %11, %14 : vector<256x1xi32>
    %c0_i32_9 = arith.constant 0 : i32
    %16 = vector.broadcast %c0_i32_9 : i32 to vector<256x1xi32>
    %17 = arith.cmpi ne, %15, %16 : vector<256x1xi32>
    %c0_i32_10 = arith.constant 0 : i32
    %18 = vector.broadcast %c0_i32_10 : i32 to vector<256x1xi32>
    %19 = arith.cmpi slt, %15, %18 : vector<256x1xi32>
    %c0_i32_11 = arith.constant 0 : i32
    %20 = arith.cmpi slt, %13, %c0_i32_11 : i32
    %21 = vector.broadcast %20 : i1 to vector<256x1xi1>
    %22 = vector.broadcast %21 : vector<256x1xi1> to vector<256x1xi1>
    %23 = arith.xori %19, %22 : vector<256x1xi1>
    %24 = arith.andi %23, %17 : vector<256x1xi1>
    %25 = vector.broadcast %13 : i32 to vector<256x1xi32>
    %26 = arith.addi %15, %25 : vector<256x1xi32>
    %27 = arith.select %24, %26, %15 : vector<256x1xi1>, vector<256x1xi32>
    %c0_i32_12 = arith.constant 0 : i32
    %28 = vector.broadcast %c0_i32_12 : i32 to vector<256x1xi32>
    %29 = arith.cmpi ne, %27, %28 : vector<256x1xi32>
    %c0_13 = arith.constant 0 : index
    %c0_14 = arith.constant 0 : index
    %30 = vector.load %arg9[%c0_13, %c0_14] : memref<258x128xf32, #tpu.memory_space<vmem>>, vector<256x128xf32>
    %cst_15 = arith.constant 0.000000e+00 : f32
    %31 = vector.shape_cast %29 : vector<256x1xi1> to vector<256x1xi1>
    %32 = vector.broadcast %31 : vector<256x1xi1> to vector<256x128xi1>
    %33 = vector.broadcast %cst_15 : f32 to vector<256x128xf32>
    %34 = arith.select %32, %30, %33 : vector<256x128xi1>, vector<256x128xf32>
    %c15_i32 = arith.constant 15 : i32
    %35 = vector.broadcast %c15_i32 : i32 to vector<256x1xi32>
    %36 = arith.cmpi ne, %27, %35 : vector<256x1xi32>
    %c2 = arith.constant 2 : index
    %c0_16 = arith.constant 0 : index
    %37 = vector.load %arg9[%c2, %c0_16] : memref<258x128xf32, #tpu.memory_space<vmem>>, vector<256x128xf32>
    %cst_17 = arith.constant 0.000000e+00 : f32
    %38 = vector.shape_cast %36 : vector<256x1xi1> to vector<256x1xi1>
    %39 = vector.broadcast %38 : vector<256x1xi1> to vector<256x128xi1>
    %40 = vector.broadcast %cst_17 : f32 to vector<256x128xf32>
    %41 = arith.select %39, %37, %40 : vector<256x128xi1>, vector<256x128xf32>
    %42 = arith.truncf %34 : vector<256x128xf32> to vector<256x128xbf16>
    %43 = arith.truncf %9 : vector<256x128xf32> to vector<256x128xbf16>
    %44 = arith.truncf %41 : vector<256x128xf32> to vector<256x128xbf16>
    %cst_18 = arith.constant 0.000000e+00 : bf16
    %45 = vector.broadcast %cst_18 : bf16 to vector<16x128xbf16>
    %c0_19 = arith.constant 0 : index
    %c0_20 = arith.constant 0 : index
    %46 = vector.load %arg10[%c0_19, %c0_20] : memref<256x1152xbf16, #tpu.memory_space<vmem>>, vector<16x128xbf16>
    tpu.vector_store %arg10[%c0_19, %c0_20], %45 {strides = array<i32>} : memref<256x1152xbf16, #tpu.memory_space<vmem>>, vector<16x128xbf16>,
    %47 = vector.extract_strided_slice %42 {offsets = [0, 0], sizes = [240, 128], strides = [1, 1]} : vector<256x128xbf16> to vector<240x128xbf16>
    %c16 = arith.constant 16 : index
    %c0_21 = arith.constant 0 : index
    %48 = vector.load %arg10[%c16, %c0_21] : memref<256x1152xbf16, #tpu.memory_space<vmem>>, vector<240x128xbf16>
    tpu.vector_store %arg10[%c16, %c0_21], %47 {strides = array<i32>} : memref<256x1152xbf16, #tpu.memory_space<vmem>>, vector<240x128xbf16>,
    %c0_22 = arith.constant 0 : index
    %c128 = arith.constant 128 : index
    %49 = vector.load %arg10[%c0_22, %c128] : memref<256x1152xbf16, #tpu.memory_space<vmem>>, vector<16x128xbf16>
    tpu.vector_store %arg10[%c0_22, %c128], %45 {strides = array<i32>} : memref<256x1152xbf16, #tpu.memory_space<vmem>>, vector<16x128xbf16>,
    %50 = vector.extract_strided_slice %43 {offsets = [0, 0], sizes = [240, 128], strides = [1, 1]} : vector<256x128xbf16> to vector<240x128xbf16>
    %c16_23 = arith.constant 16 : index
    %c128_24 = arith.constant 128 : index
    %51 = vector.load %arg10[%c16_23, %c128_24] : memref<256x1152xbf16, #tpu.memory_space<vmem>>, vector<240x128xbf16>
    tpu.vector_store %arg10[%c16_23, %c128_24], %50 {strides = array<i32>} : memref<256x1152xbf16, #tpu.memory_space<vmem>>, vector<240x128xbf16>,
    %c0_25 = arith.constant 0 : index
    %c256 = arith.constant 256 : index
    %52 = vector.load %arg10[%c0_25, %c256] : memref<256x1152xbf16, #tpu.memory_space<vmem>>, vector<16x128xbf16>
    tpu.vector_store %arg10[%c0_25, %c256], %45 {strides = array<i32>} : memref<256x1152xbf16, #tpu.memory_space<vmem>>, vector<16x128xbf16>,
    %53 = vector.extract_strided_slice %44 {offsets = [0, 0], sizes = [240, 128], strides = [1, 1]} : vector<256x128xbf16> to vector<240x128xbf16>
    %c16_26 = arith.constant 16 : index
    %c256_27 = arith.constant 256 : index
    %54 = vector.load %arg10[%c16_26, %c256_27] : memref<256x1152xbf16, #tpu.memory_space<vmem>>, vector<240x128xbf16>
    tpu.vector_store %arg10[%c16_26, %c256_27], %53 {strides = array<i32>} : memref<256x1152xbf16, #tpu.memory_space<vmem>>, vector<240x128xbf16>,
    %c0_28 = arith.constant 0 : index
    %c384 = arith.constant 384 : index
    %55 = vector.load %arg10[%c0_28, %c384] : memref<256x1152xbf16, #tpu.memory_space<vmem>>, vector<256x128xbf16>
    tpu.vector_store %arg10[%c0_28, %c384], %42 {strides = array<i32>} : memref<256x1152xbf16, #tpu.memory_space<vmem>>, vector<256x128xbf16>,
    %c0_29 = arith.constant 0 : index
    %c512 = arith.constant 512 : index
    %56 = vector.load %arg10[%c0_29, %c512] : memref<256x1152xbf16, #tpu.memory_space<vmem>>, vector<256x128xbf16>
    tpu.vector_store %arg10[%c0_29, %c512], %43 {strides = array<i32>} : memref<256x1152xbf16, #tpu.memory_space<vmem>>, vector<256x128xbf16>,
    %c0_30 = arith.constant 0 : index
    %c640 = arith.constant 640 : index
    %57 = vector.load %arg10[%c0_30, %c640] : memref<256x1152xbf16, #tpu.memory_space<vmem>>, vector<256x128xbf16>
    tpu.vector_store %arg10[%c0_30, %c640], %44 {strides = array<i32>} : memref<256x1152xbf16, #tpu.memory_space<vmem>>, vector<256x128xbf16>,
    %58 = vector.extract_strided_slice %42 {offsets = [16, 0], sizes = [240, 128], strides = [1, 1]} : vector<256x128xbf16> to vector<240x128xbf16>
    %c0_31 = arith.constant 0 : index
    %c768 = arith.constant 768 : index
    %59 = vector.load %arg10[%c0_31, %c768] : memref<256x1152xbf16, #tpu.memory_space<vmem>>, vector<240x128xbf16>
    tpu.vector_store %arg10[%c0_31, %c768], %58 {strides = array<i32>} : memref<256x1152xbf16, #tpu.memory_space<vmem>>, vector<240x128xbf16>,
    %c240 = arith.constant 240 : index
    %c768_32 = arith.constant 768 : index
    %60 = vector.load %arg10[%c240, %c768_32] : memref<256x1152xbf16, #tpu.memory_space<vmem>>, vector<16x128xbf16>
    tpu.vector_store %arg10[%c240, %c768_32], %45 {strides = array<i32>} : memref<256x1152xbf16, #tpu.memory_space<vmem>>, vector<16x128xbf16>,
    %61 = vector.extract_strided_slice %43 {offsets = [16, 0], sizes = [240, 128], strides = [1, 1]} : vector<256x128xbf16> to vector<240x128xbf16>
    %c0_33 = arith.constant 0 : index
    %c896 = arith.constant 896 : index
    %62 = vector.load %arg10[%c0_33, %c896] : memref<256x1152xbf16, #tpu.memory_space<vmem>>, vector<240x128xbf16>
    tpu.vector_store %arg10[%c0_33, %c896], %61 {strides = array<i32>} : memref<256x1152xbf16, #tpu.memory_space<vmem>>, vector<240x128xbf16>,
    %c240_34 = arith.constant 240 : index
    %c896_35 = arith.constant 896 : index
    %63 = vector.load %arg10[%c240_34, %c896_35] : memref<256x1152xbf16, #tpu.memory_space<vmem>>, vector<16x128xbf16>
    tpu.vector_store %arg10[%c240_34, %c896_35], %45 {strides = array<i32>} : memref<256x1152xbf16, #tpu.memory_space<vmem>>, vector<16x128xbf16>,
    %64 = vector.extract_strided_slice %44 {offsets = [16, 0], sizes = [240, 128], strides = [1, 1]} : vector<256x128xbf16> to vector<240x128xbf16>
    %c0_36 = arith.constant 0 : index
    %c1024 = arith.constant 1024 : index
    %65 = vector.load %arg10[%c0_36, %c1024] : memref<256x1152xbf16, #tpu.memory_space<vmem>>, vector<240x128xbf16>
    tpu.vector_store %arg10[%c0_36, %c1024], %64 {strides = array<i32>} : memref<256x1152xbf16, #tpu.memory_space<vmem>>, vector<240x128xbf16>,
    %c240_37 = arith.constant 240 : index
    %c1024_38 = arith.constant 1024 : index
    %66 = vector.load %arg10[%c240_37, %c1024_38] : memref<256x1152xbf16, #tpu.memory_space<vmem>>, vector<16x128xbf16>
    tpu.vector_store %arg10[%c240_37, %c1024_38], %45 {strides = array<i32>} : memref<256x1152xbf16, #tpu.memory_space<vmem>>, vector<16x128xbf16>,
    %c0_39 = arith.constant 0 : index
    %c0_40 = arith.constant 0 : index
    %67 = vector.load %arg10[%c0_39, %c0_40] : memref<256x1152xbf16, #tpu.memory_space<vmem>>, vector<256x1152xbf16>
    %c0_41 = arith.constant 0 : index
    %c0_42 = arith.constant 0 : index
    %68 = vector.load %arg4[%c0_41, %c0_42] : memref<1152x128xbf16, #tpu.memory_space<vmem>>, vector<1152x128xbf16>
    %cst_43 = arith.constant dense<0.000000e+00> : vector<256x128xf32>
    %69 = tpu.matmul %67, %68, %cst_43 {dimension_numbers = #tpu.dot_dimension_numbers<[1], [0], [0], [1], [0, 0, 1, 1], [], []>} : vector<256x1152xbf16>, vector<1152x128xbf16>, vector<256x128xf32> -> vector<256x128xf32>
    %c0_44 = arith.constant 0 : index
    %c0_45 = arith.constant 0 : index
    %70 = vector.load %arg5[%c0_44, %c0_45] : memref<1x128xf32, #tpu.memory_space<vmem>>, vector<1x128xf32>
    %71 = vector.broadcast %70 : vector<1x128xf32> to vector<256x128xf32>
    %72 = arith.addf %69, %71 : vector<256x128xf32>
    %cst_46 = arith.constant 0.000000e+00 : f32
    %73 = vector.broadcast %cst_46 : f32 to vector<256x128xf32>
    %74 = arith.maximumf %72, %73 : vector<256x128xf32>
    %75 = arith.truncf %74 : vector<256x128xf32> to vector<256x128xbf16>
    %c0_47 = arith.constant 0 : index
    %c0_48 = arith.constant 0 : index
    %76 = vector.load %arg6[%c0_47, %c0_48] : memref<128x128xbf16, #tpu.memory_space<vmem>>, vector<128x128xbf16>
    %cst_49 = arith.constant dense<0.000000e+00> : vector<256x128xf32>
    %77 = tpu.matmul %75, %76, %cst_49 {dimension_numbers = #tpu.dot_dimension_numbers<[1], [0], [0], [1], [0, 0, 1, 1], [], []>} : vector<256x128xbf16>, vector<128x128xbf16>, vector<256x128xf32> -> vector<256x128xf32>
    %c0_50 = arith.constant 0 : index
    %c0_51 = arith.constant 0 : index
    %78 = vector.load %arg7[%c0_50, %c0_51] : memref<1x128xf32, #tpu.memory_space<vmem>>, vector<1x128xf32>
    %79 = vector.broadcast %78 : vector<1x128xf32> to vector<256x128xf32>
    %80 = arith.addf %77, %79 : vector<256x128xf32>
    %c0_52 = arith.constant 0 : index
    %c0_53 = arith.constant 0 : index
    %c0_54 = arith.constant 0 : index
    %c0_55 = arith.constant 0 : index
    %81 = vector.load %arg1[%c0_52, %c0_53, %c0_54, %c0_55] : memref<1x16x16x128xbf16, #tpu.memory_space<vmem>>, vector<1x16x16x128xbf16>
    %82 = vector.shape_cast %81 : vector<1x16x16x128xbf16> to vector<16x16x128xbf16>
    %83 = vector.shape_cast %82 : vector<16x16x128xbf16> to vector<256x128xbf16>
    %84 = arith.extf %83 : vector<256x128xbf16> to vector<256x128xf32>
    %85 = arith.addf %80, %84 : vector<256x128xf32>
    %cst_56 = arith.constant 0.000000e+00 : f32
    %86 = vector.broadcast %cst_56 : f32 to vector<256x128xf32>
    %87 = arith.maximumf %85, %86 : vector<256x128xf32>
    %88 = vector.shape_cast %87 : vector<256x128xf32> to vector<1x16x16x128xf32>
    %c0_57 = arith.constant 0 : index
    %c0_58 = arith.constant 0 : index
    %c0_59 = arith.constant 0 : index
    %c0_60 = arith.constant 0 : index
    %89 = vector.load %arg8[%c0_57, %c0_58, %c0_59, %c0_60] : memref<1x16x16x128xf32, #tpu.memory_space<vmem>>, vector<1x16x16x128xf32>
    tpu.vector_store %arg8[%c0_57, %c0_58, %c0_59, %c0_60], %88 {strides = array<i32>} : memref<1x16x16x128xf32, #tpu.memory_space<vmem>>, vector<1x16x16x128xf32>,
    return
  }
  func.func @transform_0(%arg0: i32) -> (i32, i32, i32, i32) {
    %c0_i32 = arith.constant 0 : i32
    %c0_i32_0 = arith.constant 0 : i32
    %c0_i32_1 = arith.constant 0 : i32
    %c0_i32_2 = arith.constant 0 : i32
    return %arg0, %c0_i32, %c0_i32_0, %c0_i32_1 : i32, i32, i32, i32
  }
  func.func @transform_1(%arg0: i32) -> (i32, i32) {
    %c0_i32 = arith.constant 0 : i32
    %c0_i32_0 = arith.constant 0 : i32
    %c0_i32_1 = arith.constant 0 : i32
    return %c0_i32, %c0_i32_0 : i32, i32
  }
  func.func @transform_2(%arg0: i32) -> (i32, i32) {
    %c0_i32 = arith.constant 0 : i32
    %c0_i32_0 = arith.constant 0 : i32
    %c0_i32_1 = arith.constant 0 : i32
    return %c0_i32, %c0_i32_0 : i32, i32
  }
  func.func @transform_3(%arg0: i32) -> (i32, i32) {
    %c0_i32 = arith.constant 0 : i32
    %c0_i32_0 = arith.constant 0 : i32
    %c0_i32_1 = arith.constant 0 : i32
    return %c0_i32, %c0_i32_0 : i32, i32
  }
  func.func @transform_4(%arg0: i32) -> (i32, i32) {
    %c0_i32 = arith.constant 0 : i32
    %c0_i32_0 = arith.constant 0 : i32
    %c0_i32_1 = arith.constant 0 : i32
    return %c0_i32, %c0_i32_0 : i32, i32
  }
  func.func @transform_5(%arg0: i32) -> (i32, i32) {
    %c0_i32 = arith.constant 0 : i32
    %c0_i32_0 = arith.constant 0 : i32
    %c0_i32_1 = arith.constant 0 : i32
    return %c0_i32, %c0_i32_0 : i32, i32
  }
  func.func @transform_6(%arg0: i32) -> (i32, i32) {
    %c0_i32 = arith.constant 0 : i32
    %c0_i32_0 = arith.constant 0 : i32
    %c0_i32_1 = arith.constant 0 : i32
    return %c0_i32, %c0_i32_0 : i32, i32
  }
  func.func @transform_7(%arg0: i32) -> (i32, i32, i32, i32) {
    %c0_i32 = arith.constant 0 : i32
    %c0_i32_0 = arith.constant 0 : i32
    %c0_i32_1 = arith.constant 0 : i32
    %c0_i32_2 = arith.constant 0 : i32
    return %arg0, %c0_i32, %c0_i32_0, %c0_i32_1 : i32, i32, i32, i32
  }
}

</mosaic_0001>

<llo_original>
// kernel: tpu_custom_call.1
$region0: #{tpu_custom_call.1}
  #allocation0 [shape = 'u32[]', space=smem, size = 0x4, offset = 0x4, fixed_abs, tag = 'smem constant byte address 0x4 - core index']
  #allocation1 [shape = 'u32[72,128]{1,0:T(1,128)}', space=vmem, size = 0x9000, scoped, tag = 'internal scratch']
  #allocation2 [shape = 'f32[258,128]{1,0:T(8,128)}', space=vmem, size = 0x21000, scoped, tag = 'scratch operand']
  #allocation3 [shape = 'bf16[256,1152]{1,0:T(8,128)(2,1)}', space=vmem, size = 0x90000, scoped, tag = 'scratch operand']
  %s0 = inlined_call_operand.hbm [shape: bf16[2,16,16,128], index: 0, kind: input, shape index: {}]
  %s1 = inlined_call_operand.hbm [shape: bf16[128,128], index: 1, kind: input, shape index: {}]
  %s2 = inlined_call_operand.vmem [shape: f32[1,128], index: 2, kind: input, shape index: {}]
  %s3 = inlined_call_operand.hbm [shape: bf16[1152,128], index: 3, kind: input, shape index: {}]
  %s4 = inlined_call_operand.vmem [shape: f32[1,128], index: 4, kind: input, shape index: {}]
  %s5 = inlined_call_operand.hbm [shape: bf16[128,128], index: 5, kind: input, shape index: {}]
  %s6 = inlined_call_operand.vmem [shape: f32[1,128], index: 6, kind: input, shape index: {}]
  %s7 = inlined_call_operand.hbm [shape: f32[2,16,16,128], index: 7, kind: output, shape index: {}]
  %s8 = sld [smem:[#allocation0]]
  $region77: #{tpu_custom_call.1} parent=0
    _
  %s10 = ssub.s32 1, %s8
  %s11 = scalar_select 0, %s10, %s8
  $region1: #{tpu_custom_call.1} parent=0
    #allocation4 [shape = 'u8[131072]{0}', space=vmem, size = 0x20000, scoped, tag = 'input window, operand 0']
    #allocation5 [shape = 's32[2]{0}', space=sflag, size = 0x8, scoped, tag = 'scoped memory for tpu_custom_call.1']
    #allocation6 [shape = 's32[2]{0}', space=sflag, size = 0x8, scoped, tag = 'scoped memory for tpu_custom_call.1']
    #allocation7 [shape = 'u8[32768]{0}', space=vmem, size = 0x8000, scoped, tag = 'input window, operand 1, single buffered']
    #allocation8 [shape = 's32[1]{0}', space=sflag, size = 0x4, scoped, tag = 'scoped memory for tpu_custom_call.1']
    #allocation9 [shape = 'u8[294912]{0}', space=vmem, size = 0x48000, scoped, tag = 'input window, operand 3, single buffered']
    #allocation10 [shape = 'u8[32768]{0}', space=vmem, size = 0x8000, scoped, tag = 'input window, operand 5, single buffered']
    #allocation11 [shape = 's32[1]{0}', space=sflag, size = 0x4, scoped, tag = 'scoped memory for tpu_custom_call.1']
    #allocation12 [shape = 'u8[262144]{0}', space=vmem, size = 0x40000, scoped, tag = 'output window, operand 0']
    %12 = vsyncpa [#allocation5], 0
    %s13 = scalar_lea.sflag [#allocation5], 1
    %14 = vsyncpa %s13, 0
    %15 = vsyncpa [#allocation8], 0
    %16 = vsyncpa [#allocation11], 0
    %17 = vsyncpa [#allocation6], 0
    %s18 = scalar_lea.sflag [#allocation6], 1
    %19 = vsyncpa %s18, 0
    loop: start=0, step=1, limit=4
    $region2: #{tpu_custom_call.1} parent=1 // loop_pre_header
      _
    $region3: #{tpu_custom_call.1} parent=1 // loop_header
      %s21 = sphi 0, %s25
      %p22 = scmp.ge.s32.totalorder %s21, 4
      %s31 = sphi 0, %s33
      %s34 = sphi 0, %s31
      %s35 = sphi 0, %s34
      %s51 = sphi 0, %s35
      %s55 = sphi 0, %s55
      %s57 = sphi 0, %s55
      %s58 = sphi 0, %s57
      %s72 = sphi 0, %s58
      %s76 = sphi 0, %s76
      %s78 = sphi 0, %s76
      %s79 = sphi 0, %s78
      %s93 = sphi 0, %s79
      %s97 = sphi 0, %s97
      %s99 = sphi 0, %s97
      %s100 = sphi 0, %s99
      %s114 = sphi 0, %s100
      %s118 = sphi 0, %s118
      %s120 = sphi 0, %s118
      %s121 = sphi 0, %s120
      %s135 = sphi 0, %s121
      %s139 = sphi 0, %s139
      %s141 = sphi 0, %s139
      %s142 = sphi 0, %s141
      %s156 = sphi 0, %s142
      %s160 = sphi 0, %s160
      %s162 = sphi 0, %s160
      %s163 = sphi 0, %s162
      %s177 = sphi 0, %s163
      %s183 = sphi 0, %s185
      %s186 = sphi 0, %s183
      %s187 = sphi 0, %s186
      %s203 = sphi 0, %s187
    $region4: #{tpu_custom_call.1} parent=1 // loop_header_branch
      %24 = sbr.rel (%p22) target = $region8
    $region5: #{tpu_custom_call.1} parent=1 // loop_body
      %s26 = ssub.s32 %s21, 1
      %s27 = ssub.s32 %s21, 2
      %s28 = sadd.s32 %s21, 1
      %s29 = ssub.s32 %s21, %s28
      %p30 = scmp.eq.s32.totalorder %s29, 0
      %s32 = sadd.s32 %s31, 1
      %s33 = scalar_select %p30, %s31, %s32
      %p36 = pneg %p30
      %p37 = scmp.eq.s32.totalorder %s21, 1
      %p38 = por %p36, %p37
      %p39 = scmp.ne.s32.totalorder %s31, %s34
      %p40 = scmp.eq.s32.totalorder %s21, 0
      %p41 = por %p39, %p40
      %p42 = scmp.ne.s32.totalorder %s31, %s34
      %p43 = scmp.eq.s32.totalorder %s26, 1
      %p44 = por %p42, %p43
      %p45 = scmp.ne.s32.totalorder %s34, %s35
      %p46 = scmp.eq.s32.totalorder %s26, 0
      %p47 = por %p45, %p46
      %p48 = scmp.ne.s32.totalorder %s34, %s35
      %p49 = scmp.eq.s32.totalorder %s27, 1
      %p50 = por %p48, %p49
      %p52 = scmp.ne.s32.totalorder %s35, %s51
      %p53 = scmp.eq.s32.totalorder %s27, 0
      %p54 = por %p52, %p53
      %s56 = sadd.s32 %s55, 1
      %p59 = scmp.eq.s32.totalorder %s21, 1
      %p60 = scmp.ne.s32.totalorder %s55, %s57
      %p61 = scmp.eq.s32.totalorder %s21, 0
      %p62 = por %p60, %p61
      %p63 = scmp.ne.s32.totalorder %s55, %s57
      %p64 = scmp.eq.s32.totalorder %s26, 1
      %p65 = por %p63, %p64
      %p66 = scmp.ne.s32.totalorder %s57, %s58
      %p67 = scmp.eq.s32.totalorder %s26, 0
      %p68 = por %p66, %p67
      %p69 = scmp.ne.s32.totalorder %s57, %s58
      %p70 = scmp.eq.s32.totalorder %s27, 1
      %p71 = por %p69, %p70
      %p73 = scmp.ne.s32.totalorder %s58, %s72
      %p74 = scmp.eq.s32.totalorder %s27, 0
      %p75 = por %p73, %p74
      %s77 = sadd.s32 %s76, 1
      %p80 = scmp.eq.s32.totalorder %s21, 1
      %p81 = scmp.ne.s32.totalorder %s76, %s78
      %p82 = scmp.eq.s32.totalorder %s21, 0
      %p83 = por %p81, %p82
      %p84 = scmp.ne.s32.totalorder %s76, %s78
      %p85 = scmp.eq.s32.totalorder %s26, 1
      %p86 = por %p84, %p85
      %p87 = scmp.ne.s32.totalorder %s78, %s79
      %p88 = scmp.eq.s32.totalorder %s26, 0
      %p89 = por %p87, %p88
      %p90 = scmp.ne.s32.totalorder %s78, %s79
      %p91 = scmp.eq.s32.totalorder %s27, 1
      %p92 = por %p90, %p91
      %p94 = scmp.ne.s32.totalorder %s79, %s93
      %p95 = scmp.eq.s32.totalorder %s27, 0
      %p96 = por %p94, %p95
      %s98 = sadd.s32 %s97, 1
      %p101 = scmp.eq.s32.totalorder %s21, 1
      %p102 = scmp.ne.s32.totalorder %s97, %s99
      %p103 = scmp.eq.s32.totalorder %s21, 0
      %p104 = por %p102, %p103
      %p105 = scmp.ne.s32.totalorder %s97, %s99
      %p106 = scmp.eq.s32.totalorder %s26, 1
      %p107 = por %p105, %p106
      %p108 = scmp.ne.s32.totalorder %s99, %s100
      %p109 = scmp.eq.s32.totalorder %s26, 0
      %p110 = por %p108, %p109
      %p111 = scmp.ne.s32.totalorder %s99, %s100
      %p112 = scmp.eq.s32.totalorder %s27, 1
      %p113 = por %p111, %p112
      %p115 = scmp.ne.s32.totalorder %s100, %s114
      %p116 = scmp.eq.s32.totalorder %s27, 0
      %p117 = por %p115, %p116
      %s119 = sadd.s32 %s118, 1
      %p122 = scmp.eq.s32.totalorder %s21, 1
      %p123 = scmp.ne.s32.totalorder %s118, %s120
      %p124 = scmp.eq.s32.totalorder %s21, 0
      %p125 = por %p123, %p124
      %p126 = scmp.ne.s32.totalorder %s118, %s120
      %p127 = scmp.eq.s32.totalorder %s26, 1
      %p128 = por %p126, %p127
      %p129 = scmp.ne.s32.totalorder %s120, %s121
      %p130 = scmp.eq.s32.totalorder %s26, 0
      %p131 = por %p129, %p130
      %p132 = scmp.ne.s32.totalorder %s120, %s121
      %p133 = scmp.eq.s32.totalorder %s27, 1
      %p134 = por %p132, %p133
      %p136 = scmp.ne.s32.totalorder %s121, %s135
      %p137 = scmp.eq.s32.totalorder %s27, 0
      %p138 = por %p136, %p137
      %s140 = sadd.s32 %s139, 1
      %p143 = scmp.eq.s32.totalorder %s21, 1
      %p144 = scmp.ne.s32.totalorder %s139, %s141
      %p145 = scmp.eq.s32.totalorder %s21, 0
      %p146 = por %p144, %p145
      %p147 = scmp.ne.s32.totalorder %s139, %s141
      %p148 = scmp.eq.s32.totalorder %s26, 1
      %p149 = por %p147, %p148
      %p150 = scmp.ne.s32.totalorder %s141, %s142
      %p151 = scmp.eq.s32.totalorder %s26, 0
      %p152 = por %p150, %p151
      %p153 = scmp.ne.s32.totalorder %s141, %s142
      %p154 = scmp.eq.s32.totalorder %s27, 1
      %p155 = por %p153, %p154
      %p157 = scmp.ne.s32.totalorder %s142, %s156
      %p158 = scmp.eq.s32.totalorder %s27, 0
      %p159 = por %p157, %p158
      %s161 = sadd.s32 %s160, 1
      %p164 = scmp.eq.s32.totalorder %s21, 1
      %p165 = scmp.ne.s32.totalorder %s160, %s162
      %p166 = scmp.eq.s32.totalorder %s21, 0
      %p167 = por %p165, %p166
      %p168 = scmp.ne.s32.totalorder %s160, %s162
      %p169 = scmp.eq.s32.totalorder %s26, 1
      %p170 = por %p168, %p169
      %p171 = scmp.ne.s32.totalorder %s162, %s163
      %p172 = scmp.eq.s32.totalorder %s26, 0
      %p173 = por %p171, %p172
      %p174 = scmp.ne.s32.totalorder %s162, %s163
      %p175 = scmp.eq.s32.totalorder %s27, 1
      %p176 = por %p174, %p175
      %p178 = scmp.ne.s32.totalorder %s163, %s177
      %p179 = scmp.eq.s32.totalorder %s27, 0
      %p180 = por %p178, %p179
      %s181 = ssub.s32 %s21, %s28
      %p182 = scmp.eq.s32.totalorder %s181, 0
      %s184 = sadd.s32 %s183, 1
      %s185 = scalar_select %p182, %s183, %s184
      %p188 = pneg %p182
      %p189 = scmp.eq.s32.totalorder %s21, 1
      %p190 = por %p188, %p189
      %p191 = scmp.ne.s32.totalorder %s183, %s186
      %p192 = scmp.eq.s32.totalorder %s21, 0
      %p193 = por %p191, %p192
      %p194 = scmp.ne.s32.totalorder %s183, %s186
      %p195 = scmp.eq.s32.totalorder %s26, 1
      %p196 = por %p194, %p195
      %p197 = scmp.ne.s32.totalorder %s186, %s187
      %p198 = scmp.eq.s32.totalorder %s26, 0
      %p199 = por %p197, %p198
      %p200 = scmp.ne.s32.totalorder %s186, %s187
      %p201 = scmp.eq.s32.totalorder %s27, 1
      %p202 = por %p200, %p201
      %p204 = scmp.ne.s32.totalorder %s187, %s203
      %p205 = scmp.eq.s32.totalorder %s27, 0
      %p206 = por %p204, %p205
      %p207 = scmp.le.s32.totalorder 1, %s21
      %p208 = scmp.lt.s32.totalorder %s21, 3
      %p209 = pnand %p207, %p208
      %p210 = pneg %p209
      // Predicated region
      $region9: #{tpu_custom_call.1} parent=5 // pred_check
        _
      $region10: #{tpu_custom_call.1} parent=5 // pred_check_branch
        %212 = sbr.rel (%p209) target = $region12
      $region11: #{tpu_custom_call.1} parent=5 // pred_region
        %s213 = ssub.s32 %s21, 1
        // Predicated region
        $region13: #{tpu_custom_call.1} parent=11 // pred_check
          %p214 = pneg %p68
        $region14: #{tpu_custom_call.1} parent=11 // pred_check_branch
          %216 = sbr.rel (%p214) target = $region16
        $region15: #{tpu_custom_call.1} parent=11 // pred_region
          %218 = vsyncadd [#allocation8], 0
          %s219 = sshll.u32 %s1, 4
          %s220 = int_to_ptr.hbm [resolvable:$true] %s219
          %s221 = sshll.u32 [#allocation7], 4
          %s222 = int_to_ptr.vmem [resolvable:$true] %s221
          %227 = dma.hbm_to_vmem [thread:$0]  %s220, 1024, %s222, [#allocation8], 64, 64, 4
        $region16: #{tpu_custom_call.1} parent=11 // pred_fallthru
          _
        // Predicated region
        $region17: #{tpu_custom_call.1} parent=11 // pred_check
          %p228 = pneg %p89
        $region18: #{tpu_custom_call.1} parent=11 // pred_check_branch
          %230 = sbr.rel (%p228) target = $region20
        $region19: #{tpu_custom_call.1} parent=11 // pred_region
          _
        $region20: #{tpu_custom_call.1} parent=11 // pred_fallthru
          _
        // Predicated region
        $region21: #{tpu_custom_call.1} parent=11 // pred_check
          %p231 = pneg %p110
        $region22: #{tpu_custom_call.1} parent=11 // pred_check_branch
          %233 = sbr.rel (%p231) target = $region24
        $region23: #{tpu_custom_call.1} parent=11 // pred_region
          %235 = vsyncadd [#allocation8], 0
          %s236 = sshll.u32 %s3, 4
          %s237 = int_to_ptr.hbm [resolvable:$true] %s236
          %s238 = sshll.u32 [#allocation9], 4
          %s239 = int_to_ptr.vmem [resolvable:$true] %s238
          %244 = dma.hbm_to_vmem [thread:$0]  %s237, 9216, %s239, [#allocation8], 64, 64, 4
        $region24: #{tpu_custom_call.1} parent=11 // pred_fallthru
          _
        // Predicated region
        $region25: #{tpu_custom_call.1} parent=11 // pred_check
          %p245 = pneg %p131
        $region26: #{tpu_custom_call.1} parent=11 // pred_check_branch
          %247 = sbr.rel (%p245) target = $region28
        $region27: #{tpu_custom_call.1} parent=11 // pred_region
          _
        $region28: #{tpu_custom_call.1} parent=11 // pred_fallthru
          _
        // Predicated region
        $region29: #{tpu_custom_call.1} parent=11 // pred_check
          %p248 = pneg %p152
        $region30: #{tpu_custom_call.1} parent=11 // pred_check_branch
          %250 = sbr.rel (%p248) target = $region32
        $region31: #{tpu_custom_call.1} parent=11 // pred_region
          %252 = vsyncadd [#allocation11], 0
          %s253 = sshll.u32 %s5, 4
          %s254 = int_to_ptr.hbm [resolvable:$true] %s253
          %s255 = sshll.u32 [#allocation10], 4
          %s256 = int_to_ptr.vmem [resolvable:$true] %s255
          %261 = dma.hbm_to_vmem [thread:$0]  %s254, 1024, %s256, [#allocation11], 64, 64, 4
        $region32: #{tpu_custom_call.1} parent=11 // pred_fallthru
          _
        // Predicated region
        $region33: #{tpu_custom_call.1} parent=11 // pred_check
          %p262 = pneg %p173
        $region34: #{tpu_custom_call.1} parent=11 // pred_check_branch
          %264 = sbr.rel (%p262) target = $region36
        $region35: #{tpu_custom_call.1} parent=11 // pred_region
          _
        $region36: #{tpu_custom_call.1} parent=11 // pred_fallthru
          _
      $region12: #{tpu_custom_call.1} parent=5 // pred_fallthru
        _
      %p265 = scmp.lt.s32.totalorder %s21, 2
      // Predicated region
      $region37: #{tpu_custom_call.1} parent=5 // pred_check
        %p266 = pneg %p265
      $region38: #{tpu_custom_call.1} parent=5 // pred_check_branch
        %268 = sbr.rel (%p266) target = $region40
      $region39: #{tpu_custom_call.1} parent=5 // pred_region
        // Predicated region
        $region41: #{tpu_custom_call.1} parent=39 // pred_check
          %p269 = pneg %p41
        $region42: #{tpu_custom_call.1} parent=39 // pred_check_branch
          %271 = sbr.rel (%p269) target = $region44
        $region43: #{tpu_custom_call.1} parent=39 // pred_region
          %s272 = sand.u32 %s31, 1
          %s273 = scalar_lea.sflag [#allocation5], %s272
          %s274 = sand.u32 %s31, 1
          %s275 = smul.addr %s274, 128
          %s276 = scalar_lea.vmem [#allocation4], %s275
          %278 = vsyncadd %s273, 0
          %s279 = smul.addr %s21, 32
          %s280 = smul.addr %s279, 4
          %s281 = scalar_lea.hbm %s0, %s280
          %s282 = sshll.u32 %s281, 4
          %s283 = int_to_ptr.hbm [resolvable:$true] %s282
          %s284 = sshll.u32 %s276, 4
          %s285 = int_to_ptr.vmem [resolvable:$true] %s284
          %290 = dma.hbm_to_vmem [thread:$0]  %s283, 2048, %s285, %s273, 64, 64, 4
        $region44: #{tpu_custom_call.1} parent=39 // pred_fallthru
          _
      $region40: #{tpu_custom_call.1} parent=5 // pred_fallthru
        _
      %p291 = scmp.le.s32.totalorder 1, %s21
      %p292 = scmp.lt.s32.totalorder %s21, 3
      %p293 = pnand %p291, %p292
      %p294 = pneg %p293
      // Predicated region
      $region45: #{tpu_custom_call.1} parent=5 // pred_check
        _
      $region46: #{tpu_custom_call.1} parent=5 // pred_check_branch
        %296 = sbr.rel (%p293) target = $region48
      $region47: #{tpu_custom_call.1} parent=5 // pred_region
        %s297 = ssub.s32 %s21, 1
        %s298 = sand.u32 %s34, 1
        %s299 = scalar_lea.sflag [#allocation5], %s298
        %s300 = sand.u32 %s34, 1
        %s301 = smul.addr %s300, 128
        %s302 = scalar_lea.vmem [#allocation4], %s301
        // Predicated region
        $region49: #{tpu_custom_call.1} parent=47 // pred_check
          %p303 = pneg %p47
        $region50: #{tpu_custom_call.1} parent=47 // pred_check_branch
          %305 = sbr.rel (%p303) target = $region52
        $region51: #{tpu_custom_call.1} parent=47 // pred_region
          %307 = dma.done %s299, 2048
        $region52: #{tpu_custom_call.1} parent=47 // pred_fallthru
          _
        // Predicated region
        $region53: #{tpu_custom_call.1} parent=47 // pred_check
          %p308 = pneg %p68
        $region54: #{tpu_custom_call.1} parent=47 // pred_check_branch
          %310 = sbr.rel (%p308) target = $region56
        $region55: #{tpu_custom_call.1} parent=47 // pred_region
          %312 = dma.done [#allocation8], 1024
        $region56: #{tpu_custom_call.1} parent=47 // pred_fallthru
          _
        // Predicated region
        $region57: #{tpu_custom_call.1} parent=47 // pred_check
          %p313 = pneg %p110
        $region58: #{tpu_custom_call.1} parent=47 // pred_check_branch
          %315 = sbr.rel (%p313) target = $region60
        $region59: #{tpu_custom_call.1} parent=47 // pred_region
          %317 = dma.done [#allocation8], 9216
        $region60: #{tpu_custom_call.1} parent=47 // pred_fallthru
          _
        // Predicated region
        $region61: #{tpu_custom_call.1} parent=47 // pred_check
          %p318 = pneg %p152
        $region62: #{tpu_custom_call.1} parent=47 // pred_check_branch
          %320 = sbr.rel (%p318) target = $region64
        $region63: #{tpu_custom_call.1} parent=47 // pred_region
          %322 = dma.done [#allocation11], 1024
        $region64: #{tpu_custom_call.1} parent=47 // pred_fallthru
          _
        %s323 = sand.u32 %s34, 1
        %s324 = scalar_lea.sflag [#allocation5], %s323
        %s325 = sand.u32 %s34, 1
        %s326 = smul.addr %s325, 128
        %s327 = scalar_lea.vmem [#allocation4], %s326
        %p328 = pneg %p47
        %p329 = pneg %p44
        %p330 = pneg %p68
        %p331 = pneg %p65
        %p332 = pneg %p89
        %p333 = pneg %p86
        %p334 = pneg %p110
        %p335 = pneg %p107
        %p336 = pneg %p131
        %p337 = pneg %p128
        %p338 = pneg %p152
        %p339 = pneg %p149
        %p340 = pneg %p173
        %p341 = pneg %p170
        %p342 = pneg %p199
        %p343 = pneg %p196
        %s344 = sand.u32 %s186, 1
        %s345 = scalar_lea.sflag [#allocation6], %s344
        %s346 = sand.u32 %s186, 1
        %s347 = smul.addr %s346, 256
        %s348 = scalar_lea.vmem [#allocation12], %s347
        %v350 = vld [vmem:[%s302] sm:$0xf]
        %v351 = vld [vmem:[%s302 + $0x4] sm:$0xf]
        %v352 = vld [vmem:[%s302 + $0x8] sm:$0xf]
        %v353 = vld [vmem:[%s302 + $0xc] sm:$0xf]
        %v354 = vld [vmem:[%s302 + $0x10] sm:$0xf]
        %v355 = vld [vmem:[%s302 + $0x14] sm:$0xf]
        %v356 = vld [vmem:[%s302 + $0x18] sm:$0xf]
        %v357 = vld [vmem:[%s302 + $0x1c] sm:$0xf]
        %v358 = vld [vmem:[%s302 + $0x20] sm:$0xf]
        %v359 = vld [vmem:[%s302 + $0x24] sm:$0xf]
        %v360 = vld [vmem:[%s302 + $0x28] sm:$0xf]
        %v361 = vld [vmem:[%s302 + $0x2c] sm:$0xf]
        %v362 = vld [vmem:[%s302 + $0x30] sm:$0xf]
        %v363 = vld [vmem:[%s302 + $0x34] sm:$0xf]
        %v364 = vld [vmem:[%s302 + $0x38] sm:$0xf]
        %v365 = vld [vmem:[%s302 + $0x3c] sm:$0xf]
        %v366 = vld [vmem:[%s302 + $0x40] sm:$0xf]
        %v367 = vld [vmem:[%s302 + $0x44] sm:$0xf]
        %v368 = vld [vmem:[%s302 + $0x48] sm:$0xf]
        %v369 = vld [vmem:[%s302 + $0x4c] sm:$0xf]
        %v370 = vld [vmem:[%s302 + $0x50] sm:$0xf]
        %v371 = vld [vmem:[%s302 + $0x54] sm:$0xf]
        %v372 = vld [vmem:[%s302 + $0x58] sm:$0xf]
        %v373 = vld [vmem:[%s302 + $0x5c] sm:$0xf]
        %v374 = vld [vmem:[%s302 + $0x60] sm:$0xf]
        %v375 = vld [vmem:[%s302 + $0x64] sm:$0xf]
        %v376 = vld [vmem:[%s302 + $0x68] sm:$0xf]
        %v377 = vld [vmem:[%s302 + $0x6c] sm:$0xf]
        %v378 = vld [vmem:[%s302 + $0x70] sm:$0xf]
        %v379 = vld [vmem:[%s302 + $0x74] sm:$0xf]
        %v380 = vld [vmem:[%s302 + $0x78] sm:$0xf]
        %v381 = vld [vmem:[%s302 + $0x7c] sm:$0xf]
        %v382 = vld [vmem:[#allocation7] sm:$0xf]
        %v383 = vld [vmem:[#allocation7 + $0x4] sm:$0xf]
        %v384 = vld [vmem:[#allocation7 + $0x8] sm:$0xf]
        %v385 = vld [vmem:[#allocation7 + $0xc] sm:$0xf]
        %v386 = vld [vmem:[#allocation7 + $0x10] sm:$0xf]
        %v387 = vld [vmem:[#allocation7 + $0x14] sm:$0xf]
        %v388 = vld [vmem:[#allocation7 + $0x18] sm:$0xf]
        %v389 = vld [vmem:[#allocation7 + $0x1c] sm:$0xf]
        %v390 = vld [vmem:[#allocation7 + $0x20] sm:$0xf]
        %v391 = vld [vmem:[#allocation7 + $0x24] sm:$0xf]
        %v392 = vld [vmem:[#allocation7 + $0x28] sm:$0xf]
        %v393 = vld [vmem:[#allocation7 + $0x2c] sm:$0xf]
        %v394 = vld [vmem:[#allocation7 + $0x30] sm:$0xf]
        %v395 = vld [vmem:[#allocation7 + $0x34] sm:$0xf]
        %v396 = vld [vmem:[#allocation7 + $0x38] sm:$0xf]
        %v397 = vld [vmem:[#allocation7 + $0x3c] sm:$0xf]
        %v398 = vld [vmem:[%s2] sm:$0x1]
        %v400 = vperm.slane %v398, 0
        %v434 = vunpack.c.l.b16 %v350
        %v435 = vunpack.c.l.b16 %v351
        %v436 = vunpack.c.l.b16 %v352
        %v437 = vunpack.c.l.b16 %v353
        %v438 = vunpack.c.l.b16 %v354
        %v439 = vunpack.c.l.b16 %v355
        %v440 = vunpack.c.l.b16 %v356
        %v441 = vunpack.c.l.b16 %v357
        %v442 = vunpack.c.l.b16 %v358
        %v443 = vunpack.c.l.b16 %v359
        %v444 = vunpack.c.l.b16 %v360
        %v445 = vunpack.c.l.b16 %v361
        %v446 = vunpack.c.l.b16 %v362
        %v447 = vunpack.c.l.b16 %v363
        %v448 = vunpack.c.l.b16 %v364
        %v449 = vunpack.c.l.b16 %v365
        %v450 = vunpack.c.l.b16 %v366
        %v451 = vunpack.c.l.b16 %v367
        %v452 = vunpack.c.l.b16 %v368
        %v453 = vunpack.c.l.b16 %v369
        %v454 = vunpack.c.l.b16 %v370
        %v455 = vunpack.c.l.b16 %v371
        %v456 = vunpack.c.l.b16 %v372
        %v457 = vunpack.c.l.b16 %v373
        %v458 = vunpack.c.l.b16 %v374
        %v459 = vunpack.c.l.b16 %v375
        %v460 = vunpack.c.l.b16 %v376
        %v461 = vunpack.c.l.b16 %v377
        %v462 = vunpack.c.l.b16 %v378
        %v463 = vunpack.c.l.b16 %v379
        %v464 = vunpack.c.l.b16 %v380
        %v465 = vunpack.c.l.b16 %v381
        %v466 = vpack.c.b16 %v435, %v434
        %v467 = vpack.c.b16 %v437, %v436
        %v468 = vpack.c.b16 %v439, %v438
        %v469 = vpack.c.b16 %v441, %v440
        %v470 = vpack.c.b16 %v443, %v442
        %v471 = vpack.c.b16 %v445, %v444
        %v472 = vpack.c.b16 %v447, %v446
        %v473 = vpack.c.b16 %v449, %v448
        %v474 = vpack.c.b16 %v451, %v450
        %v475 = vpack.c.b16 %v453, %v452
        %v476 = vpack.c.b16 %v455, %v454
        %v477 = vpack.c.b16 %v457, %v456
        %v478 = vpack.c.b16 %v459, %v458
        %v479 = vpack.c.b16 %v461, %v460
        %v480 = vpack.c.b16 %v463, %v462
        %v481 = vpack.c.b16 %v465, %v464
        %v514 = vunpack.c.l.b16 %v382
        %v515 = vunpack.c.l.b16 %v383
        %v516 = vunpack.c.l.b16 %v384
        %v517 = vunpack.c.l.b16 %v385
        %v518 = vunpack.c.l.b16 %v386
        %v519 = vunpack.c.l.b16 %v387
        %v520 = vunpack.c.l.b16 %v388
        %v521 = vunpack.c.l.b16 %v389
        %v522 = vunpack.c.l.b16 %v390
        %v523 = vunpack.c.l.b16 %v391
        %v524 = vunpack.c.l.b16 %v392
        %v525 = vunpack.c.l.b16 %v393
        %v526 = vunpack.c.l.b16 %v394
        %v527 = vunpack.c.l.b16 %v395
        %v528 = vunpack.c.l.b16 %v396
        %v529 = vunpack.c.l.b16 %v397
        %v530 = vpack.c.b16 %v515, %v514
        %v531 = vpack.c.b16 %v517, %v516
        %v532 = vpack.c.b16 %v519, %v518
        %v533 = vpack.c.b16 %v521, %v520
        %v534 = vpack.c.b16 %v523, %v522
        %v535 = vpack.c.b16 %v525, %v524
        %v536 = vpack.c.b16 %v527, %v526
        %v537 = vpack.c.b16 %v529, %v528
        %546 = vmatpush.bf16.msra.mxu0 %v537
        %547 = vmatpush.bf16.msra.mxu0 %v536
        %548 = vmatpush.bf16.msra.mxu0 %v535
        %549 = vmatpush.bf16.msra.mxu0 %v534
        %550 = vmatpush.bf16.msra.mxu0 %v533
        %551 = vmatpush.bf16.msra.mxu0 %v532
        %552 = vmatpush.bf16.msra.mxu0 %v531
        %553 = vmatpush.bf16.msra.mxu0 %v530
        %554 = vmatmul.bf16.gmra.mxu0 %v466
        %v555 = vpop.f32.mrf.mxu0
        %v556 = vadd.f32 %v400, %v555
        %v557 = vpop.f32.mrf.mxu0
        %v558 = vadd.f32 %v400, %v557
        %559 = vmatmul.bf16.gmra.mxu0 %v467
        %v560 = vpop.f32.mrf.mxu0
        %v561 = vadd.f32 %v400, %v560
        %v562 = vpop.f32.mrf.mxu0
        %v563 = vadd.f32 %v400, %v562
        %564 = vmatmul.bf16.gmra.mxu0 %v468
        %v565 = vpop.f32.mrf.mxu0
        %v566 = vadd.f32 %v400, %v565
        %v567 = vpop.f32.mrf.mxu0
        %v568 = vadd.f32 %v400, %v567
        %569 = vmatmul.bf16.gmra.mxu0 %v469
        %v570 = vpop.f32.mrf.mxu0
        %v571 = vadd.f32 %v400, %v570
        %v572 = vpop.f32.mrf.mxu0
        %v573 = vadd.f32 %v400, %v572
        %574 = vmatmul.bf16.gmra.mxu0 %v470
        %v575 = vpop.f32.mrf.mxu0
        %v576 = vadd.f32 %v400, %v575
        %v577 = vpop.f32.mrf.mxu0
        %v578 = vadd.f32 %v400, %v577
        %579 = vmatmul.bf16.gmra.mxu0 %v471
        %v580 = vpop.f32.mrf.mxu0
        %v581 = vadd.f32 %v400, %v580
        %v582 = vpop.f32.mrf.mxu0
        %v583 = vadd.f32 %v400, %v582
        %584 = vmatmul.bf16.gmra.mxu0 %v472
        %v585 = vpop.f32.mrf.mxu0
        %v586 = vadd.f32 %v400, %v585
        %v587 = vpop.f32.mrf.mxu0
        %v588 = vadd.f32 %v400, %v587
        %589 = vmatmul.bf16.gmra.mxu0 %v473
        %v590 = vpop.f32.mrf.mxu0
        %v591 = vadd.f32 %v400, %v590
        %v592 = vpop.f32.mrf.mxu0
        %v593 = vadd.f32 %v400, %v592
        %594 = vmatmul.bf16.gmra.mxu0 %v474
        %v595 = vpop.f32.mrf.mxu0
        %v596 = vadd.f32 %v400, %v595
        %v597 = vpop.f32.mrf.mxu0
        %v598 = vadd.f32 %v400, %v597
        %599 = vmatmul.bf16.gmra.mxu0 %v475
        %v600 = vpop.f32.mrf.mxu0
        %v601 = vadd.f32 %v400, %v600
        %v602 = vpop.f32.mrf.mxu0
        %v603 = vadd.f32 %v400, %v602
        %604 = vmatmul.bf16.gmra.mxu0 %v476
        %v605 = vpop.f32.mrf.mxu0
        %v606 = vadd.f32 %v400, %v605
        %v607 = vpop.f32.mrf.mxu0
        %v608 = vadd.f32 %v400, %v607
        %609 = vmatmul.bf16.gmra.mxu0 %v477
        %v610 = vpop.f32.mrf.mxu0
        %v611 = vadd.f32 %v400, %v610
        %v612 = vpop.f32.mrf.mxu0
        %v613 = vadd.f32 %v400, %v612
        %614 = vmatmul.bf16.gmra.mxu0 %v478
        %v615 = vpop.f32.mrf.mxu0
        %v616 = vadd.f32 %v400, %v615
        %v617 = vpop.f32.mrf.mxu0
        %v618 = vadd.f32 %v400, %v617
        %619 = vmatmul.bf16.gmra.mxu0 %v479
        %v620 = vpop.f32.mrf.mxu0
        %v621 = vadd.f32 %v400, %v620
        %v622 = vpop.f32.mrf.mxu0
        %v623 = vadd.f32 %v400, %v622
        %624 = vmatmul.bf16.gmra.mxu0 %v480
        %v625 = vpop.f32.mrf.mxu0
        %v626 = vadd.f32 %v400, %v625
        %v627 = vpop.f32.mrf.mxu0
        %v628 = vadd.f32 %v400, %v627
        %629 = vmatmul.bf16.gmra.mxu0 %v481
        %v630 = vpop.f32.mrf.mxu0
        %v631 = vadd.f32 %v400, %v630
        %v632 = vpop.f32.mrf.mxu0
        %v633 = vadd.f32 %v400, %v632
        %634 = vdwg.mxu0
        %v635 = vmax.f32 %v556, 0.0
        %v636 = vmax.f32 %v558, 0.0
        %v637 = vmax.f32 %v561, 0.0
        %v638 = vmax.f32 %v563, 0.0
        %v639 = vmax.f32 %v566, 0.0
        %v640 = vmax.f32 %v568, 0.0
        %v641 = vmax.f32 %v571, 0.0
        %v642 = vmax.f32 %v573, 0.0
        %v643 = vmax.f32 %v576, 0.0
        %v644 = vmax.f32 %v578, 0.0
        %v645 = vmax.f32 %v581, 0.0
        %v646 = vmax.f32 %v583, 0.0
        %v647 = vmax.f32 %v586, 0.0
        %v648 = vmax.f32 %v588, 0.0
        %v649 = vmax.f32 %v591, 0.0
        %v650 = vmax.f32 %v593, 0.0
        %v651 = vmax.f32 %v596, 0.0
        %v652 = vmax.f32 %v598, 0.0
        %v653 = vmax.f32 %v601, 0.0
        %v654 = vmax.f32 %v603, 0.0
        %v655 = vmax.f32 %v606, 0.0
        %v656 = vmax.f32 %v608, 0.0
        %v657 = vmax.f32 %v611, 0.0
        %v658 = vmax.f32 %v613, 0.0
        %v659 = vmax.f32 %v616, 0.0
        %v660 = vmax.f32 %v618, 0.0
        %v661 = vmax.f32 %v621, 0.0
        %v662 = vmax.f32 %v623, 0.0
        %v663 = vmax.f32 %v626, 0.0
        %v664 = vmax.f32 %v628, 0.0
        %v665 = vmax.f32 %v631, 0.0
        %v666 = vmax.f32 %v633, 0.0
        %667 = vst [vmem:[#allocation2 + $0x1] sm:$0xff] %v635
        %668 = vst [vmem:[#allocation2 + $0x9] sm:$0xff] %v636
        %669 = vst [vmem:[#allocation2 + $0x11] sm:$0xff] %v637
        %670 = vst [vmem:[#allocation2 + $0x19] sm:$0xff] %v638
        %671 = vst [vmem:[#allocation2 + $0x21] sm:$0xff] %v639
        %672 = vst [vmem:[#allocation2 + $0x29] sm:$0xff] %v640
        %673 = vst [vmem:[#allocation2 + $0x31] sm:$0xff] %v641
        %674 = vst [vmem:[#allocation2 + $0x39] sm:$0xff] %v642
        %675 = vst [vmem:[#allocation2 + $0x41] sm:$0xff] %v643
        %676 = vst [vmem:[#allocation2 + $0x49] sm:$0xff] %v644
        %677 = vst [vmem:[#allocation2 + $0x51] sm:$0xff] %v645
        %678 = vst [vmem:[#allocation2 + $0x59] sm:$0xff] %v646
        %679 = vst [vmem:[#allocation2 + $0x61] sm:$0xff] %v647
        %680 = vst [vmem:[#allocation2 + $0x69] sm:$0xff] %v648
        %681 = vst [vmem:[#allocation2 + $0x71] sm:$0xff] %v649
        %682 = vst [vmem:[#allocation2 + $0x79] sm:$0xff] %v650
        %683 = vst [vmem:[#allocation2 + $0x81] sm:$0xff] %v651
        %684 = vst [vmem:[#allocation2 + $0x89] sm:$0xff] %v652
        %685 = vst [vmem:[#allocation2 + $0x91] sm:$0xff] %v653
        %686 = vst [vmem:[#allocation2 + $0x99] sm:$0xff] %v654
        %687 = vst [vmem:[#allocation2 + $0xa1] sm:$0xff] %v655
        %688 = vst [vmem:[#allocation2 + $0xa9] sm:$0xff] %v656
        %689 = vst [vmem:[#allocation2 + $0xb1] sm:$0xff] %v657
        %690 = vst [vmem:[#allocation2 + $0xb9] sm:$0xff] %v658
        %691 = vst [vmem:[#allocation2 + $0xc1] sm:$0xff] %v659
        %692 = vst [vmem:[#allocation2 + $0xc9] sm:$0xff] %v660
        %693 = vst [vmem:[#allocation2 + $0xd1] sm:$0xff] %v661
        %694 = vst [vmem:[#allocation2 + $0xd9] sm:$0xff] %v662
        %695 = vst [vmem:[#allocation2 + $0xe1] sm:$0xff] %v663
        %696 = vst [vmem:[#allocation2 + $0xe9] sm:$0xff] %v664
        %697 = vst [vmem:[#allocation2 + $0xf1] sm:$0xff] %v665
        %698 = vst [vmem:[#allocation2 + $0xf9] sm:$0xff] %v666
        %v699 = vlaneseq
        %v700 = vshrl.u32 %v699, 7
        %v701 = vadd.s32 %v700, 8
        %v702 = vadd.s32 %v700, 16
        %v703 = vadd.s32 %v700, 24
        %v704 = vadd.s32 %v700, 32
        %v705 = vadd.s32 %v700, 40
        %v706 = vadd.s32 %v700, 48
        %v707 = vadd.s32 %v700, 56
        %v708 = vadd.s32 %v700, 64
        %v709 = vadd.s32 %v700, 72
        %v710 = vadd.s32 %v700, 80
        %v711 = vadd.s32 %v700, 88
        %v712 = vadd.s32 %v700, 96
        %v713 = vadd.s32 %v700, 104
        %v714 = vadd.s32 %v700, 112
        %v715 = vadd.s32 %v700, 120
        %v716 = vadd.s32 %v700, 128
        %v717 = vadd.s32 %v700, 136
        %v718 = vadd.s32 %v700, 144
        %v719 = vadd.s32 %v700, 152
        %v720 = vadd.s32 %v700, 160
        %v721 = vadd.s32 %v700, 168
        %v722 = vadd.s32 %v700, 176
        %v723 = vadd.s32 %v700, 184
        %v724 = vadd.s32 %v700, 192
        %v725 = vadd.s32 %v700, 200
        %v726 = vadd.s32 %v700, 208
        %v727 = vadd.s32 %v700, 216
        %v728 = vadd.s32 %v700, 224
        %v729 = vadd.s32 %v700, 232
        %v730 = vadd.s32 %v700, 240
        %v731 = vadd.s32 %v700, 248
        %vm732 = vcmp.lt.s32.totalorder %v700, 0
        %v733 = vsub.s32 0, %v700
        %v734 = vsel %vm732, %v733, %v700
        %v735 = vshrl.u32 %v734, 4
        %v736 = vand.u32 %v734, 15
        %v737 = vsub.s32 0, %v736
        %v738 = vsel %vm732, %v737, %v736
        %vm739 = vcmp.lt.s32.totalorder %v701, 0
        %v740 = vsub.s32 0, %v701
        %v741 = vsel %vm739, %v740, %v701
        %v742 = vshrl.u32 %v741, 4
        %v743 = vand.u32 %v741, 15
        %v744 = vsub.s32 0, %v743
        %v745 = vsel %vm739, %v744, %v743
        %vm746 = vcmp.lt.s32.totalorder %v702, 0
        %v747 = vsub.s32 0, %v702
        %v748 = vsel %vm746, %v747, %v702
        %v749 = vshrl.u32 %v748, 4
        %v750 = vand.u32 %v748, 15
        %v751 = vsub.s32 0, %v750
        %v752 = vsel %vm746, %v751, %v750
        %vm753 = vcmp.lt.s32.totalorder %v703, 0
        %v754 = vsub.s32 0, %v703
        %v755 = vsel %vm753, %v754, %v703
        %v756 = vshrl.u32 %v755, 4
        %v757 = vand.u32 %v755, 15
        %v758 = vsub.s32 0, %v757
        %v759 = vsel %vm753, %v758, %v757
        %vm760 = vcmp.lt.s32.totalorder %v704, 0
        %v761 = vsub.s32 0, %v704
        %v762 = vsel %vm760, %v761, %v704
        %v763 = vshrl.u32 %v762, 4
        %v764 = vand.u32 %v762, 15
        %v765 = vsub.s32 0, %v764
        %v766 = vsel %vm760, %v765, %v764
        %vm767 = vcmp.lt.s32.totalorder %v705, 0
        %v768 = vsub.s32 0, %v705
        %v769 = vsel %vm767, %v768, %v705
        %v770 = vshrl.u32 %v769, 4
        %v771 = vand.u32 %v769, 15
        %v772 = vsub.s32 0, %v771
        %v773 = vsel %vm767, %v772, %v771
        %vm774 = vcmp.lt.s32.totalorder %v706, 0
        %v775 = vsub.s32 0, %v706
        %v776 = vsel %vm774, %v775, %v706
        %v777 = vshrl.u32 %v776, 4
        %v778 = vand.u32 %v776, 15
        %v779 = vsub.s32 0, %v778
        %v780 = vsel %vm774, %v779, %v778
        %vm781 = vcmp.lt.s32.totalorder %v707, 0
        %v782 = vsub.s32 0, %v707
        %v783 = vsel %vm781, %v782, %v707
        %v784 = vshrl.u32 %v783, 4
        %v785 = vand.u32 %v783, 15
        %v786 = vsub.s32 0, %v785
        %v787 = vsel %vm781, %v786, %v785
        %vm788 = vcmp.lt.s32.totalorder %v708, 0
        %v789 = vsub.s32 0, %v708
        %v790 = vsel %vm788, %v789, %v708
        %v791 = vshrl.u32 %v790, 4
        %v792 = vand.u32 %v790, 15
        %v793 = vsub.s32 0, %v792
        %v794 = vsel %vm788, %v793, %v792
        %vm795 = vcmp.lt.s32.totalorder %v709, 0
        %v796 = vsub.s32 0, %v709
        %v797 = vsel %vm795, %v796, %v709
        %v798 = vshrl.u32 %v797, 4
        %v799 = vand.u32 %v797, 15
        %v800 = vsub.s32 0, %v799
        %v801 = vsel %vm795, %v800, %v799
        %vm802 = vcmp.lt.s32.totalorder %v710, 0
        %v803 = vsub.s32 0, %v710
        %v804 = vsel %vm802, %v803, %v710
        %v805 = vshrl.u32 %v804, 4
        %v806 = vand.u32 %v804, 15
        %v807 = vsub.s32 0, %v806
        %v808 = vsel %vm802, %v807, %v806
        %vm809 = vcmp.lt.s32.totalorder %v711, 0
        %v810 = vsub.s32 0, %v711
        %v811 = vsel %vm809, %v810, %v711
        %v812 = vshrl.u32 %v811, 4
        %v813 = vand.u32 %v811, 15
        %v814 = vsub.s32 0, %v813
        %v815 = vsel %vm809, %v814, %v813
        %vm816 = vcmp.lt.s32.totalorder %v712, 0
        %v817 = vsub.s32 0, %v712
        %v818 = vsel %vm816, %v817, %v712
        %v819 = vshrl.u32 %v818, 4
        %v820 = vand.u32 %v818, 15
        %v821 = vsub.s32 0, %v820
        %v822 = vsel %vm816, %v821, %v820
        %vm823 = vcmp.lt.s32.totalorder %v713, 0
        %v824 = vsub.s32 0, %v713
        %v825 = vsel %vm823, %v824, %v713
        %v826 = vshrl.u32 %v825, 4
        %v827 = vand.u32 %v825, 15
        %v828 = vsub.s32 0, %v827
        %v829 = vsel %vm823, %v828, %v827
        %vm830 = vcmp.lt.s32.totalorder %v714, 0
        %v831 = vsub.s32 0, %v714
        %v832 = vsel %vm830, %v831, %v714
        %v833 = vshrl.u32 %v832, 4
        %v834 = vand.u32 %v832, 15
        %v835 = vsub.s32 0, %v834
        %v836 = vsel %vm830, %v835, %v834
        %vm837 = vcmp.lt.s32.totalorder %v715, 0
        %v838 = vsub.s32 0, %v715
        %v839 = vsel %vm837, %v838, %v715
        %v840 = vshrl.u32 %v839, 4
        %v841 = vand.u32 %v839, 15
        %v842 = vsub.s32 0, %v841
        %v843 = vsel %vm837, %v842, %v841
        %vm844 = vcmp.lt.s32.totalorder %v716, 0
        %v845 = vsub.s32 0, %v716
        %v846 = vsel %vm844, %v845, %v716
        %v847 = vshrl.u32 %v846, 4
        %v848 = vand.u32 %v846, 15
        %v849 = vsub.s32 0, %v848
        %v850 = vsel %vm844, %v849, %v848
        %vm851 = vcmp.lt.s32.totalorder %v717, 0
        %v852 = vsub.s32 0, %v717
        %v853 = vsel %vm851, %v852, %v717
        %v854 = vshrl.u32 %v853, 4
        %v855 = vand.u32 %v853, 15
        %v856 = vsub.s32 0, %v855
        %v857 = vsel %vm851, %v856, %v855
        %vm858 = vcmp.lt.s32.totalorder %v718, 0
        %v859 = vsub.s32 0, %v718
        %v860 = vsel %vm858, %v859, %v718
        %v861 = vshrl.u32 %v860, 4
        %v862 = vand.u32 %v860, 15
        %v863 = vsub.s32 0, %v862
        %v864 = vsel %vm858, %v863, %v862
        %vm865 = vcmp.lt.s32.totalorder %v719, 0
        %v866 = vsub.s32 0, %v719
        %v867 = vsel %vm865, %v866, %v719
        %v868 = vshrl.u32 %v867, 4
        %v869 = vand.u32 %v867, 15
        %v870 = vsub.s32 0, %v869
        %v871 = vsel %vm865, %v870, %v869
        %vm872 = vcmp.lt.s32.totalorder %v720, 0
        %v873 = vsub.s32 0, %v720
        %v874 = vsel %vm872, %v873, %v720
        %v875 = vshrl.u32 %v874, 4
        %v876 = vand.u32 %v874, 15
        %v877 = vsub.s32 0, %v876
        %v878 = vsel %vm872, %v877, %v876
        %vm879 = vcmp.lt.s32.totalorder %v721, 0
        %v880 = vsub.s32 0, %v721
        %v881 = vsel %vm879, %v880, %v721
        %v882 = vshrl.u32 %v881, 4
        %v883 = vand.u32 %v881, 15
        %v884 = vsub.s32 0, %v883
        %v885 = vsel %vm879, %v884, %v883
        %vm886 = vcmp.lt.s32.totalorder %v722, 0
        %v887 = vsub.s32 0, %v722
        %v888 = vsel %vm886, %v887, %v722
        %v889 = vshrl.u32 %v888, 4
        %v890 = vand.u32 %v888, 15
        %v891 = vsub.s32 0, %v890
        %v892 = vsel %vm886, %v891, %v890
        %vm893 = vcmp.lt.s32.totalorder %v723, 0
        %v894 = vsub.s32 0, %v723
        %v895 = vsel %vm893, %v894, %v723
        %v896 = vshrl.u32 %v895, 4
        %v897 = vand.u32 %v895, 15
        %v898 = vsub.s32 0, %v897
        %v899 = vsel %vm893, %v898, %v897
        %vm900 = vcmp.lt.s32.totalorder %v724, 0
        %v901 = vsub.s32 0, %v724
        %v902 = vsel %vm900, %v901, %v724
        %v903 = vshrl.u32 %v902, 4
        %v904 = vand.u32 %v902, 15
        %v905 = vsub.s32 0, %v904
        %v906 = vsel %vm900, %v905, %v904
        %vm907 = vcmp.lt.s32.totalorder %v725, 0
        %v908 = vsub.s32 0, %v725
        %v909 = vsel %vm907, %v908, %v725
        %v910 = vshrl.u32 %v909, 4
        %v911 = vand.u32 %v909, 15
        %v912 = vsub.s32 0, %v911
        %v913 = vsel %vm907, %v912, %v911
        %vm914 = vcmp.lt.s32.totalorder %v726, 0
        %v915 = vsub.s32 0, %v726
        %v916 = vsel %vm914, %v915, %v726
        %v917 = vshrl.u32 %v916, 4
        %v918 = vand.u32 %v916, 15
        %v919 = vsub.s32 0, %v918
        %v920 = vsel %vm914, %v919, %v918
        %vm921 = vcmp.lt.s32.totalorder %v727, 0
        %v922 = vsub.s32 0, %v727
        %v923 = vsel %vm921, %v922, %v727
        %v924 = vshrl.u32 %v923, 4
        %v925 = vand.u32 %v923, 15
        %v926 = vsub.s32 0, %v925
        %v927 = vsel %vm921, %v926, %v925
        %vm928 = vcmp.lt.s32.totalorder %v728, 0
        %v929 = vsub.s32 0, %v728
        %v930 = vsel %vm928, %v929, %v728
        %v931 = vshrl.u32 %v930, 4
        %v932 = vand.u32 %v930, 15
        %v933 = vsub.s32 0, %v932
        %v934 = vsel %vm928, %v933, %v932
        %vm935 = vcmp.lt.s32.totalorder %v729, 0
        %v936 = vsub.s32 0, %v729
        %v937 = vsel %vm935, %v936, %v729
        %v938 = vshrl.u32 %v937, 4
        %v939 = vand.u32 %v937, 15
        %v940 = vsub.s32 0, %v939
        %v941 = vsel %vm935, %v940, %v939
        %vm942 = vcmp.lt.s32.totalorder %v730, 0
        %v943 = vsub.s32 0, %v730
        %v944 = vsel %vm942, %v943, %v730
        %v945 = vshrl.u32 %v944, 4
        %v946 = vand.u32 %v944, 15
        %v947 = vsub.s32 0, %v946
        %v948 = vsel %vm942, %v947, %v946
        %vm949 = vcmp.lt.s32.totalorder %v731, 0
        %v950 = vsub.s32 0, %v731
        %v951 = vsel %vm949, %v950, %v731
        %v952 = vshrl.u32 %v951, 4
        %v953 = vand.u32 %v951, 15
        %v954 = vsub.s32 0, %v953
        %v955 = vsel %vm949, %v954, %v953
        %vm956 = vcmp.ne.s32.totalorder %v738, 0
        %vm957 = vcmp.ne.s32.totalorder %v745, 0
        %vm958 = vcmp.ne.s32.totalorder %v752, 0
        %vm959 = vcmp.ne.s32.totalorder %v759, 0
        %vm960 = vcmp.ne.s32.totalorder %v766, 0
        %vm961 = vcmp.ne.s32.totalorder %v773, 0
        %vm962 = vcmp.ne.s32.totalorder %v780, 0
        %vm963 = vcmp.ne.s32.totalorder %v787, 0
        %vm964 = vcmp.ne.s32.totalorder %v794, 0
        %vm965 = vcmp.ne.s32.totalorder %v801, 0
        %vm966 = vcmp.ne.s32.totalorder %v808, 0
        %vm967 = vcmp.ne.s32.totalorder %v815, 0
        %vm968 = vcmp.ne.s32.totalorder %v822, 0
        %vm969 = vcmp.ne.s32.totalorder %v829, 0
        %vm970 = vcmp.ne.s32.totalorder %v836, 0
        %vm971 = vcmp.ne.s32.totalorder %v843, 0
        %vm972 = vcmp.ne.s32.totalorder %v850, 0
        %vm973 = vcmp.ne.s32.totalorder %v857, 0
        %vm974 = vcmp.ne.s32.totalorder %v864, 0
        %vm975 = vcmp.ne.s32.totalorder %v871, 0
        %vm976 = vcmp.ne.s32.totalorder %v878, 0
        %vm977 = vcmp.ne.s32.totalorder %v885, 0
        %vm978 = vcmp.ne.s32.totalorder %v892, 0
        %vm979 = vcmp.ne.s32.totalorder %v899, 0
        %vm980 = vcmp.ne.s32.totalorder %v906, 0
        %vm981 = vcmp.ne.s32.totalorder %v913, 0
        %vm982 = vcmp.ne.s32.totalorder %v920, 0
        %vm983 = vcmp.ne.s32.totalorder %v927, 0
        %vm984 = vcmp.ne.s32.totalorder %v934, 0
        %vm985 = vcmp.ne.s32.totalorder %v941, 0
        %vm986 = vcmp.ne.s32.totalorder %v948, 0
        %vm987 = vcmp.ne.s32.totalorder %v955, 0
        %vm988 = vcmp.lt.s32.totalorder %v738, 0
        %vm989 = vcmp.lt.s32.totalorder %v745, 0
        %vm990 = vcmp.lt.s32.totalorder %v752, 0
        %vm991 = vcmp.lt.s32.totalorder %v759, 0
        %vm992 = vcmp.lt.s32.totalorder %v766, 0
        %vm993 = vcmp.lt.s32.totalorder %v773, 0
        %vm994 = vcmp.lt.s32.totalorder %v780, 0
        %vm995 = vcmp.lt.s32.totalorder %v787, 0
        %vm996 = vcmp.lt.s32.totalorder %v794, 0
        %vm997 = vcmp.lt.s32.totalorder %v801, 0
        %vm998 = vcmp.lt.s32.totalorder %v808, 0
        %vm999 = vcmp.lt.s32.totalorder %v815, 0
        %vm1000 = vcmp.lt.s32.totalorder %v822, 0
        %vm1001 = vcmp.lt.s32.totalorder %v829, 0
        %vm1002 = vcmp.lt.s32.totalorder %v836, 0
        %vm1003 = vcmp.lt.s32.totalorder %v843, 0
        %vm1004 = vcmp.lt.s32.totalorder %v850, 0
        %vm1005 = vcmp.lt.s32.totalorder %v857, 0
        %vm1006 = vcmp.lt.s32.totalorder %v864, 0
        %vm1007 = vcmp.lt.s32.totalorder %v871, 0
        %vm1008 = vcmp.lt.s32.totalorder %v878, 0
        %vm1009 = vcmp.lt.s32.totalorder %v885, 0
        %vm1010 = vcmp.lt.s32.totalorder %v892, 0
        %vm1011 = vcmp.lt.s32.totalorder %v899, 0
        %vm1012 = vcmp.lt.s32.totalorder %v906, 0
        %vm1013 = vcmp.lt.s32.totalorder %v913, 0
        %vm1014 = vcmp.lt.s32.totalorder %v920, 0
        %vm1015 = vcmp.lt.s32.totalorder %v927, 0
        %vm1016 = vcmp.lt.s32.totalorder %v934, 0
        %vm1017 = vcmp.lt.s32.totalorder %v941, 0
        %vm1018 = vcmp.lt.s32.totalorder %v948, 0
        %vm1019 = vcmp.lt.s32.totalorder %v955, 0
        %vm1020 = vmand %vm988, %vm956
        %vm1021 = vmand %vm989, %vm957
        %vm1022 = vmand %vm990, %vm958
        %vm1023 = vmand %vm991, %vm959
        %vm1024 = vmand %vm992, %vm960
        %vm1025 = vmand %vm993, %vm961
        %vm1026 = vmand %vm994, %vm962
        %vm1027 = vmand %vm995, %vm963
        %vm1028 = vmand %vm996, %vm964
        %vm1029 = vmand %vm997, %vm965
        %vm1030 = vmand %vm998, %vm966
        %vm1031 = vmand %vm999, %vm967
        %vm1032 = vmand %vm1000, %vm968
        %vm1033 = vmand %vm1001, %vm969
        %vm1034 = vmand %vm1002, %vm970
        %vm1035 = vmand %vm1003, %vm971
        %vm1036 = vmand %vm1004, %vm972
        %vm1037 = vmand %vm1005, %vm973
        %vm1038 = vmand %vm1006, %vm974
        %vm1039 = vmand %vm1007, %vm975
        %vm1040 = vmand %vm1008, %vm976
        %vm1041 = vmand %vm1009, %vm977
        %vm1042 = vmand %vm1010, %vm978
        %vm1043 = vmand %vm1011, %vm979
        %vm1044 = vmand %vm1012, %vm980
        %vm1045 = vmand %vm1013, %vm981
        %vm1046 = vmand %vm1014, %vm982
        %vm1047 = vmand %vm1015, %vm983
        %vm1048 = vmand %vm1016, %vm984
        %vm1049 = vmand %vm1017, %vm985
        %vm1050 = vmand %vm1018, %vm986
        %vm1051 = vmand %vm1019, %vm987
        %v1052 = vadd.s32 %v738, 16
        %v1053 = vadd.s32 %v745, 16
        %v1054 = vadd.s32 %v752, 16
        %v1055 = vadd.s32 %v759, 16
        %v1056 = vadd.s32 %v766, 16
        %v1057 = vadd.s32 %v773, 16
        %v1058 = vadd.s32 %v780, 16
        %v1059 = vadd.s32 %v787, 16
        %v1060 = vadd.s32 %v794, 16
        %v1061 = vadd.s32 %v801, 16
        %v1062 = vadd.s32 %v808, 16
        %v1063 = vadd.s32 %v815, 16
        %v1064 = vadd.s32 %v822, 16
        %v1065 = vadd.s32 %v829, 16
        %v1066 = vadd.s32 %v836, 16
        %v1067 = vadd.s32 %v843, 16
        %v1068 = vadd.s32 %v850, 16
        %v1069 = vadd.s32 %v857, 16
        %v1070 = vadd.s32 %v864, 16
        %v1071 = vadd.s32 %v871, 16
        %v1072 = vadd.s32 %v878, 16
        %v1073 = vadd.s32 %v885, 16
        %v1074 = vadd.s32 %v892, 16
        %v1075 = vadd.s32 %v899, 16
        %v1076 = vadd.s32 %v906, 16
        %v1077 = vadd.s32 %v913, 16
        %v1078 = vadd.s32 %v920, 16
        %v1079 = vadd.s32 %v927, 16
        %v1080 = vadd.s32 %v934, 16
        %v1081 = vadd.s32 %v941, 16
        %v1082 = vadd.s32 %v948, 16
        %v1083 = vadd.s32 %v955, 16
        %v1084 = vsel %vm1020, %v1052, %v738
        %v1085 = vsel %vm1021, %v1053, %v745
        %v1086 = vsel %vm1022, %v1054, %v752
        %v1087 = vsel %vm1023, %v1055, %v759
        %v1088 = vsel %vm1024, %v1056, %v766
        %v1089 = vsel %vm1025, %v1057, %v773
        %v1090 = vsel %vm1026, %v1058, %v780
        %v1091 = vsel %vm1027, %v1059, %v787
        %v1092 = vsel %vm1028, %v1060, %v794
        %v1093 = vsel %vm1029, %v1061, %v801
        %v1094 = vsel %vm1030, %v1062, %v808
        %v1095 = vsel %vm1031, %v1063, %v815
        %v1096 = vsel %vm1032, %v1064, %v822
        %v1097 = vsel %vm1033, %v1065, %v829
        %v1098 = vsel %vm1034, %v1066, %v836
        %v1099 = vsel %vm1035, %v1067, %v843
        %v1100 = vsel %vm1036, %v1068, %v850
        %v1101 = vsel %vm1037, %v1069, %v857
        %v1102 = vsel %vm1038, %v1070, %v864
        %v1103 = vsel %vm1039, %v1071, %v871
        %v1104 = vsel %vm1040, %v1072, %v878
        %v1105 = vsel %vm1041, %v1073, %v885
        %v1106 = vsel %vm1042, %v1074, %v892
        %v1107 = vsel %vm1043, %v1075, %v899
        %v1108 = vsel %vm1044, %v1076, %v906
        %v1109 = vsel %vm1045, %v1077, %v913
        %v1110 = vsel %vm1046, %v1078, %v920
        %v1111 = vsel %vm1047, %v1079, %v927
        %v1112 = vsel %vm1048, %v1080, %v934
        %v1113 = vsel %vm1049, %v1081, %v941
        %v1114 = vsel %vm1050, %v1082, %v948
        %v1115 = vsel %vm1051, %v1083, %v955
        %vm1116 = vcmp.ne.s32.totalorder %v1084, 0
        %vm1117 = vcmp.ne.s32.totalorder %v1085, 0
        %vm1118 = vcmp.ne.s32.totalorder %v1086, 0
        %vm1119 = vcmp.ne.s32.totalorder %v1087, 0
        %vm1120 = vcmp.ne.s32.totalorder %v1088, 0
        %vm1121 = vcmp.ne.s32.totalorder %v1089, 0
        %vm1122 = vcmp.ne.s32.totalorder %v1090, 0
        %vm1123 = vcmp.ne.s32.totalorder %v1091, 0
        %vm1124 = vcmp.ne.s32.totalorder %v1092, 0
        %vm1125 = vcmp.ne.s32.totalorder %v1093, 0
        %vm1126 = vcmp.ne.s32.totalorder %v1094, 0
        %vm1127 = vcmp.ne.s32.totalorder %v1095, 0
        %vm1128 = vcmp.ne.s32.totalorder %v1096, 0
        %vm1129 = vcmp.ne.s32.totalorder %v1097, 0
        %vm1130 = vcmp.ne.s32.totalorder %v1098, 0
        %vm1131 = vcmp.ne.s32.totalorder %v1099, 0
        %vm1132 = vcmp.ne.s32.totalorder %v1100, 0
        %vm1133 = vcmp.ne.s32.totalorder %v1101, 0
        %vm1134 = vcmp.ne.s32.totalorder %v1102, 0
        %vm1135 = vcmp.ne.s32.totalorder %v1103, 0
        %vm1136 = vcmp.ne.s32.totalorder %v1104, 0
        %vm1137 = vcmp.ne.s32.totalorder %v1105, 0
        %vm1138 = vcmp.ne.s32.totalorder %v1106, 0
        %vm1139 = vcmp.ne.s32.totalorder %v1107, 0
        %vm1140 = vcmp.ne.s32.totalorder %v1108, 0
        %vm1141 = vcmp.ne.s32.totalorder %v1109, 0
        %vm1142 = vcmp.ne.s32.totalorder %v1110, 0
        %vm1143 = vcmp.ne.s32.totalorder %v1111, 0
        %vm1144 = vcmp.ne.s32.totalorder %v1112, 0
        %vm1145 = vcmp.ne.s32.totalorder %v1113, 0
        %vm1146 = vcmp.ne.s32.totalorder %v1114, 0
        %vm1147 = vcmp.ne.s32.totalorder %v1115, 0
        %v1148 = vld [vmem:[#allocation2] sm:$0xff]
        %v1149 = vld [vmem:[#allocation2 + $0x8] sm:$0xff]
        %v1150 = vld [vmem:[#allocation2 + $0x10] sm:$0xff]
        %v1151 = vld [vmem:[#allocation2 + $0x18] sm:$0xff]
        %v1152 = vld [vmem:[#allocation2 + $0x20] sm:$0xff]
        %v1153 = vld [vmem:[#allocation2 + $0x28] sm:$0xff]
        %v1154 = vld [vmem:[#allocation2 + $0x30] sm:$0xff]
        %v1155 = vld [vmem:[#allocation2 + $0x38] sm:$0xff]
        %v1156 = vld [vmem:[#allocation2 + $0x40] sm:$0xff]
        %v1157 = vld [vmem:[#allocation2 + $0x48] sm:$0xff]
        %v1158 = vld [vmem:[#allocation2 + $0x50] sm:$0xff]
        %v1159 = vld [vmem:[#allocation2 + $0x58] sm:$0xff]
        %v1160 = vld [vmem:[#allocation2 + $0x60] sm:$0xff]
        %v1161 = vld [vmem:[#allocation2 + $0x68] sm:$0xff]
        %v1162 = vld [vmem:[#allocation2 + $0x70] sm:$0xff]
        %v1163 = vld [vmem:[#allocation2 + $0x78] sm:$0xff]
        %v1164 = vld [vmem:[#allocation2 + $0x80] sm:$0xff]
        %v1165 = vld [vmem:[#allocation2 + $0x88] sm:$0xff]
        %v1166 = vld [vmem:[#allocation2 + $0x90] sm:$0xff]
        %v1167 = vld [vmem:[#allocation2 + $0x98] sm:$0xff]
        %v1168 = vld [vmem:[#allocation2 + $0xa0] sm:$0xff]
        %v1169 = vld [vmem:[#allocation2 + $0xa8] sm:$0xff]
        %v1170 = vld [vmem:[#allocation2 + $0xb0] sm:$0xff]
        %v1171 = vld [vmem:[#allocation2 + $0xb8] sm:$0xff]
        %v1172 = vld [vmem:[#allocation2 + $0xc0] sm:$0xff]
        %v1173 = vld [vmem:[#allocation2 + $0xc8] sm:$0xff]
        %v1174 = vld [vmem:[#allocation2 + $0xd0] sm:$0xff]
        %v1175 = vld [vmem:[#allocation2 + $0xd8] sm:$0xff]
        %v1176 = vld [vmem:[#allocation2 + $0xe0] sm:$0xff]
        %v1177 = vld [vmem:[#allocation2 + $0xe8] sm:$0xff]
        %v1178 = vld [vmem:[#allocation2 + $0xf0] sm:$0xff]
        %v1179 = vld [vmem:[#allocation2 + $0xf8] sm:$0xff]
        %v1180 = vsel %vm1116, 1, 0
        %v1181 = vsel %vm1117, 1, 0
        %v1182 = vsel %vm1118, 1, 0
        %v1183 = vsel %vm1119, 1, 0
        %v1184 = vsel %vm1120, 1, 0
        %v1185 = vsel %vm1121, 1, 0
        %v1186 = vsel %vm1122, 1, 0
        %v1187 = vsel %vm1123, 1, 0
        %v1188 = vsel %vm1124, 1, 0
        %v1189 = vsel %vm1125, 1, 0
        %v1190 = vsel %vm1126, 1, 0
        %v1191 = vsel %vm1127, 1, 0
        %v1192 = vsel %vm1128, 1, 0
        %v1193 = vsel %vm1129, 1, 0
        %v1194 = vsel %vm1130, 1, 0
        %v1195 = vsel %vm1131, 1, 0
        %v1196 = vsel %vm1132, 1, 0
        %v1197 = vsel %vm1133, 1, 0
        %v1198 = vsel %vm1134, 1, 0
        %v1199 = vsel %vm1135, 1, 0
        %v1200 = vsel %vm1136, 1, 0
        %v1201 = vsel %vm1137, 1, 0
        %v1202 = vsel %vm1138, 1, 0
        %v1203 = vsel %vm1139, 1, 0
        %v1204 = vsel %vm1140, 1, 0
        %v1205 = vsel %vm1141, 1, 0
        %v1206 = vsel %vm1142, 1, 0
        %v1207 = vsel %vm1143, 1, 0
        %v1208 = vsel %vm1144, 1, 0
        %v1209 = vsel %vm1145, 1, 0
        %v1210 = vsel %vm1146, 1, 0
        %v1211 = vsel %vm1147, 1, 0
        %vm1212 = vcmp.eq.s32.totalorder %v1180, 1
        %vm1213 = vcmp.eq.s32.totalorder %v1181, 1
        %vm1214 = vcmp.eq.s32.totalorder %v1182, 1
        %vm1215 = vcmp.eq.s32.totalorder %v1183, 1
        %vm1216 = vcmp.eq.s32.totalorder %v1184, 1
        %vm1217 = vcmp.eq.s32.totalorder %v1185, 1
        %vm1218 = vcmp.eq.s32.totalorder %v1186, 1
        %vm1219 = vcmp.eq.s32.totalorder %v1187, 1
        %vm1220 = vcmp.eq.s32.totalorder %v1188, 1
        %vm1221 = vcmp.eq.s32.totalorder %v1189, 1
        %vm1222 = vcmp.eq.s32.totalorder %v1190, 1
        %vm1223 = vcmp.eq.s32.totalorder %v1191, 1
        %vm1224 = vcmp.eq.s32.totalorder %v1192, 1
        %vm1225 = vcmp.eq.s32.totalorder %v1193, 1
        %vm1226 = vcmp.eq.s32.totalorder %v1194, 1
        %vm1227 = vcmp.eq.s32.totalorder %v1195, 1
        %vm1228 = vcmp.eq.s32.totalorder %v1196, 1
        %vm1229 = vcmp.eq.s32.totalorder %v1197, 1
        %vm1230 = vcmp.eq.s32.totalorder %v1198, 1
        %vm1231 = vcmp.eq.s32.totalorder %v1199, 1
        %vm1232 = vcmp.eq.s32.totalorder %v1200, 1
        %vm1233 = vcmp.eq.s32.totalorder %v1201, 1
        %vm1234 = vcmp.eq.s32.totalorder %v1202, 1
        %vm1235 = vcmp.eq.s32.totalorder %v1203, 1
        %vm1236 = vcmp.eq.s32.totalorder %v1204, 1
        %vm1237 = vcmp.eq.s32.totalorder %v1205, 1
        %vm1238 = vcmp.eq.s32.totalorder %v1206, 1
        %vm1239 = vcmp.eq.s32.totalorder %v1207, 1
        %vm1240 = vcmp.eq.s32.totalorder %v1208, 1
        %vm1241 = vcmp.eq.s32.totalorder %v1209, 1
        %vm1242 = vcmp.eq.s32.totalorder %v1210, 1
        %vm1243 = vcmp.eq.s32.totalorder %v1211, 1
        %v1244 = vsel %vm1212, %v1148, 0.0
        %v1245 = vsel %vm1213, %v1149, 0.0
        %v1246 = vsel %vm1214, %v1150, 0.0
        %v1247 = vsel %vm1215, %v1151, 0.0
        %v1248 = vsel %vm1216, %v1152, 0.0
        %v1249 = vsel %vm1217, %v1153, 0.0
        %v1250 = vsel %vm1218, %v1154, 0.0
        %v1251 = vsel %vm1219, %v1155, 0.0
        %v1252 = vsel %vm1220, %v1156, 0.0
        %v1253 = vsel %vm1221, %v1157, 0.0
        %v1254 = vsel %vm1222, %v1158, 0.0
        %v1255 = vsel %vm1223, %v1159, 0.0
        %v1256 = vsel %vm1224, %v1160, 0.0
        %v1257 = vsel %vm1225, %v1161, 0.0
        %v1258 = vsel %vm1226, %v1162, 0.0
        %v1259 = vsel %vm1227, %v1163, 0.0
        %v1260 = vsel %vm1228, %v1164, 0.0
        %v1261 = vsel %vm1229, %v1165, 0.0
        %v1262 = vsel %vm1230, %v1166, 0.0
        %v1263 = vsel %vm1231, %v1167, 0.0
        %v1264 = vsel %vm1232, %v1168, 0.0
        %v1265 = vsel %vm1233, %v1169, 0.0
        %v1266 = vsel %vm1234, %v1170, 0.0
        %v1267 = vsel %vm1235, %v1171, 0.0
        %v1268 = vsel %vm1236, %v1172, 0.0
        %v1269 = vsel %vm1237, %v1173, 0.0
        %v1270 = vsel %vm1238, %v1174, 0.0
        %v1271 = vsel %vm1239, %v1175, 0.0
        %v1272 = vsel %vm1240, %v1176, 0.0
        %v1273 = vsel %vm1241, %v1177, 0.0
        %v1274 = vsel %vm1242, %v1178, 0.0
        %v1275 = vsel %vm1243, %v1179, 0.0
        %vm1276 = vcmp.ne.s32.totalorder %v1084, 15
        %vm1277 = vcmp.ne.s32.totalorder %v1085, 15
        %vm1278 = vcmp.ne.s32.totalorder %v1086, 15
        %vm1279 = vcmp.ne.s32.totalorder %v1087, 15
        %vm1280 = vcmp.ne.s32.totalorder %v1088, 15
        %vm1281 = vcmp.ne.s32.totalorder %v1089, 15
        %vm1282 = vcmp.ne.s32.totalorder %v1090, 15
        %vm1283 = vcmp.ne.s32.totalorder %v1091, 15
        %vm1284 = vcmp.ne.s32.totalorder %v1092, 15
        %vm1285 = vcmp.ne.s32.totalorder %v1093, 15
        %vm1286 = vcmp.ne.s32.totalorder %v1094, 15
        %vm1287 = vcmp.ne.s32.totalorder %v1095, 15
        %vm1288 = vcmp.ne.s32.totalorder %v1096, 15
        %vm1289 = vcmp.ne.s32.totalorder %v1097, 15
        %vm1290 = vcmp.ne.s32.totalorder %v1098, 15
        %vm1291 = vcmp.ne.s32.totalorder %v1099, 15
        %vm1292 = vcmp.ne.s32.totalorder %v1100, 15
        %vm1293 = vcmp.ne.s32.totalorder %v1101, 15
        %vm1294 = vcmp.ne.s32.totalorder %v1102, 15
        %vm1295 = vcmp.ne.s32.totalorder %v1103, 15
        %vm1296 = vcmp.ne.s32.totalorder %v1104, 15
        %vm1297 = vcmp.ne.s32.totalorder %v1105, 15
        %vm1298 = vcmp.ne.s32.totalorder %v1106, 15
        %vm1299 = vcmp.ne.s32.totalorder %v1107, 15
        %vm1300 = vcmp.ne.s32.totalorder %v1108, 15
        %vm1301 = vcmp.ne.s32.totalorder %v1109, 15
        %vm1302 = vcmp.ne.s32.totalorder %v1110, 15
        %vm1303 = vcmp.ne.s32.totalorder %v1111, 15
        %vm1304 = vcmp.ne.s32.totalorder %v1112, 15
        %vm1305 = vcmp.ne.s32.totalorder %v1113, 15
        %vm1306 = vcmp.ne.s32.totalorder %v1114, 15
        %vm1307 = vcmp.ne.s32.totalorder %v1115, 15
        %v1308 = vld [vmem:[#allocation2 + $0x2] sm:$0xff]
        %v1309 = vld [vmem:[#allocation2 + $0xa] sm:$0xff]
        %v1310 = vld [vmem:[#allocation2 + $0x12] sm:$0xff]
        %v1311 = vld [vmem:[#allocation2 + $0x1a] sm:$0xff]
        %v1312 = vld [vmem:[#allocation2 + $0x22] sm:$0xff]
        %v1313 = vld [vmem:[#allocation2 + $0x2a] sm:$0xff]
        %v1314 = vld [vmem:[#allocation2 + $0x32] sm:$0xff]
        %v1315 = vld [vmem:[#allocation2 + $0x3a] sm:$0xff]
        %v1316 = vld [vmem:[#allocation2 + $0x42] sm:$0xff]
        %v1317 = vld [vmem:[#allocation2 + $0x4a] sm:$0xff]
        %v1318 = vld [vmem:[#allocation2 + $0x52] sm:$0xff]
        %v1319 = vld [vmem:[#allocation2 + $0x5a] sm:$0xff]
        %v1320 = vld [vmem:[#allocation2 + $0x62] sm:$0xff]
        %v1321 = vld [vmem:[#allocation2 + $0x6a] sm:$0xff]
        %v1322 = vld [vmem:[#allocation2 + $0x72] sm:$0xff]
        %v1323 = vld [vmem:[#allocation2 + $0x7a] sm:$0xff]
        %v1324 = vld [vmem:[#allocation2 + $0x82] sm:$0xff]
        %v1325 = vld [vmem:[#allocation2 + $0x8a] sm:$0xff]
        %v1326 = vld [vmem:[#allocation2 + $0x92] sm:$0xff]
        %v1327 = vld [vmem:[#allocation2 + $0x9a] sm:$0xff]
        %v1328 = vld [vmem:[#allocation2 + $0xa2] sm:$0xff]
        %v1329 = vld [vmem:[#allocation2 + $0xaa] sm:$0xff]
        %v1330 = vld [vmem:[#allocation2 + $0xb2] sm:$0xff]
        %v1331 = vld [vmem:[#allocation2 + $0xba] sm:$0xff]
        %v1332 = vld [vmem:[#allocation2 + $0xc2] sm:$0xff]
        %v1333 = vld [vmem:[#allocation2 + $0xca] sm:$0xff]
        %v1334 = vld [vmem:[#allocation2 + $0xd2] sm:$0xff]
        %v1335 = vld [vmem:[#allocation2 + $0xda] sm:$0xff]
        %v1336 = vld [vmem:[#allocation2 + $0xe2] sm:$0xff]
        %v1337 = vld [vmem:[#allocation2 + $0xea] sm:$0xff]
        %v1338 = vld [vmem:[#allocation2 + $0xf2] sm:$0xff]
        %v1339 = vld [vmem:[#allocation2 + $0xfa] sm:$0xff]
        %v1340 = vsel %vm1276, 1, 0
        %v1341 = vsel %vm1277, 1, 0
        %v1342 = vsel %vm1278, 1, 0
        %v1343 = vsel %vm1279, 1, 0
        %v1344 = vsel %vm1280, 1, 0
        %v1345 = vsel %vm1281, 1, 0
        %v1346 = vsel %vm1282, 1, 0
        %v1347 = vsel %vm1283, 1, 0
        %v1348 = vsel %vm1284, 1, 0
        %v1349 = vsel %vm1285, 1, 0
        %v1350 = vsel %vm1286, 1, 0
        %v1351 = vsel %vm1287, 1, 0
        %v1352 = vsel %vm1288, 1, 0
        %v1353 = vsel %vm1289, 1, 0
        %v1354 = vsel %vm1290, 1, 0
        %v1355 = vsel %vm1291, 1, 0
        %v1356 = vsel %vm1292, 1, 0
        %v1357 = vsel %vm1293, 1, 0
        %v1358 = vsel %vm1294, 1, 0
        %v1359 = vsel %vm1295, 1, 0
        %v1360 = vsel %vm1296, 1, 0
        %v1361 = vsel %vm1297, 1, 0
        %v1362 = vsel %vm1298, 1, 0
        %v1363 = vsel %vm1299, 1, 0
        %v1364 = vsel %vm1300, 1, 0
        %v1365 = vsel %vm1301, 1, 0
        %v1366 = vsel %vm1302, 1, 0
        %v1367 = vsel %vm1303, 1, 0
        %v1368 = vsel %vm1304, 1, 0
        %v1369 = vsel %vm1305, 1, 0
        %v1370 = vsel %vm1306, 1, 0
        %v1371 = vsel %vm1307, 1, 0
        %vm1372 = vcmp.eq.s32.totalorder %v1340, 1
        %vm1373 = vcmp.eq.s32.totalorder %v1341, 1
        %vm1374 = vcmp.eq.s32.totalorder %v1342, 1
        %vm1375 = vcmp.eq.s32.totalorder %v1343, 1
        %vm1376 = vcmp.eq.s32.totalorder %v1344, 1
        %vm1377 = vcmp.eq.s32.totalorder %v1345, 1
        %vm1378 = vcmp.eq.s32.totalorder %v1346, 1
        %vm1379 = vcmp.eq.s32.totalorder %v1347, 1
        %vm1380 = vcmp.eq.s32.totalorder %v1348, 1
        %vm1381 = vcmp.eq.s32.totalorder %v1349, 1
        %vm1382 = vcmp.eq.s32.totalorder %v1350, 1
        %vm1383 = vcmp.eq.s32.totalorder %v1351, 1
        %vm1384 = vcmp.eq.s32.totalorder %v1352, 1
        %vm1385 = vcmp.eq.s32.totalorder %v1353, 1
        %vm1386 = vcmp.eq.s32.totalorder %v1354, 1
        %vm1387 = vcmp.eq.s32.totalorder %v1355, 1
        %vm1388 = vcmp.eq.s32.totalorder %v1356, 1
        %vm1389 = vcmp.eq.s32.totalorder %v1357, 1
        %vm1390 = vcmp.eq.s32.totalorder %v1358, 1
        %vm1391 = vcmp.eq.s32.totalorder %v1359, 1
        %vm1392 = vcmp.eq.s32.totalorder %v1360, 1
        %vm1393 = vcmp.eq.s32.totalorder %v1361, 1
        %vm1394 = vcmp.eq.s32.totalorder %v1362, 1
        %vm1395 = vcmp.eq.s32.totalorder %v1363, 1
        %vm1396 = vcmp.eq.s32.totalorder %v1364, 1
        %vm1397 = vcmp.eq.s32.totalorder %v1365, 1
        %vm1398 = vcmp.eq.s32.totalorder %v1366, 1
        %vm1399 = vcmp.eq.s32.totalorder %v1367, 1
        %vm1400 = vcmp.eq.s32.totalorder %v1368, 1
        %vm1401 = vcmp.eq.s32.totalorder %v1369, 1
        %vm1402 = vcmp.eq.s32.totalorder %v1370, 1
        %vm1403 = vcmp.eq.s32.totalorder %v1371, 1
        %v1404 = vsel %vm1372, %v1308, 0.0
        %v1405 = vsel %vm1373, %v1309, 0.0
        %v1406 = vsel %vm1374, %v1310, 0.0
        %v1407 = vsel %vm1375, %v1311, 0.0
        %v1408 = vsel %vm1376, %v1312, 0.0
        %v1409 = vsel %vm1377, %v1313, 0.0
        %v1410 = vsel %vm1378, %v1314, 0.0
        %v1411 = vsel %vm1379, %v1315, 0.0
        %v1412 = vsel %vm1380, %v1316, 0.0
        %v1413 = vsel %vm1381, %v1317, 0.0
        %v1414 = vsel %vm1382, %v1318, 0.0
        %v1415 = vsel %vm1383, %v1319, 0.0
        %v1416 = vsel %vm1384, %v1320, 0.0
        %v1417 = vsel %vm1385, %v1321, 0.0
        %v1418 = vsel %vm1386, %v1322, 0.0
        %v1419 = vsel %vm1387, %v1323, 0.0
        %v1420 = vsel %vm1388, %v1324, 0.0
        %v1421 = vsel %vm1389, %v1325, 0.0
        %v1422 = vsel %vm1390, %v1326, 0.0
        %v1423 = vsel %vm1391, %v1327, 0.0
        %v1424 = vsel %vm1392, %v1328, 0.0
        %v1425 = vsel %vm1393, %v1329, 0.0
        %v1426 = vsel %vm1394, %v1330, 0.0
        %v1427 = vsel %vm1395, %v1331, 0.0
        %v1428 = vsel %vm1396, %v1332, 0.0
        %v1429 = vsel %vm1397, %v1333, 0.0
        %v1430 = vsel %vm1398, %v1334, 0.0
        %v1431 = vsel %vm1399, %v1335, 0.0
        %v1432 = vsel %vm1400, %v1336, 0.0
        %v1433 = vsel %vm1401, %v1337, 0.0
        %v1434 = vsel %vm1402, %v1338, 0.0
        %v1435 = vsel %vm1403, %v1339, 0.0
        %v1436 = vpack.c.bf16 %v1244, %v1244
        %v1437 = vpack.c.bf16 %v1245, %v1245
        %v1438 = vpack.c.bf16 %v1246, %v1246
        %v1439 = vpack.c.bf16 %v1247, %v1247
        %v1440 = vpack.c.bf16 %v1248, %v1248
        %v1441 = vpack.c.bf16 %v1249, %v1249
        %v1442 = vpack.c.bf16 %v1250, %v1250
        %v1443 = vpack.c.bf16 %v1251, %v1251
        %v1444 = vpack.c.bf16 %v1252, %v1252
        %v1445 = vpack.c.bf16 %v1253, %v1253
        %v1446 = vpack.c.bf16 %v1254, %v1254
        %v1447 = vpack.c.bf16 %v1255, %v1255
        %v1448 = vpack.c.bf16 %v1256, %v1256
        %v1449 = vpack.c.bf16 %v1257, %v1257
        %v1450 = vpack.c.bf16 %v1258, %v1258
        %v1451 = vpack.c.bf16 %v1259, %v1259
        %v1452 = vpack.c.bf16 %v1260, %v1260
        %v1453 = vpack.c.bf16 %v1261, %v1261
        %v1454 = vpack.c.bf16 %v1262, %v1262
        %v1455 = vpack.c.bf16 %v1263, %v1263
        %v1456 = vpack.c.bf16 %v1264, %v1264
        %v1457 = vpack.c.bf16 %v1265, %v1265
        %v1458 = vpack.c.bf16 %v1266, %v1266
        %v1459 = vpack.c.bf16 %v1267, %v1267
        %v1460 = vpack.c.bf16 %v1268, %v1268
        %v1461 = vpack.c.bf16 %v1269, %v1269
        %v1462 = vpack.c.bf16 %v1270, %v1270
        %v1463 = vpack.c.bf16 %v1271, %v1271
        %v1464 = vpack.c.bf16 %v1272, %v1272
        %v1465 = vpack.c.bf16 %v1273, %v1273
        %v1466 = vpack.c.bf16 %v1274, %v1274
        %v1467 = vpack.c.bf16 %v1275, %v1275
        %v1468 = vpack.c.bf16 %v635, %v635
        %v1469 = vpack.c.bf16 %v636, %v636
        %v1470 = vpack.c.bf16 %v637, %v637
        %v1471 = vpack.c.bf16 %v638, %v638
        %v1472 = vpack.c.bf16 %v639, %v639
        %v1473 = vpack.c.bf16 %v640, %v640
        %v1474 = vpack.c.bf16 %v641, %v641
        %v1475 = vpack.c.bf16 %v642, %v642
        %v1476 = vpack.c.bf16 %v643, %v643
        %v1477 = vpack.c.bf16 %v644, %v644
        %v1478 = vpack.c.bf16 %v645, %v645
        %v1479 = vpack.c.bf16 %v646, %v646
        %v1480 = vpack.c.bf16 %v647, %v647
        %v1481 = vpack.c.bf16 %v648, %v648
        %v1482 = vpack.c.bf16 %v649, %v649
        %v1483 = vpack.c.bf16 %v650, %v650
        %v1484 = vpack.c.bf16 %v651, %v651
        %v1485 = vpack.c.bf16 %v652, %v652
        %v1486 = vpack.c.bf16 %v653, %v653
        %v1487 = vpack.c.bf16 %v654, %v654
        %v1488 = vpack.c.bf16 %v655, %v655
        %v1489 = vpack.c.bf16 %v656, %v656
        %v1490 = vpack.c.bf16 %v657, %v657
        %v1491 = vpack.c.bf16 %v658, %v658
        %v1492 = vpack.c.bf16 %v659, %v659
        %v1493 = vpack.c.bf16 %v660, %v660
        %v1494 = vpack.c.bf16 %v661, %v661
        %v1495 = vpack.c.bf16 %v662, %v662
        %v1496 = vpack.c.bf16 %v663, %v663
        %v1497 = vpack.c.bf16 %v664, %v664
        %v1498 = vpack.c.bf16 %v665, %v665
        %v1499 = vpack.c.bf16 %v666, %v666
        %v1500 = vpack.c.bf16 %v1404, %v1404
        %v1501 = vpack.c.bf16 %v1405, %v1405
        %v1502 = vpack.c.bf16 %v1406, %v1406
        %v1503 = vpack.c.bf16 %v1407, %v1407
        %v1504 = vpack.c.bf16 %v1408, %v1408
        %v1505 = vpack.c.bf16 %v1409, %v1409
        %v1506 = vpack.c.bf16 %v1410, %v1410
        %v1507 = vpack.c.bf16 %v1411, %v1411
        %v1508 = vpack.c.bf16 %v1412, %v1412
        %v1509 = vpack.c.bf16 %v1413, %v1413
        %v1510 = vpack.c.bf16 %v1414, %v1414
        %v1511 = vpack.c.bf16 %v1415, %v1415
        %v1512 = vpack.c.bf16 %v1416, %v1416
        %v1513 = vpack.c.bf16 %v1417, %v1417
        %v1514 = vpack.c.bf16 %v1418, %v1418
        %v1515 = vpack.c.bf16 %v1419, %v1419
        %v1516 = vpack.c.bf16 %v1420, %v1420
        %v1517 = vpack.c.bf16 %v1421, %v1421
        %v1518 = vpack.c.bf16 %v1422, %v1422
        %v1519 = vpack.c.bf16 %v1423, %v1423
        %v1520 = vpack.c.bf16 %v1424, %v1424
        %v1521 = vpack.c.bf16 %v1425, %v1425
        %v1522 = vpack.c.bf16 %v1426, %v1426
        %v1523 = vpack.c.bf16 %v1427, %v1427
        %v1524 = vpack.c.bf16 %v1428, %v1428
        %v1525 = vpack.c.bf16 %v1429, %v1429
        %v1526 = vpack.c.bf16 %v1430, %v1430
        %v1527 = vpack.c.bf16 %v1431, %v1431
        %v1528 = vpack.c.bf16 %v1432, %v1432
        %v1529 = vpack.c.bf16 %v1433, %v1433
        %v1530 = vpack.c.bf16 %v1434, %v1434
        %v1531 = vpack.c.bf16 %v1435, %v1435
        %1532 = vst [vmem:[#allocation3] sm:$0xf] 0
        %1533 = vst [vmem:[#allocation3 + $0x24] sm:$0xf] 0
        %1534 = vst [vmem:[#allocation3 + $0x48] sm:$0xf] %v1436
        %1535 = vst [vmem:[#allocation3 + $0x6c] sm:$0xf] %v1437
        %1536 = vst [vmem:[#allocation3 + $0x90] sm:$0xf] %v1438
        %1537 = vst [vmem:[#allocation3 + $0xb4] sm:$0xf] %v1439
        %1538 = vst [vmem:[#allocation3 + $0xd8] sm:$0xf] %v1440
        %1539 = vst [vmem:[#allocation3 + $0xfc] sm:$0xf] %v1441
        %1540 = vst [vmem:[#allocation3 + $0x120] sm:$0xf] %v1442
        %1541 = vst [vmem:[#allocation3 + $0x144] sm:$0xf] %v1443
        %1542 = vst [vmem:[#allocation3 + $0x168] sm:$0xf] %v1444
        %1543 = vst [vmem:[#allocation3 + $0x18c] sm:$0xf] %v1445
        %1544 = vst [vmem:[#allocation3 + $0x1b0] sm:$0xf] %v1446
        %1545 = vst [vmem:[#allocation3 + $0x1d4] sm:$0xf] %v1447
        %1546 = vst [vmem:[#allocation3 + $0x1f8] sm:$0xf] %v1448
        %1547 = vst [vmem:[#allocation3 + $0x21c] sm:$0xf] %v1449
        %1548 = vst [vmem:[#allocation3 + $0x240] sm:$0xf] %v1450
        %1549 = vst [vmem:[#allocation3 + $0x264] sm:$0xf] %v1451
        %1550 = vst [vmem:[#allocation3 + $0x288] sm:$0xf] %v1452
        %1551 = vst [vmem:[#allocation3 + $0x2ac] sm:$0xf] %v1453
        %1552 = vst [vmem:[#allocation3 + $0x2d0] sm:$0xf] %v1454
        %1553 = vst [vmem:[#allocation3 + $0x2f4] sm:$0xf] %v1455
        %1554 = vst [vmem:[#allocation3 + $0x318] sm:$0xf] %v1456
        %1555 = vst [vmem:[#allocation3 + $0x33c] sm:$0xf] %v1457
        %1556 = vst [vmem:[#allocation3 + $0x360] sm:$0xf] %v1458
        %1557 = vst [vmem:[#allocation3 + $0x384] sm:$0xf] %v1459
        %1558 = vst [vmem:[#allocation3 + $0x3a8] sm:$0xf] %v1460
        %1559 = vst [vmem:[#allocation3 + $0x3cc] sm:$0xf] %v1461
        %1560 = vst [vmem:[#allocation3 + $0x3f0] sm:$0xf] %v1462
        %1561 = vst [vmem:[#allocation3 + $0x414] sm:$0xf] %v1463
        %1562 = vst [vmem:[#allocation3 + $0x438] sm:$0xf] %v1464
        %1563 = vst [vmem:[#allocation3 + $0x45c] sm:$0xf] %v1465
        %1564 = vst [vmem:[#allocation3 + $0x4] sm:$0xf] 0
        %1565 = vst [vmem:[#allocation3 + $0x28] sm:$0xf] 0
        %1566 = vst [vmem:[#allocation3 + $0x4c] sm:$0xf] %v1468
        %1567 = vst [vmem:[#allocation3 + $0x70] sm:$0xf] %v1469
        %1568 = vst [vmem:[#allocation3 + $0x94] sm:$0xf] %v1470
        %1569 = vst [vmem:[#allocation3 + $0xb8] sm:$0xf] %v1471
        %1570 = vst [vmem:[#allocation3 + $0xdc] sm:$0xf] %v1472
        %1571 = vst [vmem:[#allocation3 + $0x100] sm:$0xf] %v1473
        %1572 = vst [vmem:[#allocation3 + $0x124] sm:$0xf] %v1474
        %1573 = vst [vmem:[#allocation3 + $0x148] sm:$0xf] %v1475
        %1574 = vst [vmem:[#allocation3 + $0x16c] sm:$0xf] %v1476
        %1575 = vst [vmem:[#allocation3 + $0x190] sm:$0xf] %v1477
        %1576 = vst [vmem:[#allocation3 + $0x1b4] sm:$0xf] %v1478
        %1577 = vst [vmem:[#allocation3 + $0x1d8] sm:$0xf] %v1479
        %1578 = vst [vmem:[#allocation3 + $0x1fc] sm:$0xf] %v1480
        %1579 = vst [vmem:[#allocation3 + $0x220] sm:$0xf] %v1481
        %1580 = vst [vmem:[#allocation3 + $0x244] sm:$0xf] %v1482
        %1581 = vst [vmem:[#allocation3 + $0x268] sm:$0xf] %v1483
        %1582 = vst [vmem:[#allocation3 + $0x28c] sm:$0xf] %v1484
        %1583 = vst [vmem:[#allocation3 + $0x2b0] sm:$0xf] %v1485
        %1584 = vst [vmem:[#allocation3 + $0x2d4] sm:$0xf] %v1486
        %1585 = vst [vmem:[#allocation3 + $0x2f8] sm:$0xf] %v1487
        %1586 = vst [vmem:[#allocation3 + $0x31c] sm:$0xf] %v1488
        %1587 = vst [vmem:[#allocation3 + $0x340] sm:$0xf] %v1489
        %1588 = vst [vmem:[#allocation3 + $0x364] sm:$0xf] %v1490
        %1589 = vst [vmem:[#allocation3 + $0x388] sm:$0xf] %v1491
        %1590 = vst [vmem:[#allocation3 + $0x3ac] sm:$0xf] %v1492
        %1591 = vst [vmem:[#allocation3 + $0x3d0] sm:$0xf] %v1493
        %1592 = vst [vmem:[#allocation3 + $0x3f4] sm:$0xf] %v1494
        %1593 = vst [vmem:[#allocation3 + $0x418] sm:$0xf] %v1495
        %1594 = vst [vmem:[#allocation3 + $0x43c] sm:$0xf] %v1496
        %1595 = vst [vmem:[#allocation3 + $0x460] sm:$0xf] %v1497
        %1596 = vst [vmem:[#allocation3 + $0x8] sm:$0xf] 0
        %1597 = vst [vmem:[#allocation3 + $0x2c] sm:$0xf] 0
        %1598 = vst [vmem:[#allocation3 + $0x50] sm:$0xf] %v1500
        %1599 = vst [vmem:[#allocation3 + $0x74] sm:$0xf] %v1501
        %1600 = vst [vmem:[#allocation3 + $0x98] sm:$0xf] %v1502
        %1601 = vst [vmem:[#allocation3 + $0xbc] sm:$0xf] %v1503
        %1602 = vst [vmem:[#allocation3 + $0xe0] sm:$0xf] %v1504
        %1603 = vst [vmem:[#allocation3 + $0x104] sm:$0xf] %v1505
        %1604 = vst [vmem:[#allocation3 + $0x128] sm:$0xf] %v1506
        %1605 = vst [vmem:[#allocation3 + $0x14c] sm:$0xf] %v1507
        %1606 = vst [vmem:[#allocation3 + $0x170] sm:$0xf] %v1508
        %1607 = vst [vmem:[#allocation3 + $0x194] sm:$0xf] %v1509
        %1608 = vst [vmem:[#allocation3 + $0x1b8] sm:$0xf] %v1510
        %1609 = vst [vmem:[#allocation3 + $0x1dc] sm:$0xf] %v1511
        %1610 = vst [vmem:[#allocation3 + $0x200] sm:$0xf] %v1512
        %1611 = vst [vmem:[#allocation3 + $0x224] sm:$0xf] %v1513
        %1612 = vst [vmem:[#allocation3 + $0x248] sm:$0xf] %v1514
        %1613 = vst [vmem:[#allocation3 + $0x26c] sm:$0xf] %v1515
        %1614 = vst [vmem:[#allocation3 + $0x290] sm:$0xf] %v1516
        %1615 = vst [vmem:[#allocation3 + $0x2b4] sm:$0xf] %v1517
        %1616 = vst [vmem:[#allocation3 + $0x2d8] sm:$0xf] %v1518
        %1617 = vst [vmem:[#allocation3 + $0x2fc] sm:$0xf] %v1519
        %1618 = vst [vmem:[#allocation3 + $0x320] sm:$0xf] %v1520
        %1619 = vst [vmem:[#allocation3 + $0x344] sm:$0xf] %v1521
        %1620 = vst [vmem:[#allocation3 + $0x368] sm:$0xf] %v1522
        %1621 = vst [vmem:[#allocation3 + $0x38c] sm:$0xf] %v1523
        %1622 = vst [vmem:[#allocation3 + $0x3b0] sm:$0xf] %v1524
        %1623 = vst [vmem:[#allocation3 + $0x3d4] sm:$0xf] %v1525
        %1624 = vst [vmem:[#allocation3 + $0x3f8] sm:$0xf] %v1526
        %1625 = vst [vmem:[#allocation3 + $0x41c] sm:$0xf] %v1527
        %1626 = vst [vmem:[#allocation3 + $0x440] sm:$0xf] %v1528
        %1627 = vst [vmem:[#allocation3 + $0x464] sm:$0xf] %v1529
        %1628 = vst [vmem:[#allocation3 + $0xc] sm:$0xf] %v1436
        %1629 = vst [vmem:[#allocation3 + $0x30] sm:$0xf] %v1437
        %1630 = vst [vmem:[#allocation3 + $0x54] sm:$0xf] %v1438
        %1631 = vst [vmem:[#allocation3 + $0x78] sm:$0xf] %v1439
        %1632 = vst [vmem:[#allocation3 + $0x9c] sm:$0xf] %v1440
        %1633 = vst [vmem:[#allocation3 + $0xc0] sm:$0xf] %v1441
        %1634 = vst [vmem:[#allocation3 + $0xe4] sm:$0xf] %v1442
        %1635 = vst [vmem:[#allocation3 + $0x108] sm:$0xf] %v1443
        %1636 = vst [vmem:[#allocation3 + $0x12c] sm:$0xf] %v1444
        %1637 = vst [vmem:[#allocation3 + $0x150] sm:$0xf] %v1445
        %1638 = vst [vmem:[#allocation3 + $0x174] sm:$0xf] %v1446
        %1639 = vst [vmem:[#allocation3 + $0x198] sm:$0xf] %v1447
        %1640 = vst [vmem:[#allocation3 + $0x1bc] sm:$0xf] %v1448
        %1641 = vst [vmem:[#allocation3 + $0x1e0] sm:$0xf] %v1449
        %1642 = vst [vmem:[#allocation3 + $0x204] sm:$0xf] %v1450
        %1643 = vst [vmem:[#allocation3 + $0x228] sm:$0xf] %v1451
        %1644 = vst [vmem:[#allocation3 + $0x24c] sm:$0xf] %v1452
        %1645 = vst [vmem:[#allocation3 + $0x270] sm:$0xf] %v1453
        %1646 = vst [vmem:[#allocation3 + $0x294] sm:$0xf] %v1454
        %1647 = vst [vmem:[#allocation3 + $0x2b8] sm:$0xf] %v1455
        %1648 = vst [vmem:[#allocation3 + $0x2dc] sm:$0xf] %v1456
        %1649 = vst [vmem:[#allocation3 + $0x300] sm:$0xf] %v1457
        %1650 = vst [vmem:[#allocation3 + $0x324] sm:$0xf] %v1458
        %1651 = vst [vmem:[#allocation3 + $0x348] sm:$0xf] %v1459
        %1652 = vst [vmem:[#allocation3 + $0x36c] sm:$0xf] %v1460
        %1653 = vst [vmem:[#allocation3 + $0x390] sm:$0xf] %v1461
        %1654 = vst [vmem:[#allocation3 + $0x3b4] sm:$0xf] %v1462
        %1655 = vst [vmem:[#allocation3 + $0x3d8] sm:$0xf] %v1463
        %1656 = vst [vmem:[#allocation3 + $0x3fc] sm:$0xf] %v1464
        %1657 = vst [vmem:[#allocation3 + $0x420] sm:$0xf] %v1465
        %1658 = vst [vmem:[#allocation3 + $0x444] sm:$0xf] %v1466
        %1659 = vst [vmem:[#allocation3 + $0x468] sm:$0xf] %v1467
        %1660 = vst [vmem:[#allocation3 + $0x10] sm:$0xf] %v1468
        %1661 = vst [vmem:[#allocation3 + $0x34] sm:$0xf] %v1469
        %1662 = vst [vmem:[#allocation3 + $0x58] sm:$0xf] %v1470
        %1663 = vst [vmem:[#allocation3 + $0x7c] sm:$0xf] %v1471
        %1664 = vst [vmem:[#allocation3 + $0xa0] sm:$0xf] %v1472
        %1665 = vst [vmem:[#allocation3 + $0xc4] sm:$0xf] %v1473
        %1666 = vst [vmem:[#allocation3 + $0xe8] sm:$0xf] %v1474
        %1667 = vst [vmem:[#allocation3 + $0x10c] sm:$0xf] %v1475
        %1668 = vst [vmem:[#allocation3 + $0x130] sm:$0xf] %v1476
        %1669 = vst [vmem:[#allocation3 + $0x154] sm:$0xf] %v1477
        %1670 = vst [vmem:[#allocation3 + $0x178] sm:$0xf] %v1478
        %1671 = vst [vmem:[#allocation3 + $0x19c] sm:$0xf] %v1479
        %1672 = vst [vmem:[#allocation3 + $0x1c0] sm:$0xf] %v1480
        %1673 = vst [vmem:[#allocation3 + $0x1e4] sm:$0xf] %v1481
        %1674 = vst [vmem:[#allocation3 + $0x208] sm:$0xf] %v1482
        %1675 = vst [vmem:[#allocation3 + $0x22c] sm:$0xf] %v1483
        %1676 = vst [vmem:[#allocation3 + $0x250] sm:$0xf] %v1484
        %1677 = vst [vmem:[#allocation3 + $0x274] sm:$0xf] %v1485
        %1678 = vst [vmem:[#allocation3 + $0x298] sm:$0xf] %v1486
        %1679 = vst [vmem:[#allocation3 + $0x2bc] sm:$0xf] %v1487
        %1680 = vst [vmem:[#allocation3 + $0x2e0] sm:$0xf] %v1488
        %1681 = vst [vmem:[#allocation3 + $0x304] sm:$0xf] %v1489
        %1682 = vst [vmem:[#allocation3 + $0x328] sm:$0xf] %v1490
        %1683 = vst [vmem:[#allocation3 + $0x34c] sm:$0xf] %v1491
        %1684 = vst [vmem:[#allocation3 + $0x370] sm:$0xf] %v1492
        %1685 = vst [vmem:[#allocation3 + $0x394] sm:$0xf] %v1493
        %1686 = vst [vmem:[#allocation3 + $0x3b8] sm:$0xf] %v1494
        %1687 = vst [vmem:[#allocation3 + $0x3dc] sm:$0xf] %v1495
        %1688 = vst [vmem:[#allocation3 + $0x400] sm:$0xf] %v1496
        %1689 = vst [vmem:[#allocation3 + $0x424] sm:$0xf] %v1497
        %1690 = vst [vmem:[#allocation3 + $0x448] sm:$0xf] %v1498
        %1691 = vst [vmem:[#allocation3 + $0x46c] sm:$0xf] %v1499
        %1692 = vst [vmem:[#allocation3 + $0x14] sm:$0xf] %v1500
        %1693 = vst [vmem:[#allocation3 + $0x38] sm:$0xf] %v1501
        %1694 = vst [vmem:[#allocation3 + $0x5c] sm:$0xf] %v1502
        %1695 = vst [vmem:[#allocation3 + $0x80] sm:$0xf] %v1503
        %1696 = vst [vmem:[#allocation3 + $0xa4] sm:$0xf] %v1504
        %1697 = vst [vmem:[#allocation3 + $0xc8] sm:$0xf] %v1505
        %1698 = vst [vmem:[#allocation3 + $0xec] sm:$0xf] %v1506
        %1699 = vst [vmem:[#allocation3 + $0x110] sm:$0xf] %v1507
        %1700 = vst [vmem:[#allocation3 + $0x134] sm:$0xf] %v1508
        %1701 = vst [vmem:[#allocation3 + $0x158] sm:$0xf] %v1509
        %1702 = vst [vmem:[#allocation3 + $0x17c] sm:$0xf] %v1510
        %1703 = vst [vmem:[#allocation3 + $0x1a0] sm:$0xf] %v1511
        %1704 = vst [vmem:[#allocation3 + $0x1c4] sm:$0xf] %v1512
        %1705 = vst [vmem:[#allocation3 + $0x1e8] sm:$0xf] %v1513
        %1706 = vst [vmem:[#allocation3 + $0x20c] sm:$0xf] %v1514
        %1707 = vst [vmem:[#allocation3 + $0x230] sm:$0xf] %v1515
        %1708 = vst [vmem:[#allocation3 + $0x254] sm:$0xf] %v1516
        %1709 = vst [vmem:[#allocation3 + $0x278] sm:$0xf] %v1517
        %1710 = vst [vmem:[#allocation3 + $0x29c] sm:$0xf] %v1518
        %1711 = vst [vmem:[#allocation3 + $0x2c0] sm:$0xf] %v1519
        %1712 = vst [vmem:[#allocation3 + $0x2e4] sm:$0xf] %v1520
        %1713 = vst [vmem:[#allocation3 + $0x308] sm:$0xf] %v1521
        %1714 = vst [vmem:[#allocation3 + $0x32c] sm:$0xf] %v1522
        %1715 = vst [vmem:[#allocation3 + $0x350] sm:$0xf] %v1523
        %1716 = vst [vmem:[#allocation3 + $0x374] sm:$0xf] %v1524
        %1717 = vst [vmem:[#allocation3 + $0x398] sm:$0xf] %v1525
        %1718 = vst [vmem:[#allocation3 + $0x3bc] sm:$0xf] %v1526
        %1719 = vst [vmem:[#allocation3 + $0x3e0] sm:$0xf] %v1527
        %1720 = vst [vmem:[#allocation3 + $0x404] sm:$0xf] %v1528
        %1721 = vst [vmem:[#allocation3 + $0x428] sm:$0xf] %v1529
        %1722 = vst [vmem:[#allocation3 + $0x44c] sm:$0xf] %v1530
        %1723 = vst [vmem:[#allocation3 + $0x470] sm:$0xf] %v1531
        %1724 = vst [vmem:[#allocation3 + $0x18] sm:$0xf] %v1438
        %1725 = vst [vmem:[#allocation3 + $0x3c] sm:$0xf] %v1439
        %1726 = vst [vmem:[#allocation3 + $0x60] sm:$0xf] %v1440
        %1727 = vst [vmem:[#allocation3 + $0x84] sm:$0xf] %v1441
        %1728 = vst [vmem:[#allocation3 + $0xa8] sm:$0xf] %v1442
        %1729 = vst [vmem:[#allocation3 + $0xcc] sm:$0xf] %v1443
        %1730 = vst [vmem:[#allocation3 + $0xf0] sm:$0xf] %v1444
        %1731 = vst [vmem:[#allocation3 + $0x114] sm:$0xf] %v1445
        %1732 = vst [vmem:[#allocation3 + $0x138] sm:$0xf] %v1446
        %1733 = vst [vmem:[#allocation3 + $0x15c] sm:$0xf] %v1447
        %1734 = vst [vmem:[#allocation3 + $0x180] sm:$0xf] %v1448
        %1735 = vst [vmem:[#allocation3 + $0x1a4] sm:$0xf] %v1449
        %1736 = vst [vmem:[#allocation3 + $0x1c8] sm:$0xf] %v1450
        %1737 = vst [vmem:[#allocation3 + $0x1ec] sm:$0xf] %v1451
        %1738 = vst [vmem:[#allocation3 + $0x210] sm:$0xf] %v1452
        %1739 = vst [vmem:[#allocation3 + $0x234] sm:$0xf] %v1453
        %1740 = vst [vmem:[#allocation3 + $0x258] sm:$0xf] %v1454
        %1741 = vst [vmem:[#allocation3 + $0x27c] sm:$0xf] %v1455
        %1742 = vst [vmem:[#allocation3 + $0x2a0] sm:$0xf] %v1456
        %1743 = vst [vmem:[#allocation3 + $0x2c4] sm:$0xf] %v1457
        %1744 = vst [vmem:[#allocation3 + $0x2e8] sm:$0xf] %v1458
        %1745 = vst [vmem:[#allocation3 + $0x30c] sm:$0xf] %v1459
        %1746 = vst [vmem:[#allocation3 + $0x330] sm:$0xf] %v1460
        %1747 = vst [vmem:[#allocation3 + $0x354] sm:$0xf] %v1461
        %1748 = vst [vmem:[#allocation3 + $0x378] sm:$0xf] %v1462
        %1749 = vst [vmem:[#allocation3 + $0x39c] sm:$0xf] %v1463
        %1750 = vst [vmem:[#allocation3 + $0x3c0] sm:$0xf] %v1464
        %1751 = vst [vmem:[#allocation3 + $0x3e4] sm:$0xf] %v1465
        %1752 = vst [vmem:[#allocation3 + $0x408] sm:$0xf] %v1466
        %1753 = vst [vmem:[#allocation3 + $0x42c] sm:$0xf] %v1467
        %1754 = vst [vmem:[#allocation3 + $0x450] sm:$0xf] 0
        %1755 = vst [vmem:[#allocation3 + $0x474] sm:$0xf] 0
        %1756 = vst [vmem:[#allocation3 + $0x1c] sm:$0xf] %v1470
        %1757 = vst [vmem:[#allocation3 + $0x40] sm:$0xf] %v1471
        %1758 = vst [vmem:[#allocation3 + $0x64] sm:$0xf] %v1472
        %1759 = vst [vmem:[#allocation3 + $0x88] sm:$0xf] %v1473
        %1760 = vst [vmem:[#allocation3 + $0xac] sm:$0xf] %v1474
        %1761 = vst [vmem:[#allocation3 + $0xd0] sm:$0xf] %v1475
        %1762 = vst [vmem:[#allocation3 + $0xf4] sm:$0xf] %v1476
        %1763 = vst [vmem:[#allocation3 + $0x118] sm:$0xf] %v1477
        %1764 = vst [vmem:[#allocation3 + $0x13c] sm:$0xf] %v1478
        %1765 = vst [vmem:[#allocation3 + $0x160] sm:$0xf] %v1479
        %1766 = vst [vmem:[#allocation3 + $0x184] sm:$0xf] %v1480
        %1767 = vst [vmem:[#allocation3 + $0x1a8] sm:$0xf] %v1481
        %1768 = vst [vmem:[#allocation3 + $0x1cc] sm:$0xf] %v1482
        %1769 = vst [vmem:[#allocation3 + $0x1f0] sm:$0xf] %v1483
        %1770 = vst [vmem:[#allocation3 + $0x214] sm:$0xf] %v1484
        %1771 = vst [vmem:[#allocation3 + $0x238] sm:$0xf] %v1485
        %1772 = vst [vmem:[#allocation3 + $0x25c] sm:$0xf] %v1486
        %1773 = vst [vmem:[#allocation3 + $0x280] sm:$0xf] %v1487
        %1774 = vst [vmem:[#allocation3 + $0x2a4] sm:$0xf] %v1488
        %1775 = vst [vmem:[#allocation3 + $0x2c8] sm:$0xf] %v1489
        %1776 = vst [vmem:[#allocation3 + $0x2ec] sm:$0xf] %v1490
        %1777 = vst [vmem:[#allocation3 + $0x310] sm:$0xf] %v1491
        %1778 = vst [vmem:[#allocation3 + $0x334] sm:$0xf] %v1492
        %1779 = vst [vmem:[#allocation3 + $0x358] sm:$0xf] %v1493
        %1780 = vst [vmem:[#allocation3 + $0x37c] sm:$0xf] %v1494
        %1781 = vst [vmem:[#allocation3 + $0x3a0] sm:$0xf] %v1495
        %1782 = vst [vmem:[#allocation3 + $0x3c4] sm:$0xf] %v1496
        %1783 = vst [vmem:[#allocation3 + $0x3e8] sm:$0xf] %v1497
        %1784 = vst [vmem:[#allocation3 + $0x40c] sm:$0xf] %v1498
        %1785 = vst [vmem:[#allocation3 + $0x430] sm:$0xf] %v1499
        %1786 = vst [vmem:[#allocation3 + $0x454] sm:$0xf] 0
        %1787 = vst [vmem:[#allocation3 + $0x478] sm:$0xf] 0
        %1788 = vst [vmem:[#allocation3 + $0x20] sm:$0xf] %v1502
        %1789 = vst [vmem:[#allocation3 + $0x44] sm:$0xf] %v1503
        %1790 = vst [vmem:[#allocation3 + $0x68] sm:$0xf] %v1504
        %1791 = vst [vmem:[#allocation3 + $0x8c] sm:$0xf] %v1505
        %1792 = vst [vmem:[#allocation3 + $0xb0] sm:$0xf] %v1506
        %1793 = vst [vmem:[#allocation3 + $0xd4] sm:$0xf] %v1507
        %1794 = vst [vmem:[#allocation3 + $0xf8] sm:$0xf] %v1508
        %1795 = vst [vmem:[#allocation3 + $0x11c] sm:$0xf] %v1509
        %1796 = vst [vmem:[#allocation3 + $0x140] sm:$0xf] %v1510
        %1797 = vst [vmem:[#allocation3 + $0x164] sm:$0xf] %v1511
        %1798 = vst [vmem:[#allocation3 + $0x188] sm:$0xf] %v1512
        %1799 = vst [vmem:[#allocation3 + $0x1ac] sm:$0xf] %v1513
        %1800 = vst [vmem:[#allocation3 + $0x1d0] sm:$0xf] %v1514
        %1801 = vst [vmem:[#allocation3 + $0x1f4] sm:$0xf] %v1515
        %1802 = vst [vmem:[#allocation3 + $0x218] sm:$0xf] %v1516
        %1803 = vst [vmem:[#allocation3 + $0x23c] sm:$0xf] %v1517
        %1804 = vst [vmem:[#allocation3 + $0x260] sm:$0xf] %v1518
        %1805 = vst [vmem:[#allocation3 + $0x284] sm:$0xf] %v1519
        %1806 = vst [vmem:[#allocation3 + $0x2a8] sm:$0xf] %v1520
        %1807 = vst [vmem:[#allocation3 + $0x2cc] sm:$0xf] %v1521
        %1808 = vst [vmem:[#allocation3 + $0x2f0] sm:$0xf] %v1522
        %1809 = vst [vmem:[#allocation3 + $0x314] sm:$0xf] %v1523
        %1810 = vst [vmem:[#allocation3 + $0x338] sm:$0xf] %v1524
        %1811 = vst [vmem:[#allocation3 + $0x35c] sm:$0xf] %v1525
        %1812 = vst [vmem:[#allocation3 + $0x380] sm:$0xf] %v1526
        %1813 = vst [vmem:[#allocation3 + $0x3a4] sm:$0xf] %v1527
        %1814 = vst [vmem:[#allocation3 + $0x3c8] sm:$0xf] %v1528
        %1815 = vst [vmem:[#allocation3 + $0x3ec] sm:$0xf] %v1529
        %1816 = vst [vmem:[#allocation3 + $0x410] sm:$0xf] %v1530
        %1817 = vst [vmem:[#allocation3 + $0x434] sm:$0xf] %v1531
        %1818 = vst [vmem:[#allocation3 + $0x458] sm:$0xf] 0
        %1819 = vst [vmem:[#allocation3 + $0x47c] sm:$0xf] 0
        %v1820 = vld [vmem:[#allocation3] sm:$0xff]
        %v1821 = vld [vmem:[#allocation3 + $0x8] sm:$0xff]
        %v1822 = vld [vmem:[#allocation3 + $0x10] sm:$0xff]
        %v1823 = vld [vmem:[#allocation3 + $0x18] sm:$0xff]
        %v1824 = vld [vmem:[#allocation3 + $0x20] sm:$0xf]
        %v1825 = vld [vmem:[#allocation3 + $0x24] sm:$0xff]
        %v1826 = vld [vmem:[#allocation3 + $0x2c] sm:$0xff]
        %v1827 = vld [vmem:[#allocation3 + $0x34] sm:$0xff]
        %v1828 = vld [vmem:[#allocation3 + $0x3c] sm:$0xff]
        %v1829 = vld [vmem:[#allocation3 + $0x44] sm:$0xf]
        %v1830 = vld [vmem:[#allocation3 + $0x48] sm:$0xff]
        %v1831 = vld [vmem:[#allocation3 + $0x50] sm:$0xff]
        %v1832 = vld [vmem:[#allocation3 + $0x58] sm:$0xff]
        %v1833 = vld [vmem:[#allocation3 + $0x60] sm:$0xff]
        %v1834 = vld [vmem:[#allocation3 + $0x68] sm:$0xf]
        %v1835 = vld [vmem:[#allocation3 + $0x6c] sm:$0xff]
        %v1836 = vld [vmem:[#allocation3 + $0x74] sm:$0xff]
        %v1837 = vld [vmem:[#allocation3 + $0x7c] sm:$0xff]
        %v1838 = vld [vmem:[#allocation3 + $0x84] sm:$0xff]
        %v1839 = vld [vmem:[#allocation3 + $0x8c] sm:$0xf]
        %v1840 = vld [vmem:[#allocation3 + $0x90] sm:$0xff]
        %v1841 = vld [vmem:[#allocation3 + $0x98] sm:$0xff]
        %v1842 = vld [vmem:[#allocation3 + $0xa0] sm:$0xff]
        %v1843 = vld [vmem:[#allocation3 + $0xa8] sm:$0xff]
        %v1844 = vld [vmem:[#allocation3 + $0xb0] sm:$0xf]
        %v1845 = vld [vmem:[#allocation3 + $0xb4] sm:$0xff]
        %v1846 = vld [vmem:[#allocation3 + $0xbc] sm:$0xff]
        %v1847 = vld [vmem:[#allocation3 + $0xc4] sm:$0xff]
        %v1848 = vld [vmem:[#allocation3 + $0xcc] sm:$0xff]
        %v1849 = vld [vmem:[#allocation3 + $0xd4] sm:$0xf]
        %v1850 = vld [vmem:[#allocation3 + $0xd8] sm:$0xff]
        %v1851 = vld [vmem:[#allocation3 + $0xe0] sm:$0xff]
        %v1852 = vld [vmem:[#allocation3 + $0xe8] sm:$0xff]
        %v1853 = vld [vmem:[#allocation3 + $0xf0] sm:$0xff]
        %v1854 = vld [vmem:[#allocation3 + $0xf8] sm:$0xf]
        %v1855 = vld [vmem:[#allocation3 + $0xfc] sm:$0xff]
        %v1856 = vld [vmem:[#allocation3 + $0x104] sm:$0xff]
        %v1857 = vld [vmem:[#allocation3 + $0x10c] sm:$0xff]
        %v1858 = vld [vmem:[#allocation3 + $0x114] sm:$0xff]
        %v1859 = vld [vmem:[#allocation3 + $0x11c] sm:$0xf]
        %v1860 = vld [vmem:[#allocation3 + $0x120] sm:$0xff]
        %v1861 = vld [vmem:[#allocation3 + $0x128] sm:$0xff]
        %v1862 = vld [vmem:[#allocation3 + $0x130] sm:$0xff]
        %v1863 = vld [vmem:[#allocation3 + $0x138] sm:$0xff]
        %v1864 = vld [vmem:[#allocation3 + $0x140] sm:$0xf]
        %v1865 = vld [vmem:[#allocation3 + $0x144] sm:$0xff]
        %v1866 = vld [vmem:[#allocation3 + $0x14c] sm:$0xff]
        %v1867 = vld [vmem:[#allocation3 + $0x154] sm:$0xff]
        %v1868 = vld [vmem:[#allocation3 + $0x15c] sm:$0xff]
        %v1869 = vld [vmem:[#allocation3 + $0x164] sm:$0xf]
        %v1870 = vld [vmem:[#allocation3 + $0x168] sm:$0xff]
        %v1871 = vld [vmem:[#allocation3 + $0x170] sm:$0xff]
        %v1872 = vld [vmem:[#allocation3 + $0x178] sm:$0xff]
        %v1873 = vld [vmem:[#allocation3 + $0x180] sm:$0xff]
        %v1874 = vld [vmem:[#allocation3 + $0x188] sm:$0xf]
        %v1875 = vld [vmem:[#allocation3 + $0x18c] sm:$0xff]
        %v1876 = vld [vmem:[#allocation3 + $0x194] sm:$0xff]
        %v1877 = vld [vmem:[#allocation3 + $0x19c] sm:$0xff]
        %v1878 = vld [vmem:[#allocation3 + $0x1a4] sm:$0xff]
        %v1879 = vld [vmem:[#allocation3 + $0x1ac] sm:$0xf]
        %v1880 = vld [vmem:[#allocation3 + $0x1b0] sm:$0xff]
        %v1881 = vld [vmem:[#allocation3 + $0x1b8] sm:$0xff]
        %v1882 = vld [vmem:[#allocation3 + $0x1c0] sm:$0xff]
        %v1883 = vld [vmem:[#allocation3 + $0x1c8] sm:$0xff]
        %v1884 = vld [vmem:[#allocation3 + $0x1d0] sm:$0xf]
        %v1885 = vld [vmem:[#allocation3 + $0x1d4] sm:$0xff]
        %v1886 = vld [vmem:[#allocation3 + $0x1dc] sm:$0xff]
        %v1887 = vld [vmem:[#allocation3 + $0x1e4] sm:$0xff]
        %v1888 = vld [vmem:[#allocation3 + $0x1ec] sm:$0xff]
        %v1889 = vld [vmem:[#allocation3 + $0x1f4] sm:$0xf]
        %v1890 = vld [vmem:[#allocation3 + $0x1f8] sm:$0xff]
        %v1891 = vld [vmem:[#allocation3 + $0x200] sm:$0xff]
        %v1892 = vld [vmem:[#allocation3 + $0x208] sm:$0xff]
        %v1893 = vld [vmem:[#allocation3 + $0x210] sm:$0xff]
        %v1894 = vld [vmem:[#allocation3 + $0x218] sm:$0xf]
        %v1895 = vld [vmem:[#allocation3 + $0x21c] sm:$0xff]
        %v1896 = vld [vmem:[#allocation3 + $0x224] sm:$0xff]
        %v1897 = vld [vmem:[#allocation3 + $0x22c] sm:$0xff]
        %v1898 = vld [vmem:[#allocation3 + $0x234] sm:$0xff]
        %v1899 = vld [vmem:[#allocation3 + $0x23c] sm:$0xf]
        %v1900 = vld [vmem:[#allocation3 + $0x240] sm:$0xff]
        %v1901 = vld [vmem:[#allocation3 + $0x248] sm:$0xff]
        %v1902 = vld [vmem:[#allocation3 + $0x250] sm:$0xff]
        %v1903 = vld [vmem:[#allocation3 + $0x258] sm:$0xff]
        %v1904 = vld [vmem:[#allocation3 + $0x260] sm:$0xf]
        %v1905 = vld [vmem:[#allocation3 + $0x264] sm:$0xff]
        %v1906 = vld [vmem:[#allocation3 + $0x26c] sm:$0xff]
        %v1907 = vld [vmem:[#allocation3 + $0x274] sm:$0xff]
        %v1908 = vld [vmem:[#allocation3 + $0x27c] sm:$0xff]
        %v1909 = vld [vmem:[#allocation3 + $0x284] sm:$0xf]
        %v1910 = vld [vmem:[#allocation3 + $0x288] sm:$0xff]
        %v1911 = vld [vmem:[#allocation3 + $0x290] sm:$0xff]
        %v1912 = vld [vmem:[#allocation3 + $0x298] sm:$0xff]
        %v1913 = vld [vmem:[#allocation3 + $0x2a0] sm:$0xff]
        %v1914 = vld [vmem:[#allocation3 + $0x2a8] sm:$0xf]
        %v1915 = vld [vmem:[#allocation3 + $0x2ac] sm:$0xff]
        %v1916 = vld [vmem:[#allocation3 + $0x2b4] sm:$0xff]
        %v1917 = vld [vmem:[#allocation3 + $0x2bc] sm:$0xff]
        %v1918 = vld [vmem:[#allocation3 + $0x2c4] sm:$0xff]
        %v1919 = vld [vmem:[#allocation3 + $0x2cc] sm:$0xf]
        %v1920 = vld [vmem:[#allocation3 + $0x2d0] sm:$0xff]
        %v1921 = vld [vmem:[#allocation3 + $0x2d8] sm:$0xff]
        %v1922 = vld [vmem:[#allocation3 + $0x2e0] sm:$0xff]
        %v1923 = vld [vmem:[#allocation3 + $0x2e8] sm:$0xff]
        %v1924 = vld [vmem:[#allocation3 + $0x2f0] sm:$0xf]
        %v1925 = vld [vmem:[#allocation3 + $0x2f4] sm:$0xff]
        %v1926 = vld [vmem:[#allocation3 + $0x2fc] sm:$0xff]
        %v1927 = vld [vmem:[#allocation3 + $0x304] sm:$0xff]
        %v1928 = vld [vmem:[#allocation3 + $0x30c] sm:$0xff]
        %v1929 = vld [vmem:[#allocation3 + $0x314] sm:$0xf]
        %v1930 = vld [vmem:[#allocation3 + $0x318] sm:$0xff]
        %v1931 = vld [vmem:[#allocation3 + $0x320] sm:$0xff]
        %v1932 = vld [vmem:[#allocation3 + $0x328] sm:$0xff]
        %v1933 = vld [vmem:[#allocation3 + $0x330] sm:$0xff]
        %v1934 = vld [vmem:[#allocation3 + $0x338] sm:$0xf]
        %v1935 = vld [vmem:[#allocation3 + $0x33c] sm:$0xff]
        %v1936 = vld [vmem:[#allocation3 + $0x344] sm:$0xff]
        %v1937 = vld [vmem:[#allocation3 + $0x34c] sm:$0xff]
        %v1938 = vld [vmem:[#allocation3 + $0x354] sm:$0xff]
        %v1939 = vld [vmem:[#allocation3 + $0x35c] sm:$0xf]
        %v1940 = vld [vmem:[#allocation3 + $0x360] sm:$0xff]
        %v1941 = vld [vmem:[#allocation3 + $0x368] sm:$0xff]
        %v1942 = vld [vmem:[#allocation3 + $0x370] sm:$0xff]
        %v1943 = vld [vmem:[#allocation3 + $0x378] sm:$0xff]
        %v1944 = vld [vmem:[#allocation3 + $0x380] sm:$0xf]
        %v1945 = vld [vmem:[#allocation3 + $0x384] sm:$0xff]
        %v1946 = vld [vmem:[#allocation3 + $0x38c] sm:$0xff]
        %v1947 = vld [vmem:[#allocation3 + $0x394] sm:$0xff]
        %v1948 = vld [vmem:[#allocation3 + $0x39c] sm:$0xff]
        %v1949 = vld [vmem:[#allocation3 + $0x3a4] sm:$0xf]
        %v1950 = vld [vmem:[#allocation3 + $0x3a8] sm:$0xff]
        %v1951 = vld [vmem:[#allocation3 + $0x3b0] sm:$0xff]
        %v1952 = vld [vmem:[#allocation3 + $0x3b8] sm:$0xff]
        %v1953 = vld [vmem:[#allocation3 + $0x3c0] sm:$0xff]
        %v1954 = vld [vmem:[#allocation3 + $0x3c8] sm:$0xf]
        %v1955 = vld [vmem:[#allocation3 + $0x3cc] sm:$0xff]
        %v1956 = vld [vmem:[#allocation3 + $0x3d4] sm:$0xff]
        %v1957 = vld [vmem:[#allocation3 + $0x3dc] sm:$0xff]
        %v1958 = vld [vmem:[#allocation3 + $0x3e4] sm:$0xff]
        %v1959 = vld [vmem:[#allocation3 + $0x3ec] sm:$0xf]
        %v1960 = vld [vmem:[#allocation3 + $0x3f0] sm:$0xff]
        %v1961 = vld [vmem:[#allocation3 + $0x3f8] sm:$0xff]
        %v1962 = vld [vmem:[#allocation3 + $0x400] sm:$0xff]
        %v1963 = vld [vmem:[#allocation3 + $0x408] sm:$0xff]
        %v1964 = vld [vmem:[#allocation3 + $0x410] sm:$0xf]
        %v1965 = vld [vmem:[#allocation3 + $0x414] sm:$0xff]
        %v1966 = vld [vmem:[#allocation3 + $0x41c] sm:$0xff]
        %v1967 = vld [vmem:[#allocation3 + $0x424] sm:$0xff]
        %v1968 = vld [vmem:[#allocation3 + $0x42c] sm:$0xff]
        %v1969 = vld [vmem:[#allocation3 + $0x434] sm:$0xf]
        %v1970 = vld [vmem:[#allocation3 + $0x438] sm:$0xff]
        %v1971 = vld [vmem:[#allocation3 + $0x440] sm:$0xff]
        %v1972 = vld [vmem:[#allocation3 + $0x448] sm:$0xff]
        %v1973 = vld [vmem:[#allocation3 + $0x450] sm:$0xff]
        %v1974 = vld [vmem:[#allocation3 + $0x458] sm:$0xf]
        %v1975 = vld [vmem:[#allocation3 + $0x45c] sm:$0xff]
        %v1976 = vld [vmem:[#allocation3 + $0x464] sm:$0xff]
        %v1977 = vld [vmem:[#allocation3 + $0x46c] sm:$0xff]
        %v1978 = vld [vmem:[#allocation3 + $0x474] sm:$0xff]
        %v1979 = vld [vmem:[#allocation3 + $0x47c] sm:$0xf]
        %v1980 = vld [vmem:[#allocation9] sm:$0xf]
        %v1981 = vld [vmem:[#allocation9 + $0x4] sm:$0xf]
        %v1982 = vld [vmem:[#allocation9 + $0x8] sm:$0xf]
        %v1983 = vld [vmem:[#allocation9 + $0xc] sm:$0xf]
        %v1984 = vld [vmem:[#allocation9 + $0x10] sm:$0xf]
        %v1985 = vld [vmem:[#allocation9 + $0x14] sm:$0xf]
        %v1986 = vld [vmem:[#allocation9 + $0x18] sm:$0xf]
        %v1987 = vld [vmem:[#allocation9 + $0x1c] sm:$0xf]
        %v1988 = vld [vmem:[#allocation9 + $0x20] sm:$0xf]
        %v1989 = vld [vmem:[#allocation9 + $0x24] sm:$0xf]
        %v1990 = vld [vmem:[#allocation9 + $0x28] sm:$0xf]
        %v1991 = vld [vmem:[#allocation9 + $0x2c] sm:$0xf]
        %v1992 = vld [vmem:[#allocation9 + $0x30] sm:$0xf]
        %v1993 = vld [vmem:[#allocation9 + $0x34] sm:$0xf]
        %v1994 = vld [vmem:[#allocation9 + $0x38] sm:$0xf]
        %v1995 = vld [vmem:[#allocation9 + $0x3c] sm:$0xf]
        %v1996 = vld [vmem:[#allocation9 + $0x40] sm:$0xf]
        %v1997 = vld [vmem:[#allocation9 + $0x44] sm:$0xf]
        %v1998 = vld [vmem:[#allocation9 + $0x48] sm:$0xf]
        %v1999 = vld [vmem:[#allocation9 + $0x4c] sm:$0xf]
        %v2000 = vld [vmem:[#allocation9 + $0x50] sm:$0xf]
        %v2001 = vld [vmem:[#allocation9 + $0x54] sm:$0xf]
        %v2002 = vld [vmem:[#allocation9 + $0x58] sm:$0xf]
        %v2003 = vld [vmem:[#allocation9 + $0x5c] sm:$0xf]
        %v2004 = vld [vmem:[#allocation9 + $0x60] sm:$0xf]
        %v2005 = vld [vmem:[#allocation9 + $0x64] sm:$0xf]
        %v2006 = vld [vmem:[#allocation9 + $0x68] sm:$0xf]
        %v2007 = vld [vmem:[#allocation9 + $0x6c] sm:$0xf]
        %v2008 = vld [vmem:[#allocation9 + $0x70] sm:$0xf]
        %v2009 = vld [vmem:[#allocation9 + $0x74] sm:$0xf]
        %v2010 = vld [vmem:[#allocation9 + $0x78] sm:$0xf]
        %v2011 = vld [vmem:[#allocation9 + $0x7c] sm:$0xf]
        %v2012 = vld [vmem:[#allocation9 + $0x80] sm:$0xf]
        %v2013 = vld [vmem:[#allocation9 + $0x84] sm:$0xf]
        %v2014 = vld [vmem:[#allocation9 + $0x88] sm:$0xf]
        %v2015 = vld [vmem:[#allocation9 + $0x8c] sm:$0xf]
        %v2016 = vld [vmem:[#allocation9 + $0x90] sm:$0xf]
        %v2017 = vld [vmem:[#allocation9 + $0x94] sm:$0xf]
        %v2018 = vld [vmem:[#allocation9 + $0x98] sm:$0xf]
        %v2019 = vld [vmem:[#allocation9 + $0x9c] sm:$0xf]
        %v2020 = vld [vmem:[#allocation9 + $0xa0] sm:$0xf]
        %v2021 = vld [vmem:[#allocation9 + $0xa4] sm:$0xf]
        %v2022 = vld [vmem:[#allocation9 + $0xa8] sm:$0xf]
        %v2023 = vld [vmem:[#allocation9 + $0xac] sm:$0xf]
        %v2024 = vld [vmem:[#allocation9 + $0xb0] sm:$0xf]
        %v2025 = vld [vmem:[#allocation9 + $0xb4] sm:$0xf]
        %v2026 = vld [vmem:[#allocation9 + $0xb8] sm:$0xf]
        %v2027 = vld [vmem:[#allocation9 + $0xbc] sm:$0xf]
        %v2028 = vld [vmem:[#allocation9 + $0xc0] sm:$0xf]
        %v2029 = vld [vmem:[#allocation9 + $0xc4] sm:$0xf]
        %v2030 = vld [vmem:[#allocation9 + $0xc8] sm:$0xf]
        %v2031 = vld [vmem:[#allocation9 + $0xcc] sm:$0xf]
        %v2032 = vld [vmem:[#allocation9 + $0xd0] sm:$0xf]
        %v2033 = vld [vmem:[#allocation9 + $0xd4] sm:$0xf]
        %v2034 = vld [vmem:[#allocation9 + $0xd8] sm:$0xf]
        %v2035 = vld [vmem:[#allocation9 + $0xdc] sm:$0xf]
        %v2036 = vld [vmem:[#allocation9 + $0xe0] sm:$0xf]
        %v2037 = vld [vmem:[#allocation9 + $0xe4] sm:$0xf]
        %v2038 = vld [vmem:[#allocation9 + $0xe8] sm:$0xf]
        %v2039 = vld [vmem:[#allocation9 + $0xec] sm:$0xf]
        %v2040 = vld [vmem:[#allocation9 + $0xf0] sm:$0xf]
        %v2041 = vld [vmem:[#allocation9 + $0xf4] sm:$0xf]
        %v2042 = vld [vmem:[#allocation9 + $0xf8] sm:$0xf]
        %v2043 = vld [vmem:[#allocation9 + $0xfc] sm:$0xf]
        %v2044 = vld [vmem:[#allocation9 + $0x100] sm:$0xf]
        %v2045 = vld [vmem:[#allocation9 + $0x104] sm:$0xf]
        %v2046 = vld [vmem:[#allocation9 + $0x108] sm:$0xf]
        %v2047 = vld [vmem:[#allocation9 + $0x10c] sm:$0xf]
        %v2048 = vld [vmem:[#allocation9 + $0x110] sm:$0xf]
        %v2049 = vld [vmem:[#allocation9 + $0x114] sm:$0xf]
        %v2050 = vld [vmem:[#allocation9 + $0x118] sm:$0xf]
        %v2051 = vld [vmem:[#allocation9 + $0x11c] sm:$0xf]
        %v2052 = vld [vmem:[#allocation9 + $0x120] sm:$0xf]
        %v2053 = vld [vmem:[#allocation9 + $0x124] sm:$0xf]
        %v2054 = vld [vmem:[#allocation9 + $0x128] sm:$0xf]
        %v2055 = vld [vmem:[#allocation9 + $0x12c] sm:$0xf]
        %v2056 = vld [vmem:[#allocation9 + $0x130] sm:$0xf]
        %v2057 = vld [vmem:[#allocation9 + $0x134] sm:$0xf]
        %v2058 = vld [vmem:[#allocation9 + $0x138] sm:$0xf]
        %v2059 = vld [vmem:[#allocation9 + $0x13c] sm:$0xf]
        %v2060 = vld [vmem:[#allocation9 + $0x140] sm:$0xf]
        %v2061 = vld [vmem:[#allocation9 + $0x144] sm:$0xf]
        %v2062 = vld [vmem:[#allocation9 + $0x148] sm:$0xf]
        %v2063 = vld [vmem:[#allocation9 + $0x14c] sm:$0xf]
        %v2064 = vld [vmem:[#allocation9 + $0x150] sm:$0xf]
        %v2065 = vld [vmem:[#allocation9 + $0x154] sm:$0xf]
        %v2066 = vld [vmem:[#allocation9 + $0x158] sm:$0xf]
        %v2067 = vld [vmem:[#allocation9 + $0x15c] sm:$0xf]
        %v2068 = vld [vmem:[#allocation9 + $0x160] sm:$0xf]
        %v2069 = vld [vmem:[#allocation9 + $0x164] sm:$0xf]
        %v2070 = vld [vmem:[#allocation9 + $0x168] sm:$0xf]
        %v2071 = vld [vmem:[#allocation9 + $0x16c] sm:$0xf]
        %v2072 = vld [vmem:[#allocation9 + $0x170] sm:$0xf]
        %v2073 = vld [vmem:[#allocation9 + $0x174] sm:$0xf]
        %v2074 = vld [vmem:[#allocation9 + $0x178] sm:$0xf]
        %v2075 = vld [vmem:[#allocation9 + $0x17c] sm:$0xf]
        %v2076 = vld [vmem:[#allocation9 + $0x180] sm:$0xf]
        %v2077 = vld [vmem:[#allocation9 + $0x184] sm:$0xf]
        %v2078 = vld [vmem:[#allocation9 + $0x188] sm:$0xf]
        %v2079 = vld [vmem:[#allocation9 + $0x18c] sm:$0xf]
        %v2080 = vld [vmem:[#allocation9 + $0x190] sm:$0xf]
        %v2081 = vld [vmem:[#allocation9 + $0x194] sm:$0xf]
        %v2082 = vld [vmem:[#allocation9 + $0x198] sm:$0xf]
        %v2083 = vld [vmem:[#allocation9 + $0x19c] sm:$0xf]
        %v2084 = vld [vmem:[#allocation9 + $0x1a0] sm:$0xf]
        %v2085 = vld [vmem:[#allocation9 + $0x1a4] sm:$0xf]
        %v2086 = vld [vmem:[#allocation9 + $0x1a8] sm:$0xf]
        %v2087 = vld [vmem:[#allocation9 + $0x1ac] sm:$0xf]
        %v2088 = vld [vmem:[#allocation9 + $0x1b0] sm:$0xf]
        %v2089 = vld [vmem:[#allocation9 + $0x1b4] sm:$0xf]
        %v2090 = vld [vmem:[#allocation9 + $0x1b8] sm:$0xf]
        %v2091 = vld [vmem:[#allocation9 + $0x1bc] sm:$0xf]
        %v2092 = vld [vmem:[#allocation9 + $0x1c0] sm:$0xf]
        %v2093 = vld [vmem:[#allocation9 + $0x1c4] sm:$0xf]
        %v2094 = vld [vmem:[#allocation9 + $0x1c8] sm:$0xf]
        %v2095 = vld [vmem:[#allocation9 + $0x1cc] sm:$0xf]
        %v2096 = vld [vmem:[#allocation9 + $0x1d0] sm:$0xf]
        %v2097 = vld [vmem:[#allocation9 + $0x1d4] sm:$0xf]
        %v2098 = vld [vmem:[#allocation9 + $0x1d8] sm:$0xf]
        %v2099 = vld [vmem:[#allocation9 + $0x1dc] sm:$0xf]
        %v2100 = vld [vmem:[#allocation9 + $0x1e0] sm:$0xf]
        %v2101 = vld [vmem:[#allocation9 + $0x1e4] sm:$0xf]
        %v2102 = vld [vmem:[#allocation9 + $0x1e8] sm:$0xf]
        %v2103 = vld [vmem:[#allocation9 + $0x1ec] sm:$0xf]
        %v2104 = vld [vmem:[#allocation9 + $0x1f0] sm:$0xf]
        %v2105 = vld [vmem:[#allocation9 + $0x1f4] sm:$0xf]
        %v2106 = vld [vmem:[#allocation9 + $0x1f8] sm:$0xf]
        %v2107 = vld [vmem:[#allocation9 + $0x1fc] sm:$0xf]
        %v2108 = vld [vmem:[#allocation9 + $0x200] sm:$0xf]
        %v2109 = vld [vmem:[#allocation9 + $0x204] sm:$0xf]
        %v2110 = vld [vmem:[#allocation9 + $0x208] sm:$0xf]
        %v2111 = vld [vmem:[#allocation9 + $0x20c] sm:$0xf]
        %v2112 = vld [vmem:[#allocation9 + $0x210] sm:$0xf]
        %v2113 = vld [vmem:[#allocation9 + $0x214] sm:$0xf]
        %v2114 = vld [vmem:[#allocation9 + $0x218] sm:$0xf]
        %v2115 = vld [vmem:[#allocation9 + $0x21c] sm:$0xf]
        %v2116 = vld [vmem:[#allocation9 + $0x220] sm:$0xf]
        %v2117 = vld [vmem:[#allocation9 + $0x224] sm:$0xf]
        %v2118 = vld [vmem:[#allocation9 + $0x228] sm:$0xf]
        %v2119 = vld [vmem:[#allocation9 + $0x22c] sm:$0xf]
        %v2120 = vld [vmem:[#allocation9 + $0x230] sm:$0xf]
        %v2121 = vld [vmem:[#allocation9 + $0x234] sm:$0xf]
        %v2122 = vld [vmem:[#allocation9 + $0x238] sm:$0xf]
        %v2123 = vld [vmem:[#allocation9 + $0x23c] sm:$0xf]
        %v2124 = vld [vmem:[%s4] sm:$0x1]
        %v2126 = vperm.slane %v2124, 0
        %v2288 = vunpack.c.l.b16 %v1820
        %v2289 = vunpack.c.h.b16 %v1820
        %v2290 = vunpack.c.l.b16 %v1821
        %v2291 = vunpack.c.h.b16 %v1821
        %v2292 = vunpack.c.l.b16 %v1822
        %v2293 = vunpack.c.h.b16 %v1822
        %v2294 = vunpack.c.l.b16 %v1823
        %v2295 = vunpack.c.h.b16 %v1823
        %v2296 = vunpack.c.l.b16 %v1824
        %v2297 = vunpack.c.l.b16 %v1825
        %v2298 = vunpack.c.h.b16 %v1825
        %v2299 = vunpack.c.l.b16 %v1826
        %v2300 = vunpack.c.h.b16 %v1826
        %v2301 = vunpack.c.l.b16 %v1827
        %v2302 = vunpack.c.h.b16 %v1827
        %v2303 = vunpack.c.l.b16 %v1828
        %v2304 = vunpack.c.h.b16 %v1828
        %v2305 = vunpack.c.l.b16 %v1829
        %v2306 = vunpack.c.l.b16 %v1830
        %v2307 = vunpack.c.h.b16 %v1830
        %v2308 = vunpack.c.l.b16 %v1831
        %v2309 = vunpack.c.h.b16 %v1831
        %v2310 = vunpack.c.l.b16 %v1832
        %v2311 = vunpack.c.h.b16 %v1832
        %v2312 = vunpack.c.l.b16 %v1833
        %v2313 = vunpack.c.h.b16 %v1833
        %v2314 = vunpack.c.l.b16 %v1834
        %v2315 = vunpack.c.l.b16 %v1835
        %v2316 = vunpack.c.h.b16 %v1835
        %v2317 = vunpack.c.l.b16 %v1836
        %v2318 = vunpack.c.h.b16 %v1836
        %v2319 = vunpack.c.l.b16 %v1837
        %v2320 = vunpack.c.h.b16 %v1837
        %v2321 = vunpack.c.l.b16 %v1838
        %v2322 = vunpack.c.h.b16 %v1838
        %v2323 = vunpack.c.l.b16 %v1839
        %v2324 = vunpack.c.l.b16 %v1840
        %v2325 = vunpack.c.h.b16 %v1840
        %v2326 = vunpack.c.l.b16 %v1841
        %v2327 = vunpack.c.h.b16 %v1841
        %v2328 = vunpack.c.l.b16 %v1842
        %v2329 = vunpack.c.h.b16 %v1842
        %v2330 = vunpack.c.l.b16 %v1843
        %v2331 = vunpack.c.h.b16 %v1843
        %v2332 = vunpack.c.l.b16 %v1844
        %v2333 = vunpack.c.l.b16 %v1845
        %v2334 = vunpack.c.h.b16 %v1845
        %v2335 = vunpack.c.l.b16 %v1846
        %v2336 = vunpack.c.h.b16 %v1846
        %v2337 = vunpack.c.l.b16 %v1847
        %v2338 = vunpack.c.h.b16 %v1847
        %v2339 = vunpack.c.l.b16 %v1848
        %v2340 = vunpack.c.h.b16 %v1848
        %v2341 = vunpack.c.l.b16 %v1849
        %v2342 = vunpack.c.l.b16 %v1850
        %v2343 = vunpack.c.h.b16 %v1850
        %v2344 = vunpack.c.l.b16 %v1851
        %v2345 = vunpack.c.h.b16 %v1851
        %v2346 = vunpack.c.l.b16 %v1852
        %v2347 = vunpack.c.h.b16 %v1852
        %v2348 = vunpack.c.l.b16 %v1853
        %v2349 = vunpack.c.h.b16 %v1853
        %v2350 = vunpack.c.l.b16 %v1854
        %v2351 = vunpack.c.l.b16 %v1855
        %v2352 = vunpack.c.h.b16 %v1855
        %v2353 = vunpack.c.l.b16 %v1856
        %v2354 = vunpack.c.h.b16 %v1856
        %v2355 = vunpack.c.l.b16 %v1857
        %v2356 = vunpack.c.h.b16 %v1857
        %v2357 = vunpack.c.l.b16 %v1858
        %v2358 = vunpack.c.h.b16 %v1858
        %v2359 = vunpack.c.l.b16 %v1859
        %v2360 = vunpack.c.l.b16 %v1860
        %v2361 = vunpack.c.h.b16 %v1860
        %v2362 = vunpack.c.l.b16 %v1861
        %v2363 = vunpack.c.h.b16 %v1861
        %v2364 = vunpack.c.l.b16 %v1862
        %v2365 = vunpack.c.h.b16 %v1862
        %v2366 = vunpack.c.l.b16 %v1863
        %v2367 = vunpack.c.h.b16 %v1863
        %v2368 = vunpack.c.l.b16 %v1864
        %v2369 = vunpack.c.l.b16 %v1865
        %v2370 = vunpack.c.h.b16 %v1865
        %v2371 = vunpack.c.l.b16 %v1866
        %v2372 = vunpack.c.h.b16 %v1866
        %v2373 = vunpack.c.l.b16 %v1867
        %v2374 = vunpack.c.h.b16 %v1867
        %v2375 = vunpack.c.l.b16 %v1868
        %v2376 = vunpack.c.h.b16 %v1868
        %v2377 = vunpack.c.l.b16 %v1869
        %v2378 = vunpack.c.l.b16 %v1870
        %v2379 = vunpack.c.h.b16 %v1870
        %v2380 = vunpack.c.l.b16 %v1871
        %v2381 = vunpack.c.h.b16 %v1871
        %v2382 = vunpack.c.l.b16 %v1872
        %v2383 = vunpack.c.h.b16 %v1872
        %v2384 = vunpack.c.l.b16 %v1873
        %v2385 = vunpack.c.h.b16 %v1873
        %v2386 = vunpack.c.l.b16 %v1874
        %v2387 = vunpack.c.l.b16 %v1875
        %v2388 = vunpack.c.h.b16 %v1875
        %v2389 = vunpack.c.l.b16 %v1876
        %v2390 = vunpack.c.h.b16 %v1876
        %v2391 = vunpack.c.l.b16 %v1877
        %v2392 = vunpack.c.h.b16 %v1877
        %v2393 = vunpack.c.l.b16 %v1878
        %v2394 = vunpack.c.h.b16 %v1878
        %v2395 = vunpack.c.l.b16 %v1879
        %v2396 = vunpack.c.l.b16 %v1880
        %v2397 = vunpack.c.h.b16 %v1880
        %v2398 = vunpack.c.l.b16 %v1881
        %v2399 = vunpack.c.h.b16 %v1881
        %v2400 = vunpack.c.l.b16 %v1882
        %v2401 = vunpack.c.h.b16 %v1882
        %v2402 = vunpack.c.l.b16 %v1883
        %v2403 = vunpack.c.h.b16 %v1883
        %v2404 = vunpack.c.l.b16 %v1884
        %v2405 = vunpack.c.l.b16 %v1885
        %v2406 = vunpack.c.h.b16 %v1885
        %v2407 = vunpack.c.l.b16 %v1886
        %v2408 = vunpack.c.h.b16 %v1886
        %v2409 = vunpack.c.l.b16 %v1887
        %v2410 = vunpack.c.h.b16 %v1887
        %v2411 = vunpack.c.l.b16 %v1888
        %v2412 = vunpack.c.h.b16 %v1888
        %v2413 = vunpack.c.l.b16 %v1889
        %v2414 = vunpack.c.l.b16 %v1890
        %v2415 = vunpack.c.h.b16 %v1890
        %v2416 = vunpack.c.l.b16 %v1891
        %v2417 = vunpack.c.h.b16 %v1891
        %v2418 = vunpack.c.l.b16 %v1892
        %v2419 = vunpack.c.h.b16 %v1892
        %v2420 = vunpack.c.l.b16 %v1893
        %v2421 = vunpack.c.h.b16 %v1893
        %v2422 = vunpack.c.l.b16 %v1894
        %v2423 = vunpack.c.l.b16 %v1895
        %v2424 = vunpack.c.h.b16 %v1895
        %v2425 = vunpack.c.l.b16 %v1896
        %v2426 = vunpack.c.h.b16 %v1896
        %v2427 = vunpack.c.l.b16 %v1897
        %v2428 = vunpack.c.h.b16 %v1897
        %v2429 = vunpack.c.l.b16 %v1898
        %v2430 = vunpack.c.h.b16 %v1898
        %v2431 = vunpack.c.l.b16 %v1899
        %v2432 = vunpack.c.l.b16 %v1900
        %v2433 = vunpack.c.h.b16 %v1900
        %v2434 = vunpack.c.l.b16 %v1901
        %v2435 = vunpack.c.h.b16 %v1901
        %v2436 = vunpack.c.l.b16 %v1902
        %v2437 = vunpack.c.h.b16 %v1902
        %v2438 = vunpack.c.l.b16 %v1903
        %v2439 = vunpack.c.h.b16 %v1903
        %v2440 = vunpack.c.l.b16 %v1904
        %v2441 = vunpack.c.l.b16 %v1905
        %v2442 = vunpack.c.h.b16 %v1905
        %v2443 = vunpack.c.l.b16 %v1906
        %v2444 = vunpack.c.h.b16 %v1906
        %v2445 = vunpack.c.l.b16 %v1907
        %v2446 = vunpack.c.h.b16 %v1907
        %v2447 = vunpack.c.l.b16 %v1908
        %v2448 = vunpack.c.h.b16 %v1908
        %v2449 = vunpack.c.l.b16 %v1909
        %v2450 = vunpack.c.l.b16 %v1910
        %v2451 = vunpack.c.h.b16 %v1910
        %v2452 = vunpack.c.l.b16 %v1911
        %v2453 = vunpack.c.h.b16 %v1911
        %v2454 = vunpack.c.l.b16 %v1912
        %v2455 = vunpack.c.h.b16 %v1912
        %v2456 = vunpack.c.l.b16 %v1913
        %v2457 = vunpack.c.h.b16 %v1913
        %v2458 = vunpack.c.l.b16 %v1914
        %v2459 = vunpack.c.l.b16 %v1915
        %v2460 = vunpack.c.h.b16 %v1915
        %v2461 = vunpack.c.l.b16 %v1916
        %v2462 = vunpack.c.h.b16 %v1916
        %v2463 = vunpack.c.l.b16 %v1917
        %v2464 = vunpack.c.h.b16 %v1917
        %v2465 = vunpack.c.l.b16 %v1918
        %v2466 = vunpack.c.h.b16 %v1918
        %v2467 = vunpack.c.l.b16 %v1919
        %v2468 = vunpack.c.l.b16 %v1920
        %v2469 = vunpack.c.h.b16 %v1920
        %v2470 = vunpack.c.l.b16 %v1921
        %v2471 = vunpack.c.h.b16 %v1921
        %v2472 = vunpack.c.l.b16 %v1922
        %v2473 = vunpack.c.h.b16 %v1922
        %v2474 = vunpack.c.l.b16 %v1923
        %v2475 = vunpack.c.h.b16 %v1923
        %v2476 = vunpack.c.l.b16 %v1924
        %v2477 = vunpack.c.l.b16 %v1925
        %v2478 = vunpack.c.h.b16 %v1925
        %v2479 = vunpack.c.l.b16 %v1926
        %v2480 = vunpack.c.h.b16 %v1926
        %v2481 = vunpack.c.l.b16 %v1927
        %v2482 = vunpack.c.h.b16 %v1927
        %v2483 = vunpack.c.l.b16 %v1928
        %v2484 = vunpack.c.h.b16 %v1928
        %v2485 = vunpack.c.l.b16 %v1929
        %v2486 = vunpack.c.l.b16 %v1930
        %v2487 = vunpack.c.h.b16 %v1930
        %v2488 = vunpack.c.l.b16 %v1931
        %v2489 = vunpack.c.h.b16 %v1931
        %v2490 = vunpack.c.l.b16 %v1932
        %v2491 = vunpack.c.h.b16 %v1932
        %v2492 = vunpack.c.l.b16 %v1933
        %v2493 = vunpack.c.h.b16 %v1933
        %v2494 = vunpack.c.l.b16 %v1934
        %v2495 = vunpack.c.l.b16 %v1935
        %v2496 = vunpack.c.h.b16 %v1935
        %v2497 = vunpack.c.l.b16 %v1936
        %v2498 = vunpack.c.h.b16 %v1936
        %v2499 = vunpack.c.l.b16 %v1937
        %v2500 = vunpack.c.h.b16 %v1937
        %v2501 = vunpack.c.l.b16 %v1938
        %v2502 = vunpack.c.h.b16 %v1938
        %v2503 = vunpack.c.l.b16 %v1939
        %v2504 = vunpack.c.l.b16 %v1940
        %v2505 = vunpack.c.h.b16 %v1940
        %v2506 = vunpack.c.l.b16 %v1941
        %v2507 = vunpack.c.h.b16 %v1941
        %v2508 = vunpack.c.l.b16 %v1942
        %v2509 = vunpack.c.h.b16 %v1942
        %v2510 = vunpack.c.l.b16 %v1943
        %v2511 = vunpack.c.h.b16 %v1943
        %v2512 = vunpack.c.l.b16 %v1944
        %v2513 = vunpack.c.l.b16 %v1945
        %v2514 = vunpack.c.h.b16 %v1945
        %v2515 = vunpack.c.l.b16 %v1946
        %v2516 = vunpack.c.h.b16 %v1946
        %v2517 = vunpack.c.l.b16 %v1947
        %v2518 = vunpack.c.h.b16 %v1947
        %v2519 = vunpack.c.l.b16 %v1948
        %v2520 = vunpack.c.h.b16 %v1948
        %v2521 = vunpack.c.l.b16 %v1949
        %v2522 = vunpack.c.l.b16 %v1950
        %v2523 = vunpack.c.h.b16 %v1950
        %v2524 = vunpack.c.l.b16 %v1951
        %v2525 = vunpack.c.h.b16 %v1951
        %v2526 = vunpack.c.l.b16 %v1952
        %v2527 = vunpack.c.h.b16 %v1952
        %v2528 = vunpack.c.l.b16 %v1953
        %v2529 = vunpack.c.h.b16 %v1953
        %v2530 = vunpack.c.l.b16 %v1954
        %v2531 = vunpack.c.l.b16 %v1955
        %v2532 = vunpack.c.h.b16 %v1955
        %v2533 = vunpack.c.l.b16 %v1956
        %v2534 = vunpack.c.h.b16 %v1956
        %v2535 = vunpack.c.l.b16 %v1957
        %v2536 = vunpack.c.h.b16 %v1957
        %v2537 = vunpack.c.l.b16 %v1958
        %v2538 = vunpack.c.h.b16 %v1958
        %v2539 = vunpack.c.l.b16 %v1959
        %v2540 = vunpack.c.l.b16 %v1960
        %v2541 = vunpack.c.h.b16 %v1960
        %v2542 = vunpack.c.l.b16 %v1961
        %v2543 = vunpack.c.h.b16 %v1961
        %v2544 = vunpack.c.l.b16 %v1962
        %v2545 = vunpack.c.h.b16 %v1962
        %v2546 = vunpack.c.l.b16 %v1963
        %v2547 = vunpack.c.h.b16 %v1963
        %v2548 = vunpack.c.l.b16 %v1964
        %v2549 = vunpack.c.l.b16 %v1965
        %v2550 = vunpack.c.h.b16 %v1965
        %v2551 = vunpack.c.l.b16 %v1966
        %v2552 = vunpack.c.h.b16 %v1966
        %v2553 = vunpack.c.l.b16 %v1967
        %v2554 = vunpack.c.h.b16 %v1967
        %v2555 = vunpack.c.l.b16 %v1968
        %v2556 = vunpack.c.h.b16 %v1968
        %v2557 = vunpack.c.l.b16 %v1969
        %v2558 = vunpack.c.l.b16 %v1970
        %v2559 = vunpack.c.h.b16 %v1970
        %v2560 = vunpack.c.l.b16 %v1971
        %v2561 = vunpack.c.h.b16 %v1971
        %v2562 = vunpack.c.l.b16 %v1972
        %v2563 = vunpack.c.h.b16 %v1972
        %v2564 = vunpack.c.l.b16 %v1973
        %v2565 = vunpack.c.h.b16 %v1973
        %v2566 = vunpack.c.l.b16 %v1974
        %v2567 = vunpack.c.l.b16 %v1975
        %v2568 = vunpack.c.h.b16 %v1975
        %v2569 = vunpack.c.l.b16 %v1976
        %v2570 = vunpack.c.h.b16 %v1976
        %v2571 = vunpack.c.l.b16 %v1977
        %v2572 = vunpack.c.h.b16 %v1977
        %v2573 = vunpack.c.l.b16 %v1978
        %v2574 = vunpack.c.h.b16 %v1978
        %v2575 = vunpack.c.l.b16 %v1979
        %v2576 = vpack.c.b16 %v2297, %v2288
        %v2577 = vpack.c.b16 %v2298, %v2289
        %v2578 = vpack.c.b16 %v2299, %v2290
        %v2579 = vpack.c.b16 %v2300, %v2291
        %v2580 = vpack.c.b16 %v2301, %v2292
        %v2581 = vpack.c.b16 %v2302, %v2293
        %v2582 = vpack.c.b16 %v2303, %v2294
        %v2583 = vpack.c.b16 %v2304, %v2295
        %v2584 = vpack.c.b16 %v2305, %v2296
        %v2585 = vpack.c.b16 %v2315, %v2306
        %v2586 = vpack.c.b16 %v2316, %v2307
        %v2587 = vpack.c.b16 %v2317, %v2308
        %v2588 = vpack.c.b16 %v2318, %v2309
        %v2589 = vpack.c.b16 %v2319, %v2310
        %v2590 = vpack.c.b16 %v2320, %v2311
        %v2591 = vpack.c.b16 %v2321, %v2312
        %v2592 = vpack.c.b16 %v2322, %v2313
        %v2593 = vpack.c.b16 %v2323, %v2314
        %v2594 = vpack.c.b16 %v2333, %v2324
        %v2595 = vpack.c.b16 %v2334, %v2325
        %v2596 = vpack.c.b16 %v2335, %v2326
        %v2597 = vpack.c.b16 %v2336, %v2327
        %v2598 = vpack.c.b16 %v2337, %v2328
        %v2599 = vpack.c.b16 %v2338, %v2329
        %v2600 = vpack.c.b16 %v2339, %v2330
        %v2601 = vpack.c.b16 %v2340, %v2331
        %v2602 = vpack.c.b16 %v2341, %v2332
        %v2603 = vpack.c.b16 %v2351, %v2342
        %v2604 = vpack.c.b16 %v2352, %v2343
        %v2605 = vpack.c.b16 %v2353, %v2344
        %v2606 = vpack.c.b16 %v2354, %v2345
        %v2607 = vpack.c.b16 %v2355, %v2346
        %v2608 = vpack.c.b16 %v2356, %v2347
        %v2609 = vpack.c.b16 %v2357, %v2348
        %v2610 = vpack.c.b16 %v2358, %v2349
        %v2611 = vpack.c.b16 %v2359, %v2350
        %v2612 = vpack.c.b16 %v2369, %v2360
        %v2613 = vpack.c.b16 %v2370, %v2361
        %v2614 = vpack.c.b16 %v2371, %v2362
        %v2615 = vpack.c.b16 %v2372, %v2363
        %v2616 = vpack.c.b16 %v2373, %v2364
        %v2617 = vpack.c.b16 %v2374, %v2365
        %v2618 = vpack.c.b16 %v2375, %v2366
        %v2619 = vpack.c.b16 %v2376, %v2367
        %v2620 = vpack.c.b16 %v2377, %v2368
        %v2621 = vpack.c.b16 %v2387, %v2378
        %v2622 = vpack.c.b16 %v2388, %v2379
        %v2623 = vpack.c.b16 %v2389, %v2380
        %v2624 = vpack.c.b16 %v2390, %v2381
        %v2625 = vpack.c.b16 %v2391, %v2382
        %v2626 = vpack.c.b16 %v2392, %v2383
        %v2627 = vpack.c.b16 %v2393, %v2384
        %v2628 = vpack.c.b16 %v2394, %v2385
        %v2629 = vpack.c.b16 %v2395, %v2386
        %v2630 = vpack.c.b16 %v2405, %v2396
        %v2631 = vpack.c.b16 %v2406, %v2397
        %v2632 = vpack.c.b16 %v2407, %v2398
        %v2633 = vpack.c.b16 %v2408, %v2399
        %v2634 = vpack.c.b16 %v2409, %v2400
        %v2635 = vpack.c.b16 %v2410, %v2401
        %v2636 = vpack.c.b16 %v2411, %v2402
        %v2637 = vpack.c.b16 %v2412, %v2403
        %v2638 = vpack.c.b16 %v2413, %v2404
        %v2639 = vpack.c.b16 %v2423, %v2414
        %v2640 = vpack.c.b16 %v2424, %v2415
        %v2641 = vpack.c.b16 %v2425, %v2416
        %v2642 = vpack.c.b16 %v2426, %v2417
        %v2643 = vpack.c.b16 %v2427, %v2418
        %v2644 = vpack.c.b16 %v2428, %v2419
        %v2645 = vpack.c.b16 %v2429, %v2420
        %v2646 = vpack.c.b16 %v2430, %v2421
        %v2647 = vpack.c.b16 %v2431, %v2422
        %v2648 = vpack.c.b16 %v2441, %v2432
        %v2649 = vpack.c.b16 %v2442, %v2433
        %v2650 = vpack.c.b16 %v2443, %v2434
        %v2651 = vpack.c.b16 %v2444, %v2435
        %v2652 = vpack.c.b16 %v2445, %v2436
        %v2653 = vpack.c.b16 %v2446, %v2437
        %v2654 = vpack.c.b16 %v2447, %v2438
        %v2655 = vpack.c.b16 %v2448, %v2439
        %v2656 = vpack.c.b16 %v2449, %v2440
        %v2657 = vpack.c.b16 %v2459, %v2450
        %v2658 = vpack.c.b16 %v2460, %v2451
        %v2659 = vpack.c.b16 %v2461, %v2452
        %v2660 = vpack.c.b16 %v2462, %v2453
        %v2661 = vpack.c.b16 %v2463, %v2454
        %v2662 = vpack.c.b16 %v2464, %v2455
        %v2663 = vpack.c.b16 %v2465, %v2456
        %v2664 = vpack.c.b16 %v2466, %v2457
        %v2665 = vpack.c.b16 %v2467, %v2458
        %v2666 = vpack.c.b16 %v2477, %v2468
        %v2667 = vpack.c.b16 %v2478, %v2469
        %v2668 = vpack.c.b16 %v2479, %v2470
        %v2669 = vpack.c.b16 %v2480, %v2471
        %v2670 = vpack.c.b16 %v2481, %v2472
        %v2671 = vpack.c.b16 %v2482, %v2473
        %v2672 = vpack.c.b16 %v2483, %v2474
        %v2673 = vpack.c.b16 %v2484, %v2475
        %v2674 = vpack.c.b16 %v2485, %v2476
        %v2675 = vpack.c.b16 %v2495, %v2486
        %v2676 = vpack.c.b16 %v2496, %v2487
        %v2677 = vpack.c.b16 %v2497, %v2488
        %v2678 = vpack.c.b16 %v2498, %v2489
        %v2679 = vpack.c.b16 %v2499, %v2490
        %v2680 = vpack.c.b16 %v2500, %v2491
        %v2681 = vpack.c.b16 %v2501, %v2492
        %v2682 = vpack.c.b16 %v2502, %v2493
        %v2683 = vpack.c.b16 %v2503, %v2494
        %v2684 = vpack.c.b16 %v2513, %v2504
        %v2685 = vpack.c.b16 %v2514, %v2505
        %v2686 = vpack.c.b16 %v2515, %v2506
        %v2687 = vpack.c.b16 %v2516, %v2507
        %v2688 = vpack.c.b16 %v2517, %v2508
        %v2689 = vpack.c.b16 %v2518, %v2509
        %v2690 = vpack.c.b16 %v2519, %v2510
        %v2691 = vpack.c.b16 %v2520, %v2511
        %v2692 = vpack.c.b16 %v2521, %v2512
        %v2693 = vpack.c.b16 %v2531, %v2522
        %v2694 = vpack.c.b16 %v2532, %v2523
        %v2695 = vpack.c.b16 %v2533, %v2524
        %v2696 = vpack.c.b16 %v2534, %v2525
        %v2697 = vpack.c.b16 %v2535, %v2526
        %v2698 = vpack.c.b16 %v2536, %v2527
        %v2699 = vpack.c.b16 %v2537, %v2528
        %v2700 = vpack.c.b16 %v2538, %v2529
        %v2701 = vpack.c.b16 %v2539, %v2530
        %v2702 = vpack.c.b16 %v2549, %v2540
        %v2703 = vpack.c.b16 %v2550, %v2541
        %v2704 = vpack.c.b16 %v2551, %v2542
        %v2705 = vpack.c.b16 %v2552, %v2543
        %v2706 = vpack.c.b16 %v2553, %v2544
        %v2707 = vpack.c.b16 %v2554, %v2545
        %v2708 = vpack.c.b16 %v2555, %v2546
        %v2709 = vpack.c.b16 %v2556, %v2547
        %v2710 = vpack.c.b16 %v2557, %v2548
        %v2711 = vpack.c.b16 %v2567, %v2558
        %v2712 = vpack.c.b16 %v2568, %v2559
        %v2713 = vpack.c.b16 %v2569, %v2560
        %v2714 = vpack.c.b16 %v2570, %v2561
        %v2715 = vpack.c.b16 %v2571, %v2562
        %v2716 = vpack.c.b16 %v2572, %v2563
        %v2717 = vpack.c.b16 %v2573, %v2564
        %v2718 = vpack.c.b16 %v2574, %v2565
        %v2719 = vpack.c.b16 %v2575, %v2566
        %v3008 = vunpack.c.l.b16 %v1980
        %v3009 = vunpack.c.l.b16 %v1981
        %v3010 = vunpack.c.l.b16 %v1982
        %v3011 = vunpack.c.l.b16 %v1983
        %v3012 = vunpack.c.l.b16 %v1984
        %v3013 = vunpack.c.l.b16 %v1985
        %v3014 = vunpack.c.l.b16 %v1986
        %v3015 = vunpack.c.l.b16 %v1987
        %v3016 = vunpack.c.l.b16 %v1988
        %v3017 = vunpack.c.l.b16 %v1989
        %v3018 = vunpack.c.l.b16 %v1990
        %v3019 = vunpack.c.l.b16 %v1991
        %v3020 = vunpack.c.l.b16 %v1992
        %v3021 = vunpack.c.l.b16 %v1993
        %v3022 = vunpack.c.l.b16 %v1994
        %v3023 = vunpack.c.l.b16 %v1995
        %v3024 = vunpack.c.l.b16 %v1996
        %v3025 = vunpack.c.l.b16 %v1997
        %v3026 = vunpack.c.l.b16 %v1998
        %v3027 = vunpack.c.l.b16 %v1999
        %v3028 = vunpack.c.l.b16 %v2000
        %v3029 = vunpack.c.l.b16 %v2001
        %v3030 = vunpack.c.l.b16 %v2002
        %v3031 = vunpack.c.l.b16 %v2003
        %v3032 = vunpack.c.l.b16 %v2004
        %v3033 = vunpack.c.l.b16 %v2005
        %v3034 = vunpack.c.l.b16 %v2006
        %v3035 = vunpack.c.l.b16 %v2007
        %v3036 = vunpack.c.l.b16 %v2008
        %v3037 = vunpack.c.l.b16 %v2009
        %v3038 = vunpack.c.l.b16 %v2010
        %v3039 = vunpack.c.l.b16 %v2011
        %v3040 = vunpack.c.l.b16 %v2012
        %v3041 = vunpack.c.l.b16 %v2013
        %v3042 = vunpack.c.l.b16 %v2014
        %v3043 = vunpack.c.l.b16 %v2015
        %v3044 = vunpack.c.l.b16 %v2016
        %v3045 = vunpack.c.l.b16 %v2017
        %v3046 = vunpack.c.l.b16 %v2018
        %v3047 = vunpack.c.l.b16 %v2019
        %v3048 = vunpack.c.l.b16 %v2020
        %v3049 = vunpack.c.l.b16 %v2021
        %v3050 = vunpack.c.l.b16 %v2022
        %v3051 = vunpack.c.l.b16 %v2023
        %v3052 = vunpack.c.l.b16 %v2024
        %v3053 = vunpack.c.l.b16 %v2025
        %v3054 = vunpack.c.l.b16 %v2026
        %v3055 = vunpack.c.l.b16 %v2027
        %v3056 = vunpack.c.l.b16 %v2028
        %v3057 = vunpack.c.l.b16 %v2029
        %v3058 = vunpack.c.l.b16 %v2030
        %v3059 = vunpack.c.l.b16 %v2031
        %v3060 = vunpack.c.l.b16 %v2032
        %v3061 = vunpack.c.l.b16 %v2033
        %v3062 = vunpack.c.l.b16 %v2034
        %v3063 = vunpack.c.l.b16 %v2035
        %v3064 = vunpack.c.l.b16 %v2036
        %v3065 = vunpack.c.l.b16 %v2037
        %v3066 = vunpack.c.l.b16 %v2038
        %v3067 = vunpack.c.l.b16 %v2039
        %v3068 = vunpack.c.l.b16 %v2040
        %v3069 = vunpack.c.l.b16 %v2041
        %v3070 = vunpack.c.l.b16 %v2042
        %v3071 = vunpack.c.l.b16 %v2043
        %v3072 = vunpack.c.l.b16 %v2044
        %v3073 = vunpack.c.l.b16 %v2045
        %v3074 = vunpack.c.l.b16 %v2046
        %v3075 = vunpack.c.l.b16 %v2047
        %v3076 = vunpack.c.l.b16 %v2048
        %v3077 = vunpack.c.l.b16 %v2049
        %v3078 = vunpack.c.l.b16 %v2050
        %v3079 = vunpack.c.l.b16 %v2051
        %v3080 = vunpack.c.l.b16 %v2052
        %v3081 = vunpack.c.l.b16 %v2053
        %v3082 = vunpack.c.l.b16 %v2054
        %v3083 = vunpack.c.l.b16 %v2055
        %v3084 = vunpack.c.l.b16 %v2056
        %v3085 = vunpack.c.l.b16 %v2057
        %v3086 = vunpack.c.l.b16 %v2058
        %v3087 = vunpack.c.l.b16 %v2059
        %v3088 = vunpack.c.l.b16 %v2060
        %v3089 = vunpack.c.l.b16 %v2061
        %v3090 = vunpack.c.l.b16 %v2062
        %v3091 = vunpack.c.l.b16 %v2063
        %v3092 = vunpack.c.l.b16 %v2064
        %v3093 = vunpack.c.l.b16 %v2065
        %v3094 = vunpack.c.l.b16 %v2066
        %v3095 = vunpack.c.l.b16 %v2067
        %v3096 = vunpack.c.l.b16 %v2068
        %v3097 = vunpack.c.l.b16 %v2069
        %v3098 = vunpack.c.l.b16 %v2070
        %v3099 = vunpack.c.l.b16 %v2071
        %v3100 = vunpack.c.l.b16 %v2072
        %v3101 = vunpack.c.l.b16 %v2073
        %v3102 = vunpack.c.l.b16 %v2074
        %v3103 = vunpack.c.l.b16 %v2075
        %v3104 = vunpack.c.l.b16 %v2076
        %v3105 = vunpack.c.l.b16 %v2077
        %v3106 = vunpack.c.l.b16 %v2078
        %v3107 = vunpack.c.l.b16 %v2079
        %v3108 = vunpack.c.l.b16 %v2080
        %v3109 = vunpack.c.l.b16 %v2081
        %v3110 = vunpack.c.l.b16 %v2082
        %v3111 = vunpack.c.l.b16 %v2083
        %v3112 = vunpack.c.l.b16 %v2084
        %v3113 = vunpack.c.l.b16 %v2085
        %v3114 = vunpack.c.l.b16 %v2086
        %v3115 = vunpack.c.l.b16 %v2087
        %v3116 = vunpack.c.l.b16 %v2088
        %v3117 = vunpack.c.l.b16 %v2089
        %v3118 = vunpack.c.l.b16 %v2090
        %v3119 = vunpack.c.l.b16 %v2091
        %v3120 = vunpack.c.l.b16 %v2092
        %v3121 = vunpack.c.l.b16 %v2093
        %v3122 = vunpack.c.l.b16 %v2094
        %v3123 = vunpack.c.l.b16 %v2095
        %v3124 = vunpack.c.l.b16 %v2096
        %v3125 = vunpack.c.l.b16 %v2097
        %v3126 = vunpack.c.l.b16 %v2098
        %v3127 = vunpack.c.l.b16 %v2099
        %v3128 = vunpack.c.l.b16 %v2100
        %v3129 = vunpack.c.l.b16 %v2101
        %v3130 = vunpack.c.l.b16 %v2102
        %v3131 = vunpack.c.l.b16 %v2103
        %v3132 = vunpack.c.l.b16 %v2104
        %v3133 = vunpack.c.l.b16 %v2105
        %v3134 = vunpack.c.l.b16 %v2106
        %v3135 = vunpack.c.l.b16 %v2107
        %v3136 = vunpack.c.l.b16 %v2108
        %v3137 = vunpack.c.l.b16 %v2109
        %v3138 = vunpack.c.l.b16 %v2110
        %v3139 = vunpack.c.l.b16 %v2111
        %v3140 = vunpack.c.l.b16 %v2112
        %v3141 = vunpack.c.l.b16 %v2113
        %v3142 = vunpack.c.l.b16 %v2114
        %v3143 = vunpack.c.l.b16 %v2115
        %v3144 = vunpack.c.l.b16 %v2116
        %v3145 = vunpack.c.l.b16 %v2117
        %v3146 = vunpack.c.l.b16 %v2118
        %v3147 = vunpack.c.l.b16 %v2119
        %v3148 = vunpack.c.l.b16 %v2120
        %v3149 = vunpack.c.l.b16 %v2121
        %v3150 = vunpack.c.l.b16 %v2122
        %v3151 = vunpack.c.l.b16 %v2123
        %v3152 = vpack.c.b16 %v3009, %v3008
        %v3153 = vpack.c.b16 %v3011, %v3010
        %v3154 = vpack.c.b16 %v3013, %v3012
        %v3155 = vpack.c.b16 %v3015, %v3014
        %v3156 = vpack.c.b16 %v3017, %v3016
        %v3157 = vpack.c.b16 %v3019, %v3018
        %v3158 = vpack.c.b16 %v3021, %v3020
        %v3159 = vpack.c.b16 %v3023, %v3022
        %v3160 = vpack.c.b16 %v3025, %v3024
        %v3161 = vpack.c.b16 %v3027, %v3026
        %v3162 = vpack.c.b16 %v3029, %v3028
        %v3163 = vpack.c.b16 %v3031, %v3030
        %v3164 = vpack.c.b16 %v3033, %v3032
        %v3165 = vpack.c.b16 %v3035, %v3034
        %v3166 = vpack.c.b16 %v3037, %v3036
        %v3167 = vpack.c.b16 %v3039, %v3038
        %v3168 = vpack.c.b16 %v3041, %v3040
        %v3169 = vpack.c.b16 %v3043, %v3042
        %v3170 = vpack.c.b16 %v3045, %v3044
        %v3171 = vpack.c.b16 %v3047, %v3046
        %v3172 = vpack.c.b16 %v3049, %v3048
        %v3173 = vpack.c.b16 %v3051, %v3050
        %v3174 = vpack.c.b16 %v3053, %v3052
        %v3175 = vpack.c.b16 %v3055, %v3054
        %v3176 = vpack.c.b16 %v3057, %v3056
        %v3177 = vpack.c.b16 %v3059, %v3058
        %v3178 = vpack.c.b16 %v3061, %v3060
        %v3179 = vpack.c.b16 %v3063, %v3062
        %v3180 = vpack.c.b16 %v3065, %v3064
        %v3181 = vpack.c.b16 %v3067, %v3066
        %v3182 = vpack.c.b16 %v3069, %v3068
        %v3183 = vpack.c.b16 %v3071, %v3070
        %v3184 = vpack.c.b16 %v3073, %v3072
        %v3185 = vpack.c.b16 %v3075, %v3074
        %v3186 = vpack.c.b16 %v3077, %v3076
        %v3187 = vpack.c.b16 %v3079, %v3078
        %v3188 = vpack.c.b16 %v3081, %v3080
        %v3189 = vpack.c.b16 %v3083, %v3082
        %v3190 = vpack.c.b16 %v3085, %v3084
        %v3191 = vpack.c.b16 %v3087, %v3086
        %v3192 = vpack.c.b16 %v3089, %v3088
        %v3193 = vpack.c.b16 %v3091, %v3090
        %v3194 = vpack.c.b16 %v3093, %v3092
        %v3195 = vpack.c.b16 %v3095, %v3094
        %v3196 = vpack.c.b16 %v3097, %v3096
        %v3197 = vpack.c.b16 %v3099, %v3098
        %v3198 = vpack.c.b16 %v3101, %v3100
        %v3199 = vpack.c.b16 %v3103, %v3102
        %v3200 = vpack.c.b16 %v3105, %v3104
        %v3201 = vpack.c.b16 %v3107, %v3106
        %v3202 = vpack.c.b16 %v3109, %v3108
        %v3203 = vpack.c.b16 %v3111, %v3110
        %v3204 = vpack.c.b16 %v3113, %v3112
        %v3205 = vpack.c.b16 %v3115, %v3114
        %v3206 = vpack.c.b16 %v3117, %v3116
        %v3207 = vpack.c.b16 %v3119, %v3118
        %v3208 = vpack.c.b16 %v3121, %v3120
        %v3209 = vpack.c.b16 %v3123, %v3122
        %v3210 = vpack.c.b16 %v3125, %v3124
        %v3211 = vpack.c.b16 %v3127, %v3126
        %v3212 = vpack.c.b16 %v3129, %v3128
        %v3213 = vpack.c.b16 %v3131, %v3130
        %v3214 = vpack.c.b16 %v3133, %v3132
        %v3215 = vpack.c.b16 %v3135, %v3134
        %v3216 = vpack.c.b16 %v3137, %v3136
        %v3217 = vpack.c.b16 %v3139, %v3138
        %v3218 = vpack.c.b16 %v3141, %v3140
        %v3219 = vpack.c.b16 %v3143, %v3142
        %v3220 = vpack.c.b16 %v3145, %v3144
        %v3221 = vpack.c.b16 %v3147, %v3146
        %v3222 = vpack.c.b16 %v3149, %v3148
        %v3223 = vpack.c.b16 %v3151, %v3150
        %3296 = vmatpush.bf16.msra.mxu0 %v3159
        %3297 = vmatpush.bf16.msra.mxu0 %v3158
        %3298 = vmatpush.bf16.msra.mxu0 %v3157
        %3299 = vmatpush.bf16.msra.mxu0 %v3156
        %3300 = vmatpush.bf16.msra.mxu0 %v3155
        %3301 = vmatpush.bf16.msra.mxu0 %v3154
        %3302 = vmatpush.bf16.msra.mxu0 %v3153
        %3303 = vmatpush.bf16.msra.mxu0 %v3152
        %3304 = vmatmul.bf16.gmra.mxu0 %v2576
        %v3305 = vpop.f32.mrf.mxu0
        %v3306 = vadd.f32 %v2126, %v3305
        %v3307 = vpop.f32.mrf.mxu0
        %v3308 = vadd.f32 %v2126, %v3307
        %3309 = vmatmul.bf16.gmra.mxu0 %v2585
        %v3310 = vpop.f32.mrf.mxu0
        %v3311 = vadd.f32 %v2126, %v3310
        %v3312 = vpop.f32.mrf.mxu0
        %v3313 = vadd.f32 %v2126, %v3312
        %3314 = vmatmul.bf16.gmra.mxu0 %v2594
        %v3315 = vpop.f32.mrf.mxu0
        %v3316 = vadd.f32 %v2126, %v3315
        %v3317 = vpop.f32.mrf.mxu0
        %v3318 = vadd.f32 %v2126, %v3317
        %3319 = vmatmul.bf16.gmra.mxu0 %v2603
        %v3320 = vpop.f32.mrf.mxu0
        %v3321 = vadd.f32 %v2126, %v3320
        %v3322 = vpop.f32.mrf.mxu0
        %v3323 = vadd.f32 %v2126, %v3322
        %3324 = vmatmul.bf16.gmra.mxu0 %v2612
        %v3325 = vpop.f32.mrf.mxu0
        %v3326 = vadd.f32 %v2126, %v3325
        %v3327 = vpop.f32.mrf.mxu0
        %v3328 = vadd.f32 %v2126, %v3327
        %3329 = vmatmul.bf16.gmra.mxu0 %v2621
        %v3330 = vpop.f32.mrf.mxu0
        %v3331 = vadd.f32 %v2126, %v3330
        %v3332 = vpop.f32.mrf.mxu0
        %v3333 = vadd.f32 %v2126, %v3332
        %3334 = vmatmul.bf16.gmra.mxu0 %v2630
        %v3335 = vpop.f32.mrf.mxu0
        %v3336 = vadd.f32 %v2126, %v3335
        %v3337 = vpop.f32.mrf.mxu0
        %v3338 = vadd.f32 %v2126, %v3337
        %3339 = vmatmul.bf16.gmra.mxu0 %v2639
        %v3340 = vpop.f32.mrf.mxu0
        %v3341 = vadd.f32 %v2126, %v3340
        %v3342 = vpop.f32.mrf.mxu0
        %v3343 = vadd.f32 %v2126, %v3342
        %3344 = vmatmul.bf16.gmra.mxu0 %v2648
        %v3345 = vpop.f32.mrf.mxu0
        %v3346 = vadd.f32 %v2126, %v3345
        %v3347 = vpop.f32.mrf.mxu0
        %v3348 = vadd.f32 %v2126, %v3347
        %3349 = vmatmul.bf16.gmra.mxu0 %v2657
        %v3350 = vpop.f32.mrf.mxu0
        %v3351 = vadd.f32 %v2126, %v3350
        %v3352 = vpop.f32.mrf.mxu0
        %v3353 = vadd.f32 %v2126, %v3352
        %3354 = vmatmul.bf16.gmra.mxu0 %v2666
        %v3355 = vpop.f32.mrf.mxu0
        %v3356 = vadd.f32 %v2126, %v3355
        %v3357 = vpop.f32.mrf.mxu0
        %v3358 = vadd.f32 %v2126, %v3357
        %3359 = vmatmul.bf16.gmra.mxu0 %v2675
        %v3360 = vpop.f32.mrf.mxu0
        %v3361 = vadd.f32 %v2126, %v3360
        %v3362 = vpop.f32.mrf.mxu0
        %v3363 = vadd.f32 %v2126, %v3362
        %3364 = vmatmul.bf16.gmra.mxu0 %v2684
        %v3365 = vpop.f32.mrf.mxu0
        %v3366 = vadd.f32 %v2126, %v3365
        %v3367 = vpop.f32.mrf.mxu0
        %v3368 = vadd.f32 %v2126, %v3367
        %3369 = vmatmul.bf16.gmra.mxu0 %v2693
        %v3370 = vpop.f32.mrf.mxu0
        %v3371 = vadd.f32 %v2126, %v3370
        %v3372 = vpop.f32.mrf.mxu0
        %v3373 = vadd.f32 %v2126, %v3372
        %3374 = vmatmul.bf16.gmra.mxu0 %v2702
        %v3375 = vpop.f32.mrf.mxu0
        %v3376 = vadd.f32 %v2126, %v3375
        %v3377 = vpop.f32.mrf.mxu0
        %v3378 = vadd.f32 %v2126, %v3377
        %3379 = vmatmul.bf16.gmra.mxu0 %v2711
        %v3380 = vpop.f32.mrf.mxu0
        %v3381 = vadd.f32 %v2126, %v3380
        %v3382 = vpop.f32.mrf.mxu0
        %v3383 = vadd.f32 %v2126, %v3382
        %3384 = vdwg.mxu0
        %3385 = vmatpush.bf16.msra.mxu0 %v3167
        %3386 = vmatpush.bf16.msra.mxu0 %v3166
        %3387 = vmatpush.bf16.msra.mxu0 %v3165
        %3388 = vmatpush.bf16.msra.mxu0 %v3164
        %3389 = vmatpush.bf16.msra.mxu0 %v3163
        %3390 = vmatpush.bf16.msra.mxu0 %v3162
        %3391 = vmatpush.bf16.msra.mxu0 %v3161
        %3392 = vmatpush.bf16.msra.mxu0 %v3160
        %3393 = vmatmul.bf16.gmra.mxu0 %v2577
        %v3394 = vpop.f32.mrf.mxu0
        %v3395 = vadd.f32 %v3306, %v3394
        %v3396 = vpop.f32.mrf.mxu0
        %v3397 = vadd.f32 %v3308, %v3396
        %3398 = vmatmul.bf16.gmra.mxu0 %v2586
        %v3399 = vpop.f32.mrf.mxu0
        %v3400 = vadd.f32 %v3311, %v3399
        %v3401 = vpop.f32.mrf.mxu0
        %v3402 = vadd.f32 %v3313, %v3401
        %3403 = vmatmul.bf16.gmra.mxu0 %v2595
        %v3404 = vpop.f32.mrf.mxu0
        %v3405 = vadd.f32 %v3316, %v3404
        %v3406 = vpop.f32.mrf.mxu0
        %v3407 = vadd.f32 %v3318, %v3406
        %3408 = vmatmul.bf16.gmra.mxu0 %v2604
        %v3409 = vpop.f32.mrf.mxu0
        %v3410 = vadd.f32 %v3321, %v3409
        %v3411 = vpop.f32.mrf.mxu0
        %v3412 = vadd.f32 %v3323, %v3411
        %3413 = vmatmul.bf16.gmra.mxu0 %v2613
        %v3414 = vpop.f32.mrf.mxu0
        %v3415 = vadd.f32 %v3326, %v3414
        %v3416 = vpop.f32.mrf.mxu0
        %v3417 = vadd.f32 %v3328, %v3416
        %3418 = vmatmul.bf16.gmra.mxu0 %v2622
        %v3419 = vpop.f32.mrf.mxu0
        %v3420 = vadd.f32 %v3331, %v3419
        %v3421 = vpop.f32.mrf.mxu0
        %v3422 = vadd.f32 %v3333, %v3421
        %3423 = vmatmul.bf16.gmra.mxu0 %v2631
        %v3424 = vpop.f32.mrf.mxu0
        %v3425 = vadd.f32 %v3336, %v3424
        %v3426 = vpop.f32.mrf.mxu0
        %v3427 = vadd.f32 %v3338, %v3426
        %3428 = vmatmul.bf16.gmra.mxu0 %v2640
        %v3429 = vpop.f32.mrf.mxu0
        %v3430 = vadd.f32 %v3341, %v3429
        %v3431 = vpop.f32.mrf.mxu0
        %v3432 = vadd.f32 %v3343, %v3431
        %3433 = vmatmul.bf16.gmra.mxu0 %v2649
        %v3434 = vpop.f32.mrf.mxu0
        %v3435 = vadd.f32 %v3346, %v3434
        %v3436 = vpop.f32.mrf.mxu0
        %v3437 = vadd.f32 %v3348, %v3436
        %3438 = vmatmul.bf16.gmra.mxu0 %v2658
        %v3439 = vpop.f32.mrf.mxu0
        %v3440 = vadd.f32 %v3351, %v3439
        %v3441 = vpop.f32.mrf.mxu0
        %v3442 = vadd.f32 %v3353, %v3441
        %3443 = vmatmul.bf16.gmra.mxu0 %v2667
        %v3444 = vpop.f32.mrf.mxu0
        %v3445 = vadd.f32 %v3356, %v3444
        %v3446 = vpop.f32.mrf.mxu0
        %v3447 = vadd.f32 %v3358, %v3446
        %3448 = vmatmul.bf16.gmra.mxu0 %v2676
        %v3449 = vpop.f32.mrf.mxu0
        %v3450 = vadd.f32 %v3361, %v3449
        %v3451 = vpop.f32.mrf.mxu0
        %v3452 = vadd.f32 %v3363, %v3451
        %3453 = vmatmul.bf16.gmra.mxu0 %v2685
        %v3454 = vpop.f32.mrf.mxu0
        %v3455 = vadd.f32 %v3366, %v3454
        %v3456 = vpop.f32.mrf.mxu0
        %v3457 = vadd.f32 %v3368, %v3456
        %3458 = vmatmul.bf16.gmra.mxu0 %v2694
        %v3459 = vpop.f32.mrf.mxu0
        %v3460 = vadd.f32 %v3371, %v3459
        %v3461 = vpop.f32.mrf.mxu0
        %v3462 = vadd.f32 %v3373, %v3461
        %3463 = vmatmul.bf16.gmra.mxu0 %v2703
        %v3464 = vpop.f32.mrf.mxu0
        %v3465 = vadd.f32 %v3376, %v3464
        %v3466 = vpop.f32.mrf.mxu0
        %v3467 = vadd.f32 %v3378, %v3466
        %3468 = vmatmul.bf16.gmra.mxu0 %v2712
        %v3469 = vpop.f32.mrf.mxu0
        %v3470 = vadd.f32 %v3381, %v3469
        %v3471 = vpop.f32.mrf.mxu0
        %v3472 = vadd.f32 %v3383, %v3471
        %3473 = vdwg.mxu0
        %3474 = vmatpush.bf16.msra.mxu0 %v3175
        %3475 = vmatpush.bf16.msra.mxu0 %v3174
        %3476 = vmatpush.bf16.msra.mxu0 %v3173
        %3477 = vmatpush.bf16.msra.mxu0 %v3172
        %3478 = vmatpush.bf16.msra.mxu0 %v3171
        %3479 = vmatpush.bf16.msra.mxu0 %v3170
        %3480 = vmatpush.bf16.msra.mxu0 %v3169
        %3481 = vmatpush.bf16.msra.mxu0 %v3168
        %3482 = vmatmul.bf16.gmra.mxu0 %v2578
        %v3483 = vpop.f32.mrf.mxu0
        %v3484 = vadd.f32 %v3395, %v3483
        %v3485 = vpop.f32.mrf.mxu0
        %v3486 = vadd.f32 %v3397, %v3485
        %3487 = vmatmul.bf16.gmra.mxu0 %v2587
        %v3488 = vpop.f32.mrf.mxu0
        %v3489 = vadd.f32 %v3400, %v3488
        %v3490 = vpop.f32.mrf.mxu0
        %v3491 = vadd.f32 %v3402, %v3490
        %3492 = vmatmul.bf16.gmra.mxu0 %v2596
        %v3493 = vpop.f32.mrf.mxu0
        %v3494 = vadd.f32 %v3405, %v3493
        %v3495 = vpop.f32.mrf.mxu0
        %v3496 = vadd.f32 %v3407, %v3495
        %3497 = vmatmul.bf16.gmra.mxu0 %v2605
        %v3498 = vpop.f32.mrf.mxu0
        %v3499 = vadd.f32 %v3410, %v3498
        %v3500 = vpop.f32.mrf.mxu0
        %v3501 = vadd.f32 %v3412, %v3500
        %3502 = vmatmul.bf16.gmra.mxu0 %v2614
        %v3503 = vpop.f32.mrf.mxu0
        %v3504 = vadd.f32 %v3415, %v3503
        %v3505 = vpop.f32.mrf.mxu0
        %v3506 = vadd.f32 %v3417, %v3505
        %3507 = vmatmul.bf16.gmra.mxu0 %v2623
        %v3508 = vpop.f32.mrf.mxu0
        %v3509 = vadd.f32 %v3420, %v3508
        %v3510 = vpop.f32.mrf.mxu0
        %v3511 = vadd.f32 %v3422, %v3510
        %3512 = vmatmul.bf16.gmra.mxu0 %v2632
        %v3513 = vpop.f32.mrf.mxu0
        %v3514 = vadd.f32 %v3425, %v3513
        %v3515 = vpop.f32.mrf.mxu0
        %v3516 = vadd.f32 %v3427, %v3515
        %3517 = vmatmul.bf16.gmra.mxu0 %v2641
        %v3518 = vpop.f32.mrf.mxu0
        %v3519 = vadd.f32 %v3430, %v3518
        %v3520 = vpop.f32.mrf.mxu0
        %v3521 = vadd.f32 %v3432, %v3520
        %3522 = vmatmul.bf16.gmra.mxu0 %v2650
        %v3523 = vpop.f32.mrf.mxu0
        %v3524 = vadd.f32 %v3435, %v3523
        %v3525 = vpop.f32.mrf.mxu0
        %v3526 = vadd.f32 %v3437, %v3525
        %3527 = vmatmul.bf16.gmra.mxu0 %v2659
        %v3528 = vpop.f32.mrf.mxu0
        %v3529 = vadd.f32 %v3440, %v3528
        %v3530 = vpop.f32.mrf.mxu0
        %v3531 = vadd.f32 %v3442, %v3530
        %3532 = vmatmul.bf16.gmra.mxu0 %v2668
        %v3533 = vpop.f32.mrf.mxu0
        %v3534 = vadd.f32 %v3445, %v3533
        %v3535 = vpop.f32.mrf.mxu0
        %v3536 = vadd.f32 %v3447, %v3535
        %3537 = vmatmul.bf16.gmra.mxu0 %v2677
        %v3538 = vpop.f32.mrf.mxu0
        %v3539 = vadd.f32 %v3450, %v3538
        %v3540 = vpop.f32.mrf.mxu0
        %v3541 = vadd.f32 %v3452, %v3540
        %3542 = vmatmul.bf16.gmra.mxu0 %v2686
        %v3543 = vpop.f32.mrf.mxu0
        %v3544 = vadd.f32 %v3455, %v3543
        %v3545 = vpop.f32.mrf.mxu0
        %v3546 = vadd.f32 %v3457, %v3545
        %3547 = vmatmul.bf16.gmra.mxu0 %v2695
        %v3548 = vpop.f32.mrf.mxu0
        %v3549 = vadd.f32 %v3460, %v3548
        %v3550 = vpop.f32.mrf.mxu0
        %v3551 = vadd.f32 %v3462, %v3550
        %3552 = vmatmul.bf16.gmra.mxu0 %v2704
        %v3553 = vpop.f32.mrf.mxu0
        %v3554 = vadd.f32 %v3465, %v3553
        %v3555 = vpop.f32.mrf.mxu0
        %v3556 = vadd.f32 %v3467, %v3555
        %3557 = vmatmul.bf16.gmra.mxu0 %v2713
        %v3558 = vpop.f32.mrf.mxu0
        %v3559 = vadd.f32 %v3470, %v3558
        %v3560 = vpop.f32.mrf.mxu0
        %v3561 = vadd.f32 %v3472, %v3560
        %3562 = vdwg.mxu0
        %3563 = vmatpush.bf16.msra.mxu0 %v3183
        %3564 = vmatpush.bf16.msra.mxu0 %v3182
        %3565 = vmatpush.bf16.msra.mxu0 %v3181
        %3566 = vmatpush.bf16.msra.mxu0 %v3180
        %3567 = vmatpush.bf16.msra.mxu0 %v3179
        %3568 = vmatpush.bf16.msra.mxu0 %v3178
        %3569 = vmatpush.bf16.msra.mxu0 %v3177
        %3570 = vmatpush.bf16.msra.mxu0 %v3176
        %3571 = vmatmul.bf16.gmra.mxu0 %v2579
        %v3572 = vpop.f32.mrf.mxu0
        %v3573 = vadd.f32 %v3484, %v3572
        %v3574 = vpop.f32.mrf.mxu0
        %v3575 = vadd.f32 %v3486, %v3574
        %3576 = vmatmul.bf16.gmra.mxu0 %v2588
        %v3577 = vpop.f32.mrf.mxu0
        %v3578 = vadd.f32 %v3489, %v3577
        %v3579 = vpop.f32.mrf.mxu0
        %v3580 = vadd.f32 %v3491, %v3579
        %3581 = vmatmul.bf16.gmra.mxu0 %v2597
        %v3582 = vpop.f32.mrf.mxu0
        %v3583 = vadd.f32 %v3494, %v3582
        %v3584 = vpop.f32.mrf.mxu0
        %v3585 = vadd.f32 %v3496, %v3584
        %3586 = vmatmul.bf16.gmra.mxu0 %v2606
        %v3587 = vpop.f32.mrf.mxu0
        %v3588 = vadd.f32 %v3499, %v3587
        %v3589 = vpop.f32.mrf.mxu0
        %v3590 = vadd.f32 %v3501, %v3589
        %3591 = vmatmul.bf16.gmra.mxu0 %v2615
        %v3592 = vpop.f32.mrf.mxu0
        %v3593 = vadd.f32 %v3504, %v3592
        %v3594 = vpop.f32.mrf.mxu0
        %v3595 = vadd.f32 %v3506, %v3594
        %3596 = vmatmul.bf16.gmra.mxu0 %v2624
        %v3597 = vpop.f32.mrf.mxu0
        %v3598 = vadd.f32 %v3509, %v3597
        %v3599 = vpop.f32.mrf.mxu0
        %v3600 = vadd.f32 %v3511, %v3599
        %3601 = vmatmul.bf16.gmra.mxu0 %v2633
        %v3602 = vpop.f32.mrf.mxu0
        %v3603 = vadd.f32 %v3514, %v3602
        %v3604 = vpop.f32.mrf.mxu0
        %v3605 = vadd.f32 %v3516, %v3604
        %3606 = vmatmul.bf16.gmra.mxu0 %v2642
        %v3607 = vpop.f32.mrf.mxu0
        %v3608 = vadd.f32 %v3519, %v3607
        %v3609 = vpop.f32.mrf.mxu0
        %v3610 = vadd.f32 %v3521, %v3609
        %3611 = vmatmul.bf16.gmra.mxu0 %v2651
        %v3612 = vpop.f32.mrf.mxu0
        %v3613 = vadd.f32 %v3524, %v3612
        %v3614 = vpop.f32.mrf.mxu0
        %v3615 = vadd.f32 %v3526, %v3614
        %3616 = vmatmul.bf16.gmra.mxu0 %v2660
        %v3617 = vpop.f32.mrf.mxu0
        %v3618 = vadd.f32 %v3529, %v3617
        %v3619 = vpop.f32.mrf.mxu0
        %v3620 = vadd.f32 %v3531, %v3619
        %3621 = vmatmul.bf16.gmra.mxu0 %v2669
        %v3622 = vpop.f32.mrf.mxu0
        %v3623 = vadd.f32 %v3534, %v3622
        %v3624 = vpop.f32.mrf.mxu0
        %v3625 = vadd.f32 %v3536, %v3624
        %3626 = vmatmul.bf16.gmra.mxu0 %v2678
        %v3627 = vpop.f32.mrf.mxu0
        %v3628 = vadd.f32 %v3539, %v3627
        %v3629 = vpop.f32.mrf.mxu0
        %v3630 = vadd.f32 %v3541, %v3629
        %3631 = vmatmul.bf16.gmra.mxu0 %v2687
        %v3632 = vpop.f32.mrf.mxu0
        %v3633 = vadd.f32 %v3544, %v3632
        %v3634 = vpop.f32.mrf.mxu0
        %v3635 = vadd.f32 %v3546, %v3634
        %3636 = vmatmul.bf16.gmra.mxu0 %v2696
        %v3637 = vpop.f32.mrf.mxu0
        %v3638 = vadd.f32 %v3549, %v3637
        %v3639 = vpop.f32.mrf.mxu0
        %v3640 = vadd.f32 %v3551, %v3639
        %3641 = vmatmul.bf16.gmra.mxu0 %v2705
        %v3642 = vpop.f32.mrf.mxu0
        %v3643 = vadd.f32 %v3554, %v3642
        %v3644 = vpop.f32.mrf.mxu0
        %v3645 = vadd.f32 %v3556, %v3644
        %3646 = vmatmul.bf16.gmra.mxu0 %v2714
        %v3647 = vpop.f32.mrf.mxu0
        %v3648 = vadd.f32 %v3559, %v3647
        %v3649 = vpop.f32.mrf.mxu0
        %v3650 = vadd.f32 %v3561, %v3649
        %3651 = vdwg.mxu0
        %3652 = vmatpush.bf16.msra.mxu0 %v3191
        %3653 = vmatpush.bf16.msra.mxu0 %v3190
        %3654 = vmatpush.bf16.msra.mxu0 %v3189
        %3655 = vmatpush.bf16.msra.mxu0 %v3188
        %3656 = vmatpush.bf16.msra.mxu0 %v3187
        %3657 = vmatpush.bf16.msra.mxu0 %v3186
        %3658 = vmatpush.bf16.msra.mxu0 %v3185
        %3659 = vmatpush.bf16.msra.mxu0 %v3184
        %3660 = vmatmul.bf16.gmra.mxu0 %v2580
        %v3661 = vpop.f32.mrf.mxu0
        %v3662 = vadd.f32 %v3573, %v3661
        %v3663 = vpop.f32.mrf.mxu0
        %v3664 = vadd.f32 %v3575, %v3663
        %3665 = vmatmul.bf16.gmra.mxu0 %v2589
        %v3666 = vpop.f32.mrf.mxu0
        %v3667 = vadd.f32 %v3578, %v3666
        %v3668 = vpop.f32.mrf.mxu0
        %v3669 = vadd.f32 %v3580, %v3668
        %3670 = vmatmul.bf16.gmra.mxu0 %v2598
        %v3671 = vpop.f32.mrf.mxu0
        %v3672 = vadd.f32 %v3583, %v3671
        %v3673 = vpop.f32.mrf.mxu0
        %v3674 = vadd.f32 %v3585, %v3673
        %3675 = vmatmul.bf16.gmra.mxu0 %v2607
        %v3676 = vpop.f32.mrf.mxu0
        %v3677 = vadd.f32 %v3588, %v3676
        %v3678 = vpop.f32.mrf.mxu0
        %v3679 = vadd.f32 %v3590, %v3678
        %3680 = vmatmul.bf16.gmra.mxu0 %v2616
        %v3681 = vpop.f32.mrf.mxu0
        %v3682 = vadd.f32 %v3593, %v3681
        %v3683 = vpop.f32.mrf.mxu0
        %v3684 = vadd.f32 %v3595, %v3683
        %3685 = vmatmul.bf16.gmra.mxu0 %v2625
        %v3686 = vpop.f32.mrf.mxu0
        %v3687 = vadd.f32 %v3598, %v3686
        %v3688 = vpop.f32.mrf.mxu0
        %v3689 = vadd.f32 %v3600, %v3688
        %3690 = vmatmul.bf16.gmra.mxu0 %v2634
        %v3691 = vpop.f32.mrf.mxu0
        %v3692 = vadd.f32 %v3603, %v3691
        %v3693 = vpop.f32.mrf.mxu0
        %v3694 = vadd.f32 %v3605, %v3693
        %3695 = vmatmul.bf16.gmra.mxu0 %v2643
        %v3696 = vpop.f32.mrf.mxu0
        %v3697 = vadd.f32 %v3608, %v3696
        %v3698 = vpop.f32.mrf.mxu0
        %v3699 = vadd.f32 %v3610, %v3698
        %3700 = vmatmul.bf16.gmra.mxu0 %v2652
        %v3701 = vpop.f32.mrf.mxu0
        %v3702 = vadd.f32 %v3613, %v3701
        %v3703 = vpop.f32.mrf.mxu0
        %v3704 = vadd.f32 %v3615, %v3703
        %3705 = vmatmul.bf16.gmra.mxu0 %v2661
        %v3706 = vpop.f32.mrf.mxu0
        %v3707 = vadd.f32 %v3618, %v3706
        %v3708 = vpop.f32.mrf.mxu0
        %v3709 = vadd.f32 %v3620, %v3708
        %3710 = vmatmul.bf16.gmra.mxu0 %v2670
        %v3711 = vpop.f32.mrf.mxu0
        %v3712 = vadd.f32 %v3623, %v3711
        %v3713 = vpop.f32.mrf.mxu0
        %v3714 = vadd.f32 %v3625, %v3713
        %3715 = vmatmul.bf16.gmra.mxu0 %v2679
        %v3716 = vpop.f32.mrf.mxu0
        %v3717 = vadd.f32 %v3628, %v3716
        %v3718 = vpop.f32.mrf.mxu0
        %v3719 = vadd.f32 %v3630, %v3718
        %3720 = vmatmul.bf16.gmra.mxu0 %v2688
        %v3721 = vpop.f32.mrf.mxu0
        %v3722 = vadd.f32 %v3633, %v3721
        %v3723 = vpop.f32.mrf.mxu0
        %v3724 = vadd.f32 %v3635, %v3723
        %3725 = vmatmul.bf16.gmra.mxu0 %v2697
        %v3726 = vpop.f32.mrf.mxu0
        %v3727 = vadd.f32 %v3638, %v3726
        %v3728 = vpop.f32.mrf.mxu0
        %v3729 = vadd.f32 %v3640, %v3728
        %3730 = vmatmul.bf16.gmra.mxu0 %v2706
        %v3731 = vpop.f32.mrf.mxu0
        %v3732 = vadd.f32 %v3643, %v3731
        %v3733 = vpop.f32.mrf.mxu0
        %v3734 = vadd.f32 %v3645, %v3733
        %3735 = vmatmul.bf16.gmra.mxu0 %v2715
        %v3736 = vpop.f32.mrf.mxu0
        %v3737 = vadd.f32 %v3648, %v3736
        %v3738 = vpop.f32.mrf.mxu0
        %v3739 = vadd.f32 %v3650, %v3738
        %3740 = vdwg.mxu0
        %3741 = vmatpush.bf16.msra.mxu0 %v3199
        %3742 = vmatpush.bf16.msra.mxu0 %v3198
        %3743 = vmatpush.bf16.msra.mxu0 %v3197
        %3744 = vmatpush.bf16.msra.mxu0 %v3196
        %3745 = vmatpush.bf16.msra.mxu0 %v3195
        %3746 = vmatpush.bf16.msra.mxu0 %v3194
        %3747 = vmatpush.bf16.msra.mxu0 %v3193
        %3748 = vmatpush.bf16.msra.mxu0 %v3192
        %3749 = vmatmul.bf16.gmra.mxu0 %v2581
        %v3750 = vpop.f32.mrf.mxu0
        %v3751 = vadd.f32 %v3662, %v3750
        %v3752 = vpop.f32.mrf.mxu0
        %v3753 = vadd.f32 %v3664, %v3752
        %3754 = vmatmul.bf16.gmra.mxu0 %v2590
        %v3755 = vpop.f32.mrf.mxu0
        %v3756 = vadd.f32 %v3667, %v3755
        %v3757 = vpop.f32.mrf.mxu0
        %v3758 = vadd.f32 %v3669, %v3757
        %3759 = vmatmul.bf16.gmra.mxu0 %v2599
        %v3760 = vpop.f32.mrf.mxu0
        %v3761 = vadd.f32 %v3672, %v3760
        %v3762 = vpop.f32.mrf.mxu0
        %v3763 = vadd.f32 %v3674, %v3762
        %3764 = vmatmul.bf16.gmra.mxu0 %v2608
        %v3765 = vpop.f32.mrf.mxu0
        %v3766 = vadd.f32 %v3677, %v3765
        %v3767 = vpop.f32.mrf.mxu0
        %v3768 = vadd.f32 %v3679, %v3767
        %3769 = vmatmul.bf16.gmra.mxu0 %v2617
        %v3770 = vpop.f32.mrf.mxu0
        %v3771 = vadd.f32 %v3682, %v3770
        %v3772 = vpop.f32.mrf.mxu0
        %v3773 = vadd.f32 %v3684, %v3772
        %3774 = vmatmul.bf16.gmra.mxu0 %v2626
        %v3775 = vpop.f32.mrf.mxu0
        %v3776 = vadd.f32 %v3687, %v3775
        %v3777 = vpop.f32.mrf.mxu0
        %v3778 = vadd.f32 %v3689, %v3777
        %3779 = vmatmul.bf16.gmra.mxu0 %v2635
        %v3780 = vpop.f32.mrf.mxu0
        %v3781 = vadd.f32 %v3692, %v3780
        %v3782 = vpop.f32.mrf.mxu0
        %v3783 = vadd.f32 %v3694, %v3782
        %3784 = vmatmul.bf16.gmra.mxu0 %v2644
        %v3785 = vpop.f32.mrf.mxu0
        %v3786 = vadd.f32 %v3697, %v3785
        %v3787 = vpop.f32.mrf.mxu0
        %v3788 = vadd.f32 %v3699, %v3787
        %3789 = vmatmul.bf16.gmra.mxu0 %v2653
        %v3790 = vpop.f32.mrf.mxu0
        %v3791 = vadd.f32 %v3702, %v3790
        %v3792 = vpop.f32.mrf.mxu0
        %v3793 = vadd.f32 %v3704, %v3792
        %3794 = vmatmul.bf16.gmra.mxu0 %v2662
        %v3795 = vpop.f32.mrf.mxu0
        %v3796 = vadd.f32 %v3707, %v3795
        %v3797 = vpop.f32.mrf.mxu0
        %v3798 = vadd.f32 %v3709, %v3797
        %3799 = vmatmul.bf16.gmra.mxu0 %v2671
        %v3800 = vpop.f32.mrf.mxu0
        %v3801 = vadd.f32 %v3712, %v3800
        %v3802 = vpop.f32.mrf.mxu0
        %v3803 = vadd.f32 %v3714, %v3802
        %3804 = vmatmul.bf16.gmra.mxu0 %v2680
        %v3805 = vpop.f32.mrf.mxu0
        %v3806 = vadd.f32 %v3717, %v3805
        %v3807 = vpop.f32.mrf.mxu0
        %v3808 = vadd.f32 %v3719, %v3807
        %3809 = vmatmul.bf16.gmra.mxu0 %v2689
        %v3810 = vpop.f32.mrf.mxu0
        %v3811 = vadd.f32 %v3722, %v3810
        %v3812 = vpop.f32.mrf.mxu0
        %v3813 = vadd.f32 %v3724, %v3812
        %3814 = vmatmul.bf16.gmra.mxu0 %v2698
        %v3815 = vpop.f32.mrf.mxu0
        %v3816 = vadd.f32 %v3727, %v3815
        %v3817 = vpop.f32.mrf.mxu0
        %v3818 = vadd.f32 %v3729, %v3817
        %3819 = vmatmul.bf16.gmra.mxu0 %v2707
        %v3820 = vpop.f32.mrf.mxu0
        %v3821 = vadd.f32 %v3732, %v3820
        %v3822 = vpop.f32.mrf.mxu0
        %v3823 = vadd.f32 %v3734, %v3822
        %3824 = vmatmul.bf16.gmra.mxu0 %v2716
        %v3825 = vpop.f32.mrf.mxu0
        %v3826 = vadd.f32 %v3737, %v3825
        %v3827 = vpop.f32.mrf.mxu0
        %v3828 = vadd.f32 %v3739, %v3827
        %3829 = vdwg.mxu0
        %3830 = vmatpush.bf16.msra.mxu0 %v3207
        %3831 = vmatpush.bf16.msra.mxu0 %v3206
        %3832 = vmatpush.bf16.msra.mxu0 %v3205
        %3833 = vmatpush.bf16.msra.mxu0 %v3204
        %3834 = vmatpush.bf16.msra.mxu0 %v3203
        %3835 = vmatpush.bf16.msra.mxu0 %v3202
        %3836 = vmatpush.bf16.msra.mxu0 %v3201
        %3837 = vmatpush.bf16.msra.mxu0 %v3200
        %3838 = vmatmul.bf16.gmra.mxu0 %v2582
        %v3839 = vpop.f32.mrf.mxu0
        %v3840 = vadd.f32 %v3751, %v3839
        %v3841 = vpop.f32.mrf.mxu0
        %v3842 = vadd.f32 %v3753, %v3841
        %3843 = vmatmul.bf16.gmra.mxu0 %v2591
        %v3844 = vpop.f32.mrf.mxu0
        %v3845 = vadd.f32 %v3756, %v3844
        %v3846 = vpop.f32.mrf.mxu0
        %v3847 = vadd.f32 %v3758, %v3846
        %3848 = vmatmul.bf16.gmra.mxu0 %v2600
        %v3849 = vpop.f32.mrf.mxu0
        %v3850 = vadd.f32 %v3761, %v3849
        %v3851 = vpop.f32.mrf.mxu0
        %v3852 = vadd.f32 %v3763, %v3851
        %3853 = vmatmul.bf16.gmra.mxu0 %v2609
        %v3854 = vpop.f32.mrf.mxu0
        %v3855 = vadd.f32 %v3766, %v3854
        %v3856 = vpop.f32.mrf.mxu0
        %v3857 = vadd.f32 %v3768, %v3856
        %3858 = vmatmul.bf16.gmra.mxu0 %v2618
        %v3859 = vpop.f32.mrf.mxu0
        %v3860 = vadd.f32 %v3771, %v3859
        %v3861 = vpop.f32.mrf.mxu0
        %v3862 = vadd.f32 %v3773, %v3861
        %3863 = vmatmul.bf16.gmra.mxu0 %v2627
        %v3864 = vpop.f32.mrf.mxu0
        %v3865 = vadd.f32 %v3776, %v3864
        %v3866 = vpop.f32.mrf.mxu0
        %v3867 = vadd.f32 %v3778, %v3866
        %3868 = vmatmul.bf16.gmra.mxu0 %v2636
        %v3869 = vpop.f32.mrf.mxu0
        %v3870 = vadd.f32 %v3781, %v3869
        %v3871 = vpop.f32.mrf.mxu0
        %v3872 = vadd.f32 %v3783, %v3871
        %3873 = vmatmul.bf16.gmra.mxu0 %v2645
        %v3874 = vpop.f32.mrf.mxu0
        %v3875 = vadd.f32 %v3786, %v3874
        %v3876 = vpop.f32.mrf.mxu0
        %v3877 = vadd.f32 %v3788, %v3876
        %3878 = vmatmul.bf16.gmra.mxu0 %v2654
        %v3879 = vpop.f32.mrf.mxu0
        %v3880 = vadd.f32 %v3791, %v3879
        %v3881 = vpop.f32.mrf.mxu0
        %v3882 = vadd.f32 %v3793, %v3881
        %3883 = vmatmul.bf16.gmra.mxu0 %v2663
        %v3884 = vpop.f32.mrf.mxu0
        %v3885 = vadd.f32 %v3796, %v3884
        %v3886 = vpop.f32.mrf.mxu0
        %v3887 = vadd.f32 %v3798, %v3886
        %3888 = vmatmul.bf16.gmra.mxu0 %v2672
        %v3889 = vpop.f32.mrf.mxu0
        %v3890 = vadd.f32 %v3801, %v3889
        %v3891 = vpop.f32.mrf.mxu0
        %v3892 = vadd.f32 %v3803, %v3891
        %3893 = vmatmul.bf16.gmra.mxu0 %v2681
        %v3894 = vpop.f32.mrf.mxu0
        %v3895 = vadd.f32 %v3806, %v3894
        %v3896 = vpop.f32.mrf.mxu0
        %v3897 = vadd.f32 %v3808, %v3896
        %3898 = vmatmul.bf16.gmra.mxu0 %v2690
        %v3899 = vpop.f32.mrf.mxu0
        %v3900 = vadd.f32 %v3811, %v3899
        %v3901 = vpop.f32.mrf.mxu0
        %v3902 = vadd.f32 %v3813, %v3901
        %3903 = vmatmul.bf16.gmra.mxu0 %v2699
        %v3904 = vpop.f32.mrf.mxu0
        %v3905 = vadd.f32 %v3816, %v3904
        %v3906 = vpop.f32.mrf.mxu0
        %v3907 = vadd.f32 %v3818, %v3906
        %3908 = vmatmul.bf16.gmra.mxu0 %v2708
        %v3909 = vpop.f32.mrf.mxu0
        %v3910 = vadd.f32 %v3821, %v3909
        %v3911 = vpop.f32.mrf.mxu0
        %v3912 = vadd.f32 %v3823, %v3911
        %3913 = vmatmul.bf16.gmra.mxu0 %v2717
        %v3914 = vpop.f32.mrf.mxu0
        %v3915 = vadd.f32 %v3826, %v3914
        %v3916 = vpop.f32.mrf.mxu0
        %v3917 = vadd.f32 %v3828, %v3916
        %3918 = vdwg.mxu0
        %3919 = vmatpush.bf16.msra.mxu0 %v3215
        %3920 = vmatpush.bf16.msra.mxu0 %v3214
        %3921 = vmatpush.bf16.msra.mxu0 %v3213
        %3922 = vmatpush.bf16.msra.mxu0 %v3212
        %3923 = vmatpush.bf16.msra.mxu0 %v3211
        %3924 = vmatpush.bf16.msra.mxu0 %v3210
        %3925 = vmatpush.bf16.msra.mxu0 %v3209
        %3926 = vmatpush.bf16.msra.mxu0 %v3208
        %3927 = vmatmul.bf16.gmra.mxu0 %v2583
        %v3928 = vpop.f32.mrf.mxu0
        %v3929 = vadd.f32 %v3840, %v3928
        %v3930 = vpop.f32.mrf.mxu0
        %v3931 = vadd.f32 %v3842, %v3930
        %3932 = vmatmul.bf16.gmra.mxu0 %v2592
        %v3933 = vpop.f32.mrf.mxu0
        %v3934 = vadd.f32 %v3845, %v3933
        %v3935 = vpop.f32.mrf.mxu0
        %v3936 = vadd.f32 %v3847, %v3935
        %3937 = vmatmul.bf16.gmra.mxu0 %v2601
        %v3938 = vpop.f32.mrf.mxu0
        %v3939 = vadd.f32 %v3850, %v3938
        %v3940 = vpop.f32.mrf.mxu0
        %v3941 = vadd.f32 %v3852, %v3940
        %3942 = vmatmul.bf16.gmra.mxu0 %v2610
        %v3943 = vpop.f32.mrf.mxu0
        %v3944 = vadd.f32 %v3855, %v3943
        %v3945 = vpop.f32.mrf.mxu0
        %v3946 = vadd.f32 %v3857, %v3945
        %3947 = vmatmul.bf16.gmra.mxu0 %v2619
        %v3948 = vpop.f32.mrf.mxu0
        %v3949 = vadd.f32 %v3860, %v3948
        %v3950 = vpop.f32.mrf.mxu0
        %v3951 = vadd.f32 %v3862, %v3950
        %3952 = vmatmul.bf16.gmra.mxu0 %v2628
        %v3953 = vpop.f32.mrf.mxu0
        %v3954 = vadd.f32 %v3865, %v3953
        %v3955 = vpop.f32.mrf.mxu0
        %v3956 = vadd.f32 %v3867, %v3955
        %3957 = vmatmul.bf16.gmra.mxu0 %v2637
        %v3958 = vpop.f32.mrf.mxu0
        %v3959 = vadd.f32 %v3870, %v3958
        %v3960 = vpop.f32.mrf.mxu0
        %v3961 = vadd.f32 %v3872, %v3960
        %3962 = vmatmul.bf16.gmra.mxu0 %v2646
        %v3963 = vpop.f32.mrf.mxu0
        %v3964 = vadd.f32 %v3875, %v3963
        %v3965 = vpop.f32.mrf.mxu0
        %v3966 = vadd.f32 %v3877, %v3965
        %3967 = vmatmul.bf16.gmra.mxu0 %v2655
        %v3968 = vpop.f32.mrf.mxu0
        %v3969 = vadd.f32 %v3880, %v3968
        %v3970 = vpop.f32.mrf.mxu0
        %v3971 = vadd.f32 %v3882, %v3970
        %3972 = vmatmul.bf16.gmra.mxu0 %v2664
        %v3973 = vpop.f32.mrf.mxu0
        %v3974 = vadd.f32 %v3885, %v3973
        %v3975 = vpop.f32.mrf.mxu0
        %v3976 = vadd.f32 %v3887, %v3975
        %3977 = vmatmul.bf16.gmra.mxu0 %v2673
        %v3978 = vpop.f32.mrf.mxu0
        %v3979 = vadd.f32 %v3890, %v3978
        %v3980 = vpop.f32.mrf.mxu0
        %v3981 = vadd.f32 %v3892, %v3980
        %3982 = vmatmul.bf16.gmra.mxu0 %v2682
        %v3983 = vpop.f32.mrf.mxu0
        %v3984 = vadd.f32 %v3895, %v3983
        %v3985 = vpop.f32.mrf.mxu0
        %v3986 = vadd.f32 %v3897, %v3985
        %3987 = vmatmul.bf16.gmra.mxu0 %v2691
        %v3988 = vpop.f32.mrf.mxu0
        %v3989 = vadd.f32 %v3900, %v3988
        %v3990 = vpop.f32.mrf.mxu0
        %v3991 = vadd.f32 %v3902, %v3990
        %3992 = vmatmul.bf16.gmra.mxu0 %v2700
        %v3993 = vpop.f32.mrf.mxu0
        %v3994 = vadd.f32 %v3905, %v3993
        %v3995 = vpop.f32.mrf.mxu0
        %v3996 = vadd.f32 %v3907, %v3995
        %3997 = vmatmul.bf16.gmra.mxu0 %v2709
        %v3998 = vpop.f32.mrf.mxu0
        %v3999 = vadd.f32 %v3910, %v3998
        %v4000 = vpop.f32.mrf.mxu0
        %v4001 = vadd.f32 %v3912, %v4000
        %4002 = vmatmul.bf16.gmra.mxu0 %v2718
        %v4003 = vpop.f32.mrf.mxu0
        %v4004 = vadd.f32 %v3915, %v4003
        %v4005 = vpop.f32.mrf.mxu0
        %v4006 = vadd.f32 %v3917, %v4005
        %4007 = vdwg.mxu0
        %4008 = vmatpush.bf16.msra.mxu0 %v3223
        %4009 = vmatpush.bf16.msra.mxu0 %v3222
        %4010 = vmatpush.bf16.msra.mxu0 %v3221
        %4011 = vmatpush.bf16.msra.mxu0 %v3220
        %4012 = vmatpush.bf16.msra.mxu0 %v3219
        %4013 = vmatpush.bf16.msra.mxu0 %v3218
        %4014 = vmatpush.bf16.msra.mxu0 %v3217
        %4015 = vmatpush.bf16.msra.mxu0 %v3216
        %4016 = vmatmul.bf16.gmra.mxu0 %v2584
        %v4017 = vpop.f32.mrf.mxu0
        %v4018 = vadd.f32 %v3929, %v4017
        %v4019 = vpop.f32.mrf.mxu0
        %v4020 = vadd.f32 %v3931, %v4019
        %4021 = vmatmul.bf16.gmra.mxu0 %v2593
        %v4022 = vpop.f32.mrf.mxu0
        %v4023 = vadd.f32 %v3934, %v4022
        %v4024 = vpop.f32.mrf.mxu0
        %v4025 = vadd.f32 %v3936, %v4024
        %4026 = vmatmul.bf16.gmra.mxu0 %v2602
        %v4027 = vpop.f32.mrf.mxu0
        %v4028 = vadd.f32 %v3939, %v4027
        %v4029 = vpop.f32.mrf.mxu0
        %v4030 = vadd.f32 %v3941, %v4029
        %4031 = vmatmul.bf16.gmra.mxu0 %v2611
        %v4032 = vpop.f32.mrf.mxu0
        %v4033 = vadd.f32 %v3944, %v4032
        %v4034 = vpop.f32.mrf.mxu0
        %v4035 = vadd.f32 %v3946, %v4034
        %4036 = vmatmul.bf16.gmra.mxu0 %v2620
        %v4037 = vpop.f32.mrf.mxu0
        %v4038 = vadd.f32 %v3949, %v4037
        %v4039 = vpop.f32.mrf.mxu0
        %v4040 = vadd.f32 %v3951, %v4039
        %4041 = vmatmul.bf16.gmra.mxu0 %v2629
        %v4042 = vpop.f32.mrf.mxu0
        %v4043 = vadd.f32 %v3954, %v4042
        %v4044 = vpop.f32.mrf.mxu0
        %v4045 = vadd.f32 %v3956, %v4044
        %4046 = vmatmul.bf16.gmra.mxu0 %v2638
        %v4047 = vpop.f32.mrf.mxu0
        %v4048 = vadd.f32 %v3959, %v4047
        %v4049 = vpop.f32.mrf.mxu0
        %v4050 = vadd.f32 %v3961, %v4049
        %4051 = vmatmul.bf16.gmra.mxu0 %v2647
        %v4052 = vpop.f32.mrf.mxu0
        %v4053 = vadd.f32 %v3964, %v4052
        %v4054 = vpop.f32.mrf.mxu0
        %v4055 = vadd.f32 %v3966, %v4054
        %4056 = vmatmul.bf16.gmra.mxu0 %v2656
        %v4057 = vpop.f32.mrf.mxu0
        %v4058 = vadd.f32 %v3969, %v4057
        %v4059 = vpop.f32.mrf.mxu0
        %v4060 = vadd.f32 %v3971, %v4059
        %4061 = vmatmul.bf16.gmra.mxu0 %v2665
        %v4062 = vpop.f32.mrf.mxu0
        %v4063 = vadd.f32 %v3974, %v4062
        %v4064 = vpop.f32.mrf.mxu0
        %v4065 = vadd.f32 %v3976, %v4064
        %4066 = vmatmul.bf16.gmra.mxu0 %v2674
        %v4067 = vpop.f32.mrf.mxu0
        %v4068 = vadd.f32 %v3979, %v4067
        %v4069 = vpop.f32.mrf.mxu0
        %v4070 = vadd.f32 %v3981, %v4069
        %4071 = vmatmul.bf16.gmra.mxu0 %v2683
        %v4072 = vpop.f32.mrf.mxu0
        %v4073 = vadd.f32 %v3984, %v4072
        %v4074 = vpop.f32.mrf.mxu0
        %v4075 = vadd.f32 %v3986, %v4074
        %4076 = vmatmul.bf16.gmra.mxu0 %v2692
        %v4077 = vpop.f32.mrf.mxu0
        %v4078 = vadd.f32 %v3989, %v4077
        %v4079 = vpop.f32.mrf.mxu0
        %v4080 = vadd.f32 %v3991, %v4079
        %4081 = vmatmul.bf16.gmra.mxu0 %v2701
        %v4082 = vpop.f32.mrf.mxu0
        %v4083 = vadd.f32 %v3994, %v4082
        %v4084 = vpop.f32.mrf.mxu0
        %v4085 = vadd.f32 %v3996, %v4084
        %4086 = vmatmul.bf16.gmra.mxu0 %v2710
        %v4087 = vpop.f32.mrf.mxu0
        %v4088 = vadd.f32 %v3999, %v4087
        %v4089 = vpop.f32.mrf.mxu0
        %v4090 = vadd.f32 %v4001, %v4089
        %4091 = vmatmul.bf16.gmra.mxu0 %v2719
        %v4092 = vpop.f32.mrf.mxu0
        %v4093 = vadd.f32 %v4004, %v4092
        %v4094 = vpop.f32.mrf.mxu0
        %v4095 = vadd.f32 %v4006, %v4094
        %4096 = vdwg.mxu0
        %v4097 = vmax.f32 %v4018, 0.0
        %v4098 = vmax.f32 %v4020, 0.0
        %v4099 = vmax.f32 %v4023, 0.0
        %v4100 = vmax.f32 %v4025, 0.0
        %v4101 = vmax.f32 %v4028, 0.0
        %v4102 = vmax.f32 %v4030, 0.0
        %v4103 = vmax.f32 %v4033, 0.0
        %v4104 = vmax.f32 %v4035, 0.0
        %v4105 = vmax.f32 %v4038, 0.0
        %v4106 = vmax.f32 %v4040, 0.0
        %v4107 = vmax.f32 %v4043, 0.0
        %v4108 = vmax.f32 %v4045, 0.0
        %v4109 = vmax.f32 %v4048, 0.0
        %v4110 = vmax.f32 %v4050, 0.0
        %v4111 = vmax.f32 %v4053, 0.0
        %v4112 = vmax.f32 %v4055, 0.0
        %v4113 = vmax.f32 %v4058, 0.0
        %v4114 = vmax.f32 %v4060, 0.0
        %v4115 = vmax.f32 %v4063, 0.0
        %v4116 = vmax.f32 %v4065, 0.0
        %v4117 = vmax.f32 %v4068, 0.0
        %v4118 = vmax.f32 %v4070, 0.0
        %v4119 = vmax.f32 %v4073, 0.0
        %v4120 = vmax.f32 %v4075, 0.0
        %v4121 = vmax.f32 %v4078, 0.0
        %v4122 = vmax.f32 %v4080, 0.0
        %v4123 = vmax.f32 %v4083, 0.0
        %v4124 = vmax.f32 %v4085, 0.0
        %v4125 = vmax.f32 %v4088, 0.0
        %v4126 = vmax.f32 %v4090, 0.0
        %v4127 = vmax.f32 %v4093, 0.0
        %v4128 = vmax.f32 %v4095, 0.0
        %v4129 = vpack.c.bf16 %v4098, %v4097
        %v4130 = vpack.c.bf16 %v4100, %v4099
        %v4131 = vpack.c.bf16 %v4102, %v4101
        %v4132 = vpack.c.bf16 %v4104, %v4103
        %v4133 = vpack.c.bf16 %v4106, %v4105
        %v4134 = vpack.c.bf16 %v4108, %v4107
        %v4135 = vpack.c.bf16 %v4110, %v4109
        %v4136 = vpack.c.bf16 %v4112, %v4111
        %v4137 = vpack.c.bf16 %v4114, %v4113
        %v4138 = vpack.c.bf16 %v4116, %v4115
        %v4139 = vpack.c.bf16 %v4118, %v4117
        %v4140 = vpack.c.bf16 %v4120, %v4119
        %v4141 = vpack.c.bf16 %v4122, %v4121
        %v4142 = vpack.c.bf16 %v4124, %v4123
        %v4143 = vpack.c.bf16 %v4126, %v4125
        %v4144 = vpack.c.bf16 %v4128, %v4127
        %v4145 = vld [vmem:[#allocation10] sm:$0xf]
        %v4146 = vld [vmem:[#allocation10 + $0x4] sm:$0xf]
        %v4147 = vld [vmem:[#allocation10 + $0x8] sm:$0xf]
        %v4148 = vld [vmem:[#allocation10 + $0xc] sm:$0xf]
        %v4149 = vld [vmem:[#allocation10 + $0x10] sm:$0xf]
        %v4150 = vld [vmem:[#allocation10 + $0x14] sm:$0xf]
        %v4151 = vld [vmem:[#allocation10 + $0x18] sm:$0xf]
        %v4152 = vld [vmem:[#allocation10 + $0x1c] sm:$0xf]
        %v4153 = vld [vmem:[#allocation10 + $0x20] sm:$0xf]
        %v4154 = vld [vmem:[#allocation10 + $0x24] sm:$0xf]
        %v4155 = vld [vmem:[#allocation10 + $0x28] sm:$0xf]
        %v4156 = vld [vmem:[#allocation10 + $0x2c] sm:$0xf]
        %v4157 = vld [vmem:[#allocation10 + $0x30] sm:$0xf]
        %v4158 = vld [vmem:[#allocation10 + $0x34] sm:$0xf]
        %v4159 = vld [vmem:[#allocation10 + $0x38] sm:$0xf]
        %v4160 = vld [vmem:[#allocation10 + $0x3c] sm:$0xf]
        %v4161 = vld [vmem:[%s6] sm:$0x1]
        %v4163 = vperm.slane %v4161, 0
        %v4181 = vunpack.c.l.b16 %v4145
        %v4182 = vunpack.c.l.b16 %v4146
        %v4183 = vunpack.c.l.b16 %v4147
        %v4184 = vunpack.c.l.b16 %v4148
        %v4185 = vunpack.c.l.b16 %v4149
        %v4186 = vunpack.c.l.b16 %v4150
        %v4187 = vunpack.c.l.b16 %v4151
        %v4188 = vunpack.c.l.b16 %v4152
        %v4189 = vunpack.c.l.b16 %v4153
        %v4190 = vunpack.c.l.b16 %v4154
        %v4191 = vunpack.c.l.b16 %v4155
        %v4192 = vunpack.c.l.b16 %v4156
        %v4193 = vunpack.c.l.b16 %v4157
        %v4194 = vunpack.c.l.b16 %v4158
        %v4195 = vunpack.c.l.b16 %v4159
        %v4196 = vunpack.c.l.b16 %v4160
        %v4197 = vpack.c.b16 %v4182, %v4181
        %v4198 = vpack.c.b16 %v4184, %v4183
        %v4199 = vpack.c.b16 %v4186, %v4185
        %v4200 = vpack.c.b16 %v4188, %v4187
        %v4201 = vpack.c.b16 %v4190, %v4189
        %v4202 = vpack.c.b16 %v4192, %v4191
        %v4203 = vpack.c.b16 %v4194, %v4193
        %v4204 = vpack.c.b16 %v4196, %v4195
        %4213 = vmatpush.bf16.msra.mxu0 %v4204
        %4214 = vmatpush.bf16.msra.mxu0 %v4203
        %4215 = vmatpush.bf16.msra.mxu0 %v4202
        %4216 = vmatpush.bf16.msra.mxu0 %v4201
        %4217 = vmatpush.bf16.msra.mxu0 %v4200
        %4218 = vmatpush.bf16.msra.mxu0 %v4199
        %4219 = vmatpush.bf16.msra.mxu0 %v4198
        %4220 = vmatpush.bf16.msra.mxu0 %v4197
        %4221 = vmatmul.bf16.gmra.mxu0 %v4129
        %v4222 = vpop.f32.mrf.mxu0
        %v4223 = vadd.f32 %v4163, %v4222
        %v4224 = vpop.f32.mrf.mxu0
        %v4225 = vadd.f32 %v4163, %v4224
        %4226 = vmatmul.bf16.gmra.mxu0 %v4130
        %v4227 = vpop.f32.mrf.mxu0
        %v4228 = vadd.f32 %v4163, %v4227
        %v4229 = vpop.f32.mrf.mxu0
        %v4230 = vadd.f32 %v4163, %v4229
        %4231 = vmatmul.bf16.gmra.mxu0 %v4131
        %v4232 = vpop.f32.mrf.mxu0
        %v4233 = vadd.f32 %v4163, %v4232
        %v4234 = vpop.f32.mrf.mxu0
        %v4235 = vadd.f32 %v4163, %v4234
        %4236 = vmatmul.bf16.gmra.mxu0 %v4132
        %v4237 = vpop.f32.mrf.mxu0
        %v4238 = vadd.f32 %v4163, %v4237
        %v4239 = vpop.f32.mrf.mxu0
        %v4240 = vadd.f32 %v4163, %v4239
        %4241 = vmatmul.bf16.gmra.mxu0 %v4133
        %v4242 = vpop.f32.mrf.mxu0
        %v4243 = vadd.f32 %v4163, %v4242
        %v4244 = vpop.f32.mrf.mxu0
        %v4245 = vadd.f32 %v4163, %v4244
        %4246 = vmatmul.bf16.gmra.mxu0 %v4134
        %v4247 = vpop.f32.mrf.mxu0
        %v4248 = vadd.f32 %v4163, %v4247
        %v4249 = vpop.f32.mrf.mxu0
        %v4250 = vadd.f32 %v4163, %v4249
        %4251 = vmatmul.bf16.gmra.mxu0 %v4135
        %v4252 = vpop.f32.mrf.mxu0
        %v4253 = vadd.f32 %v4163, %v4252
        %v4254 = vpop.f32.mrf.mxu0
        %v4255 = vadd.f32 %v4163, %v4254
        %4256 = vmatmul.bf16.gmra.mxu0 %v4136
        %v4257 = vpop.f32.mrf.mxu0
        %v4258 = vadd.f32 %v4163, %v4257
        %v4259 = vpop.f32.mrf.mxu0
        %v4260 = vadd.f32 %v4163, %v4259
        %4261 = vmatmul.bf16.gmra.mxu0 %v4137
        %v4262 = vpop.f32.mrf.mxu0
        %v4263 = vadd.f32 %v4163, %v4262
        %v4264 = vpop.f32.mrf.mxu0
        %v4265 = vadd.f32 %v4163, %v4264
        %4266 = vmatmul.bf16.gmra.mxu0 %v4138
        %v4267 = vpop.f32.mrf.mxu0
        %v4268 = vadd.f32 %v4163, %v4267
        %v4269 = vpop.f32.mrf.mxu0
        %v4270 = vadd.f32 %v4163, %v4269
        %4271 = vmatmul.bf16.gmra.mxu0 %v4139
        %v4272 = vpop.f32.mrf.mxu0
        %v4273 = vadd.f32 %v4163, %v4272
        %v4274 = vpop.f32.mrf.mxu0
        %v4275 = vadd.f32 %v4163, %v4274
        %4276 = vmatmul.bf16.gmra.mxu0 %v4140
        %v4277 = vpop.f32.mrf.mxu0
        %v4278 = vadd.f32 %v4163, %v4277
        %v4279 = vpop.f32.mrf.mxu0
        %v4280 = vadd.f32 %v4163, %v4279
        %4281 = vmatmul.bf16.gmra.mxu0 %v4141
        %v4282 = vpop.f32.mrf.mxu0
        %v4283 = vadd.f32 %v4163, %v4282
        %v4284 = vpop.f32.mrf.mxu0
        %v4285 = vadd.f32 %v4163, %v4284
        %4286 = vmatmul.bf16.gmra.mxu0 %v4142
        %v4287 = vpop.f32.mrf.mxu0
        %v4288 = vadd.f32 %v4163, %v4287
        %v4289 = vpop.f32.mrf.mxu0
        %v4290 = vadd.f32 %v4163, %v4289
        %4291 = vmatmul.bf16.gmra.mxu0 %v4143
        %v4292 = vpop.f32.mrf.mxu0
        %v4293 = vadd.f32 %v4163, %v4292
        %v4294 = vpop.f32.mrf.mxu0
        %v4295 = vadd.f32 %v4163, %v4294
        %4296 = vmatmul.bf16.gmra.mxu0 %v4144
        %v4297 = vpop.f32.mrf.mxu0
        %v4298 = vadd.f32 %v4163, %v4297
        %v4299 = vpop.f32.mrf.mxu0
        %v4300 = vadd.f32 %v4163, %v4299
        %4301 = vdwg.mxu0
        %v4302 = vld [vmem:[%s302] sm:$0xf]
        %v4303 = vld [vmem:[%s302 + $0x4] sm:$0xf]
        %v4304 = vld [vmem:[%s302 + $0x8] sm:$0xf]
        %v4305 = vld [vmem:[%s302 + $0xc] sm:$0xf]
        %v4306 = vld [vmem:[%s302 + $0x10] sm:$0xf]
        %v4307 = vld [vmem:[%s302 + $0x14] sm:$0xf]
        %v4308 = vld [vmem:[%s302 + $0x18] sm:$0xf]
        %v4309 = vld [vmem:[%s302 + $0x1c] sm:$0xf]
        %v4310 = vld [vmem:[%s302 + $0x20] sm:$0xf]
        %v4311 = vld [vmem:[%s302 + $0x24] sm:$0xf]
        %v4312 = vld [vmem:[%s302 + $0x28] sm:$0xf]
        %v4313 = vld [vmem:[%s302 + $0x2c] sm:$0xf]
        %v4314 = vld [vmem:[%s302 + $0x30] sm:$0xf]
        %v4315 = vld [vmem:[%s302 + $0x34] sm:$0xf]
        %v4316 = vld [vmem:[%s302 + $0x38] sm:$0xf]
        %v4317 = vld [vmem:[%s302 + $0x3c] sm:$0xf]
        %v4318 = vld [vmem:[%s302 + $0x40] sm:$0xf]
        %v4319 = vld [vmem:[%s302 + $0x44] sm:$0xf]
        %v4320 = vld [vmem:[%s302 + $0x48] sm:$0xf]
        %v4321 = vld [vmem:[%s302 + $0x4c] sm:$0xf]
        %v4322 = vld [vmem:[%s302 + $0x50] sm:$0xf]
        %v4323 = vld [vmem:[%s302 + $0x54] sm:$0xf]
        %v4324 = vld [vmem:[%s302 + $0x58] sm:$0xf]
        %v4325 = vld [vmem:[%s302 + $0x5c] sm:$0xf]
        %v4326 = vld [vmem:[%s302 + $0x60] sm:$0xf]
        %v4327 = vld [vmem:[%s302 + $0x64] sm:$0xf]
        %v4328 = vld [vmem:[%s302 + $0x68] sm:$0xf]
        %v4329 = vld [vmem:[%s302 + $0x6c] sm:$0xf]
        %v4330 = vld [vmem:[%s302 + $0x70] sm:$0xf]
        %v4331 = vld [vmem:[%s302 + $0x74] sm:$0xf]
        %v4332 = vld [vmem:[%s302 + $0x78] sm:$0xf]
        %v4333 = vld [vmem:[%s302 + $0x7c] sm:$0xf]
        %v4334 = vunpack.c.l.bf16 %v4302
        %v4335 = vunpack.c.l.bf16 %v4303
        %v4336 = vunpack.c.l.bf16 %v4304
        %v4337 = vunpack.c.l.bf16 %v4305
        %v4338 = vunpack.c.l.bf16 %v4306
        %v4339 = vunpack.c.l.bf16 %v4307
        %v4340 = vunpack.c.l.bf16 %v4308
        %v4341 = vunpack.c.l.bf16 %v4309
        %v4342 = vunpack.c.l.bf16 %v4310
        %v4343 = vunpack.c.l.bf16 %v4311
        %v4344 = vunpack.c.l.bf16 %v4312
        %v4345 = vunpack.c.l.bf16 %v4313
        %v4346 = vunpack.c.l.bf16 %v4314
        %v4347 = vunpack.c.l.bf16 %v4315
        %v4348 = vunpack.c.l.bf16 %v4316
        %v4349 = vunpack.c.l.bf16 %v4317
        %v4350 = vunpack.c.l.bf16 %v4318
        %v4351 = vunpack.c.l.bf16 %v4319
        %v4352 = vunpack.c.l.bf16 %v4320
        %v4353 = vunpack.c.l.bf16 %v4321
        %v4354 = vunpack.c.l.bf16 %v4322
        %v4355 = vunpack.c.l.bf16 %v4323
        %v4356 = vunpack.c.l.bf16 %v4324
        %v4357 = vunpack.c.l.bf16 %v4325
        %v4358 = vunpack.c.l.bf16 %v4326
        %v4359 = vunpack.c.l.bf16 %v4327
        %v4360 = vunpack.c.l.bf16 %v4328
        %v4361 = vunpack.c.l.bf16 %v4329
        %v4362 = vunpack.c.l.bf16 %v4330
        %v4363 = vunpack.c.l.bf16 %v4331
        %v4364 = vunpack.c.l.bf16 %v4332
        %v4365 = vunpack.c.l.bf16 %v4333
        %v4366 = vadd.f32 %v4223, %v4334
        %v4367 = vadd.f32 %v4225, %v4335
        %v4368 = vadd.f32 %v4228, %v4336
        %v4369 = vadd.f32 %v4230, %v4337
        %v4370 = vadd.f32 %v4233, %v4338
        %v4371 = vadd.f32 %v4235, %v4339
        %v4372 = vadd.f32 %v4238, %v4340
        %v4373 = vadd.f32 %v4240, %v4341
        %v4374 = vadd.f32 %v4243, %v4342
        %v4375 = vadd.f32 %v4245, %v4343
        %v4376 = vadd.f32 %v4248, %v4344
        %v4377 = vadd.f32 %v4250, %v4345
        %v4378 = vadd.f32 %v4253, %v4346
        %v4379 = vadd.f32 %v4255, %v4347
        %v4380 = vadd.f32 %v4258, %v4348
        %v4381 = vadd.f32 %v4260, %v4349
        %v4382 = vadd.f32 %v4263, %v4350
        %v4383 = vadd.f32 %v4265, %v4351
        %v4384 = vadd.f32 %v4268, %v4352
        %v4385 = vadd.f32 %v4270, %v4353
        %v4386 = vadd.f32 %v4273, %v4354
        %v4387 = vadd.f32 %v4275, %v4355
        %v4388 = vadd.f32 %v4278, %v4356
        %v4389 = vadd.f32 %v4280, %v4357
        %v4390 = vadd.f32 %v4283, %v4358
        %v4391 = vadd.f32 %v4285, %v4359
        %v4392 = vadd.f32 %v4288, %v4360
        %v4393 = vadd.f32 %v4290, %v4361
        %v4394 = vadd.f32 %v4293, %v4362
        %v4395 = vadd.f32 %v4295, %v4363
        %v4396 = vadd.f32 %v4298, %v4364
        %v4397 = vadd.f32 %v4300, %v4365
        %v4398 = vmax.f32 %v4366, 0.0
        %v4399 = vmax.f32 %v4367, 0.0
        %v4400 = vmax.f32 %v4368, 0.0
        %v4401 = vmax.f32 %v4369, 0.0
        %v4402 = vmax.f32 %v4370, 0.0
        %v4403 = vmax.f32 %v4371, 0.0
        %v4404 = vmax.f32 %v4372, 0.0
        %v4405 = vmax.f32 %v4373, 0.0
        %v4406 = vmax.f32 %v4374, 0.0
        %v4407 = vmax.f32 %v4375, 0.0
        %v4408 = vmax.f32 %v4376, 0.0
        %v4409 = vmax.f32 %v4377, 0.0
        %v4410 = vmax.f32 %v4378, 0.0
        %v4411 = vmax.f32 %v4379, 0.0
        %v4412 = vmax.f32 %v4380, 0.0
        %v4413 = vmax.f32 %v4381, 0.0
        %v4414 = vmax.f32 %v4382, 0.0
        %v4415 = vmax.f32 %v4383, 0.0
        %v4416 = vmax.f32 %v4384, 0.0
        %v4417 = vmax.f32 %v4385, 0.0
        %v4418 = vmax.f32 %v4386, 0.0
        %v4419 = vmax.f32 %v4387, 0.0
        %v4420 = vmax.f32 %v4388, 0.0
        %v4421 = vmax.f32 %v4389, 0.0
        %v4422 = vmax.f32 %v4390, 0.0
        %v4423 = vmax.f32 %v4391, 0.0
        %v4424 = vmax.f32 %v4392, 0.0
        %v4425 = vmax.f32 %v4393, 0.0
        %v4426 = vmax.f32 %v4394, 0.0
        %v4427 = vmax.f32 %v4395, 0.0
        %v4428 = vmax.f32 %v4396, 0.0
        %v4429 = vmax.f32 %v4397, 0.0
        %4430 = vst [vmem:[%s348] sm:$0xff] %v4398
        %4431 = vst [vmem:[%s348 + $0x8] sm:$0xff] %v4399
        %4432 = vst [vmem:[%s348 + $0x10] sm:$0xff] %v4400
        %4433 = vst [vmem:[%s348 + $0x18] sm:$0xff] %v4401
        %4434 = vst [vmem:[%s348 + $0x20] sm:$0xff] %v4402
        %4435 = vst [vmem:[%s348 + $0x28] sm:$0xff] %v4403
        %4436 = vst [vmem:[%s348 + $0x30] sm:$0xff] %v4404
        %4437 = vst [vmem:[%s348 + $0x38] sm:$0xff] %v4405
        %4438 = vst [vmem:[%s348 + $0x40] sm:$0xff] %v4406
        %4439 = vst [vmem:[%s348 + $0x48] sm:$0xff] %v4407
        %4440 = vst [vmem:[%s348 + $0x50] sm:$0xff] %v4408
        %4441 = vst [vmem:[%s348 + $0x58] sm:$0xff] %v4409
        %4442 = vst [vmem:[%s348 + $0x60] sm:$0xff] %v4410
        %4443 = vst [vmem:[%s348 + $0x68] sm:$0xff] %v4411
        %4444 = vst [vmem:[%s348 + $0x70] sm:$0xff] %v4412
        %4445 = vst [vmem:[%s348 + $0x78] sm:$0xff] %v4413
        %4446 = vst [vmem:[%s348 + $0x80] sm:$0xff] %v4414
        %4447 = vst [vmem:[%s348 + $0x88] sm:$0xff] %v4415
        %4448 = vst [vmem:[%s348 + $0x90] sm:$0xff] %v4416
        %4449 = vst [vmem:[%s348 + $0x98] sm:$0xff] %v4417
        %4450 = vst [vmem:[%s348 + $0xa0] sm:$0xff] %v4418
        %4451 = vst [vmem:[%s348 + $0xa8] sm:$0xff] %v4419
        %4452 = vst [vmem:[%s348 + $0xb0] sm:$0xff] %v4420
        %4453 = vst [vmem:[%s348 + $0xb8] sm:$0xff] %v4421
        %4454 = vst [vmem:[%s348 + $0xc0] sm:$0xff] %v4422
        %4455 = vst [vmem:[%s348 + $0xc8] sm:$0xff] %v4423
        %4456 = vst [vmem:[%s348 + $0xd0] sm:$0xff] %v4424
        %4457 = vst [vmem:[%s348 + $0xd8] sm:$0xff] %v4425
        %4458 = vst [vmem:[%s348 + $0xe0] sm:$0xff] %v4426
        %4459 = vst [vmem:[%s348 + $0xe8] sm:$0xff] %v4427
        %4460 = vst [vmem:[%s348 + $0xf0] sm:$0xff] %v4428
        %4461 = vst [vmem:[%s348 + $0xf8] sm:$0xff] %v4429
        %s4462 = sand.u32 %s186, 1
        %s4463 = scalar_lea.sflag [#allocation6], %s4462
        %s4464 = sand.u32 %s186, 1
        %s4465 = smul.addr %s4464, 256
        %s4466 = scalar_lea.vmem [#allocation12], %s4465
        // Predicated region
        $region65: #{tpu_custom_call.1} parent=47 // pred_check
          %p4467 = pneg %p196
        $region66: #{tpu_custom_call.1} parent=47 // pred_check_branch
          %4469 = sbr.rel (%p4467) target = $region68
        $region67: #{tpu_custom_call.1} parent=47 // pred_region
          %4471 = vsyncadd %s4463, 0
          %s4472 = smul.addr %s26, 32
          %s4473 = smul.addr %s4472, 8
          %s4474 = scalar_lea.hbm %s7, %s4473
          %s4475 = sshll.u32 %s4466, 4
          %s4476 = int_to_ptr.vmem [resolvable:$true] %s4475
          %s4477 = sshll.u32 %s4474, 4
          %s4478 = int_to_ptr.hbm [resolvable:$true] %s4477
          %4483 = dma.vmem_to_hbm [thread:$0]  %s4476, 4096, %s4478, %s4463, 128, 128, 8
        $region68: #{tpu_custom_call.1} parent=47 // pred_fallthru
          _
      $region48: #{tpu_custom_call.1} parent=5 // pred_fallthru
        _
      %p4484 = scmp.le.s32.totalorder 2, %s21
      // Predicated region
      $region69: #{tpu_custom_call.1} parent=5 // pred_check
        %p4485 = pneg %p4484
      $region70: #{tpu_custom_call.1} parent=5 // pred_check_branch
        %4487 = sbr.rel (%p4485) target = $region72
      $region71: #{tpu_custom_call.1} parent=5 // pred_region
        %s4488 = ssub.s32 %s21, 2
        // Predicated region
        $region73: #{tpu_custom_call.1} parent=71 // pred_check
          %p4489 = pneg %p202
        $region74: #{tpu_custom_call.1} parent=71 // pred_check_branch
          %4491 = sbr.rel (%p4489) target = $region76
        $region75: #{tpu_custom_call.1} parent=71 // pred_region
          %s4492 = sand.u32 %s187, 1
          %s4493 = scalar_lea.sflag [#allocation6], %s4492
          %s4494 = sand.u32 %s187, 1
          %s4495 = smul.addr %s4494, 256
          %s4496 = scalar_lea.vmem [#allocation12], %s4495
          %4498 = dma.done %s4493, 4096
        $region76: #{tpu_custom_call.1} parent=71 // pred_fallthru
          _
      $region72: #{tpu_custom_call.1} parent=5 // pred_fallthru
        _
    $region6: #{tpu_custom_call.1} parent=1 // loop_footer
      %s25 = sadd.s32 1, %s21
    $region7: #{tpu_custom_call.1} parent=1 // loop_footer_branch
      %20 = sbr.rel target = $region3
    $region8: #{tpu_custom_call.1} parent=1 // loop_exit
      _
    %4499 = vsyncpa [#allocation5], 1
    %s4500 = scalar_lea.sflag [#allocation5], 1
    %4501 = vsyncpa %s4500, 1
    %4502 = vsyncpa [#allocation8], 1
    %4503 = vsyncpa [#allocation11], 1
    %4504 = vsyncpa [#allocation6], 1
    %s4505 = scalar_lea.sflag [#allocation6], 1
    %4506 = vsyncpa %s4505, 1

</llo_original>
